<compile_context>
chip_gen: v7x
topology: tpu7x:2x2x1
jax: 0.10.0
libtpu: 0.0.40
codegen_flags: <defaults>
</compile_context>

<pallas_src>
import jax
import jax.numpy as jnp
from jax import lax
from jax.experimental import pallas as pl
from jax.experimental.pallas import tpu as pltpu

K = 5        # Conv1d kernel size (padding=2, stride=1)
H = 128      # LSTM hidden size
C1 = 64      # conv1 logical output channels
C1P = 128    # conv1 output channels padded to lane width
C2 = 128     # conv2 output channels
NSP = 128    # num_speakers padded to lane width
EPS = 1e-5
NEG = -1e30  # bias for padded logit lanes (exp -> 0)


# ---------------------------------------------------------------------------
# Single fused kernel for the whole forward pass (per batch tile)
# ---------------------------------------------------------------------------
def fused_forward_kernel(
    x_ref,                          # (bt, T, F)   f32
    w1_ref, b1_ref,                 # (K*F, C1P) bf16, (1, C1P) f32   [BN1 folded]
    w2_ref, b2_ref,                 # (K*C1P, C2) bf16, (1, C2) f32   [BN2 folded]
    wih_ref, blstm_ref,             # (C2, 8H) bf16, (1, 8H) f32
    whh_ref,                        # (2H, 8H) bf16  block-diag(Whh_f, Whh_b)
    fc1w_ref, fc1b_ref,             # (2H, 128) bf16, (1, 128) f32    [BN3 folded]
    fc2w_ref, fc2b_ref,             # (128, NSP) bf16, (1, NSP) f32 (pad lanes = NEG)
    o_ref,                          # (bt, NSP)  f32
    xpad1_ref, xpad2_ref, gxs_ref,  # VMEM scratch
):
    bt, T, F = x_ref.shape
    T2, T4 = T // 2, T // 4
    bf16 = jnp.bfloat16

    # ---- conv block 1: Conv1d(F->64pad128, k=5, pad=2) [+BN folded] + ReLU + MaxPool(2,2)
    xpad1_ref[:, :2, :] = jnp.zeros((bt, 2, F), bf16)          # zero only pad rows
    xpad1_ref[:, 2 + T:, :] = jnp.zeros((bt, 2, F), bf16)
    xpad1_ref[:, 2:2 + T, :] = x_ref[...].astype(bf16)
    cols1 = jnp.concatenate([xpad1_ref[:, k:k + T, :] for k in range(K)], axis=2)
    cols1 = cols1.reshape(bt * T, K * F)                       # bf16 im2col
    y1 = jnp.dot(cols1, w1_ref[...], preferred_element_type=jnp.float32) + b1_ref[0]
    y1 = jnp.maximum(y1, 0.0)                                  # (bt*T, C1P)
    p1 = jnp.max(y1.reshape(bt * T2, 2, C1P), axis=1)          # maxpool -> (bt*T2, C1P)

    # ---- conv block 2: Conv1d(128->128, k=5, pad=2) [+BN folded] + ReLU + MaxPool(2,2)
    xpad2_ref[:, :2, :] = jnp.zeros((bt, 2, C1P), bf16)
    xpad2_ref[:, 2 + T2:, :] = jnp.zeros((bt, 2, C1P), bf16)
    xpad2_ref[:, 2:2 + T2, :] = p1.reshape(bt, T2, C1P).astype(bf16)
    cols2 = jnp.concatenate([xpad2_ref[:, k:k + T2, :] for k in range(K)], axis=2)
    cols2 = cols2.reshape(bt * T2, K * C1P)                    # 640 lanes, 128-aligned
    y2 = jnp.dot(cols2, w2_ref[...], preferred_element_type=jnp.float32) + b2_ref[0]
    y2 = jnp.maximum(y2, 0.0)                                  # (bt*T2, C2)
    p2 = jnp.max(y2.reshape(bt * T4, 2, C2), axis=1)           # (bt*T4, 128)

    # ---- BiLSTM: hoisted input projection, time-major gate scratch, fori_loop scan
    gates = jnp.dot(p2.astype(bf16), wih_ref[...],
                    preferred_element_type=jnp.float32) + blstm_ref[0]   # (bt*T4, 8H)
    gates = gates.reshape(bt, T4, 8 * H)
    for t in range(T4):                                        # time-major scratch fill
        gxs_ref[t] = gates[:, t, :]

    whh = whh_ref[...]                                         # (2H, 8H) bf16 block-diag

    def gate_act(g):                                           # PyTorch order [i, f, g, o]
        i = jax.nn.sigmoid(g[:, 0 * H:1 * H])
        f = jax.nn.sigmoid(g[:, 1 * H:2 * H])
        c = jnp.tanh(g[:, 2 * H:3 * H])
        o = jax.nn.sigmoid(g[:, 3 * H:4 * H])
        return i, f, c, o

    def step(t, carry):
        h_f, c_f, h_b, c_b = carry
        gx_f = gxs_ref[t][:, :4 * H]                           # fwd gates, time t
        gx_b = gxs_ref[T4 - 1 - t][:, 4 * H:]                  # bwd gates, time T4-1-t
        hcat = jnp.concatenate([h_f, h_b], axis=1)             # (bt, 2H)
        g_all = jnp.concatenate([gx_f, gx_b], axis=1) + jnp.dot(
            hcat.astype(bf16), whh, preferred_element_type=jnp.float32)
        i_f, f_f, g_f, o_f = gate_act(g_all[:, :4 * H])
        i_b, f_b, g_b, o_b = gate_act(g_all[:, 4 * H:])
        c_f = f_f * c_f + i_f * g_f
        h_f = o_f * jnp.tanh(c_f)
        c_b = f_b * c_b + i_b * g_b
        h_b = o_b * jnp.tanh(c_b)
        return h_f, c_f, h_b, c_b

    z = jnp.zeros((bt, H), jnp.float32)
    h_f, c_f, h_b, c_b = lax.fori_loop(0, T4, step, (z, z, z, z),
                                       unroll=True if T4 <= 8 else None)

    # ---- head: fc1 [+BN3 folded] + ReLU + (dropout=identity) + fc2(padded) + softmax
    hid = jnp.concatenate([h_f, h_b], axis=1)                  # cat(hidden[-2], hidden[-1])
    y = jnp.dot(hid.astype(bf16), fc1w_ref[...],
                preferred_element_type=jnp.float32) + fc1b_ref[0]
    y = jnp.maximum(y, 0.0)
    logits = jnp.dot(y.astype(bf16), fc2w_ref[...],
                     preferred_element_type=jnp.float32) + fc2b_ref[0]   # pad lanes ~ -1e30
    mx = jnp.max(logits, axis=1, keepdims=True)
    e = jnp.exp(logits - mx)                                   # padded lanes -> 0
    o_ref[...] = (e / jnp.sum(e, axis=1, keepdims=True)).astype(o_ref.dtype)


# ---------------------------------------------------------------------------
# Wrapper: batch-tiled grid, weights resident as full blocks
# ---------------------------------------------------------------------------
def _batch_tile(B):
    if B <= 32:
        return B
    for bt in (32, 24, 16, 8):   # 2nd-minor of the 2-D output block must be %8 or full
        if B % bt == 0:
            return bt
    return B


def speaker_id_forward(x, prepared, num_speakers):
    B, T, F = x.shape
    assert T % 4 == 0, "time_steps must be divisible by 4 (two MaxPool1d(2,2) stages)"
    assert num_speakers <= NSP
    bt = _batch_tile(B)
    T2, T4 = T // 2, T // 4

    weight_keys = ('conv1_w', 'conv1_b', 'conv2_w', 'conv2_b', 'wih', 'lstm_b',
                   'whh', 'fc1_w', 'fc1_b', 'fc2_w', 'fc2_b')
    weights = [prepared[k] for k in weight_keys]
    full = lambda a: pl.BlockSpec(a.shape, lambda i, n=a.ndim: (0,) * n)

    out = pl.pallas_call(
        fused_forward_kernel,
        out_shape=jax.ShapeDtypeStruct((B, NSP), jnp.float32),
        grid=(B // bt,),
        in_specs=[pl.BlockSpec((bt, T, F), lambda i: (i, 0, 0))]
                 + [full(w) for w in weights],
        out_specs=pl.BlockSpec((bt, NSP), lambda i: (i, 0)),
        scratch_shapes=[
            pltpu.VMEM((bt, T + 4, F), jnp.bfloat16),      # padded conv1 input
            pltpu.VMEM((bt, T2 + 4, C1P), jnp.bfloat16),   # padded conv2 input
            pltpu.VMEM((T4, bt, 8 * H), jnp.float32),      # time-major LSTM input gates
        ],
        compiler_params=pltpu.CompilerParams(
            dimension_semantics=("parallel",),
            vmem_limit_bytes=32 * 1024 * 1024),
    )(x, *weights)
    return out[:, :num_speakers]


# ---------------------------------------------------------------------------
# Parameter prep: fold eval-mode BN, pad channels/logits to 128 lanes,
# build block-diagonal Whh, cast matmul weights to bf16 (biases stay f32).
# ---------------------------------------------------------------------------
def prepare_params(p, num_speakers):
    bf16 = jnp.bfloat16

    def fold(w, b, g, beta, m, v):
        s = g * lax.rsqrt(v + EPS)               # (1, C)
        return w * s, (b - m) * s + beta

    w1, b1 = fold(p['conv1_w'], p['conv1_b'], p['bn1_g'], p['bn1_b'], p['bn1_m'], p['bn1_v'])
    w1 = jnp.pad(w1, ((0, 0), (0, C1P - C1)))                       # pad out-channels -> 0
    b1 = jnp.pad(b1, ((0, 0), (0, C1P - C1)))

    w2, b2 = fold(p['conv2_w'], p['conv2_b'], p['bn2_g'], p['bn2_b'], p['bn2_m'], p['bn2_v'])
    w2 = w2.reshape(K, C1, C2)
    w2 = jnp.pad(w2, ((0, 0), (0, C1P - C1), (0, 0))).reshape(K * C1P, C2)  # zero rows for pad ch

    whh = jnp.zeros((2 * H, 8 * H), jnp.float32)
    whh = whh.at[:H, :4 * H].set(p['whh_f']).at[H:, 4 * H:].set(p['whh_b'])

    fc1w, fc1b = fold(p['fc1_w'], p['fc1_b'], p['bn3_g'], p['bn3_b'], p['bn3_m'], p['bn3_v'])

    fc2w = jnp.pad(p['fc2_w'], ((0, 0), (0, NSP - num_speakers)))
    fc2b = jnp.pad(p['fc2_b'], ((0, 0), (0, NSP - num_speakers)), constant_values=NEG)

    return {
        'conv1_w': w1.astype(bf16), 'conv1_b': b1,
        'conv2_w': w2.astype(bf16), 'conv2_b': b2,
        'wih': p['wih'].astype(bf16), 'lstm_b': p['lstm_b'],
        'whh': whh.astype(bf16),
        'fc1_w': fc1w.astype(bf16), 'fc1_b': fc1b,
        'fc2_w': fc2w.astype(bf16), 'fc2_b': fc2b,
    }


# ---------------------------------------------------------------------------
# Deterministic logical parameter init (shapes follow the PyTorch module;
# conv weights stored im2col-style (K*Cin, Cout) = torch weight.permute(2,1,0).reshape)
# ---------------------------------------------------------------------------
def init_params(key, num_features, num_speakers):
    ks = jax.random.split(key, 32)
    r = lambda k, shp, s=0.1: (s * jax.random.normal(k, shp)).astype(jnp.float32)
    pos = lambda k, shp: (1.0 + 0.1 * jnp.abs(jax.random.normal(k, shp))).astype(jnp.float32)

    p = {}
    p['conv1_w'] = r(ks[0], (K * num_features, C1))
    p['conv1_b'] = r(ks[1], (1, C1))
    p['bn1_g'] = 1.0 + r(ks[2], (1, C1));  p['bn1_b'] = r(ks[3], (1, C1))
    p['bn1_m'] = r(ks[4], (1, C1));        p['bn1_v'] = pos(ks[5], (1, C1))
    p['conv2_w'] = r(ks[6], (K * C1, C2))
    p['conv2_b'] = r(ks[7], (1, C2))
    p['bn2_g'] = 1.0 + r(ks[8], (1, C2));  p['bn2_b'] = r(ks[9], (1, C2))
    p['bn2_m'] = r(ks[10], (1, C2));       p['bn2_v'] = pos(ks[11], (1, C2))
    # BiLSTM (input 128, hidden 128), gate order [i, f, g, o]; wih = [Wih_fwd | Wih_bwd]
    p['wih'] = r(ks[12], (C2, 8 * H))
    p['lstm_b'] = r(ks[13], (1, 8 * H))    # (b_ih + b_hh), fwd then bwd
    p['whh_f'] = r(ks[14], (H, 4 * H))
    p['whh_b'] = r(ks[15], (H, 4 * H))
    p['fc1_w'] = r(ks[16], (2 * H, 128))
    p['fc1_b'] = r(ks[17], (1, 128))
    p['bn3_g'] = 1.0 + r(ks[18], (1, 128)); p['bn3_b'] = r(ks[19], (1, 128))
    p['bn3_m'] = r(ks[20], (1, 128));       p['bn3_v'] = pos(ks[21], (1, 128))
    p['fc2_w'] = r(ks[22], (128, num_speakers))
    p['fc2_b'] = r(ks[23], (1, num_speakers))
    return p


if __name__ == "__main__":
    B = 2
    time_steps = 16          # input_shape[0]
    num_features = 32        # input_shape[1]
    num_speakers = 10

    key = jax.random.PRNGKey(0)
    k_x, k_p = jax.random.split(key)
    x = jax.random.normal(k_x, (B, time_steps, num_features), dtype=jnp.float32)
    raw = init_params(k_p, num_features, num_speakers)
    prepared = prepare_params(raw, num_speakers)

    fwd = jax.jit(lambda xx: speaker_id_forward(xx, prepared, num_speakers))
    probs = jax.block_until_ready(fwd(x))

    assert probs.shape == (B, num_speakers)
    assert bool(jnp.all(jnp.isfinite(probs)))
    assert bool(jnp.allclose(jnp.sum(probs, axis=1), 1.0, atol=1e-4))
    print("KERNEL_OK")
</pallas_src>

<mosaic_0001>
module attributes {stable_mosaic.version = 11 : i64} {
  func.func @fused_forward_kernel(%arg0: i32, %arg1: memref<2x16x32xf32, #tpu.memory_space<vmem>>, %arg2: memref<160x128xbf16, #tpu.memory_space<vmem>>, %arg3: memref<1x128xf32, #tpu.memory_space<vmem>>, %arg4: memref<640x128xbf16, #tpu.memory_space<vmem>>, %arg5: memref<1x128xf32, #tpu.memory_space<vmem>>, %arg6: memref<128x1024xbf16, #tpu.memory_space<vmem>>, %arg7: memref<1x1024xf32, #tpu.memory_space<vmem>>, %arg8: memref<256x1024xbf16, #tpu.memory_space<vmem>>, %arg9: memref<256x128xbf16, #tpu.memory_space<vmem>>, %arg10: memref<1x128xf32, #tpu.memory_space<vmem>>, %arg11: memref<128x128xbf16, #tpu.memory_space<vmem>>, %arg12: memref<1x128xf32, #tpu.memory_space<vmem>>, %arg13: memref<2x128xf32, #tpu.memory_space<vmem>>, %arg14: memref<2x20x32xbf16, #tpu.memory_space<vmem>>, %arg15: memref<2x12x128xbf16, #tpu.memory_space<vmem>>, %arg16: memref<4x2x1024xf32, #tpu.memory_space<vmem>>) attributes {dimension_semantics = [#tpu.dimension_semantics<parallel>], iteration_bounds = array<i64: 1>, scalar_prefetch = 0 : i64, scratch_operands = 3 : i64, tpu.core_type = #tpu.core_type<tc>, window_params = [{transform_indices = @transform_0, window_bounds = array<i64: 2, 16, 32>}, {pipeline_mode = #tpu.pipeline_mode<synchronous>, transform_indices = @transform_1, window_bounds = array<i64: 160, 128>}, {pipeline_mode = #tpu.pipeline_mode<synchronous>, transform_indices = @transform_2, window_bounds = array<i64: 1, 128>}, {pipeline_mode = #tpu.pipeline_mode<synchronous>, transform_indices = @transform_3, window_bounds = array<i64: 640, 128>}, {pipeline_mode = #tpu.pipeline_mode<synchronous>, transform_indices = @transform_4, window_bounds = array<i64: 1, 128>}, {pipeline_mode = #tpu.pipeline_mode<synchronous>, transform_indices = @transform_5, window_bounds = array<i64: 128, 1024>}, {pipeline_mode = #tpu.pipeline_mode<synchronous>, transform_indices = @transform_6, window_bounds = array<i64: 1, 1024>}, {pipeline_mode = #tpu.pipeline_mode<synchronous>, transform_indices = @transform_7, window_bounds = array<i64: 256, 1024>}, {pipeline_mode = #tpu.pipeline_mode<synchronous>, transform_indices = @transform_8, window_bounds = array<i64: 256, 128>}, {pipeline_mode = #tpu.pipeline_mode<synchronous>, transform_indices = @transform_9, window_bounds = array<i64: 1, 128>}, {pipeline_mode = #tpu.pipeline_mode<synchronous>, transform_indices = @transform_10, window_bounds = array<i64: 128, 128>}, {pipeline_mode = #tpu.pipeline_mode<synchronous>, transform_indices = @transform_11, window_bounds = array<i64: 1, 128>}, {transform_indices = @transform_12, window_bounds = array<i64: 2, 128>}]} {
    %cst = arith.constant 0.000000e+00 : bf16
    %0 = vector.broadcast %cst : bf16 to vector<2x2x32xbf16>
    %c0 = arith.constant 0 : index
    %c0_0 = arith.constant 0 : index
    %c0_1 = arith.constant 0 : index
    %1 = vector.load %arg14[%c0, %c0_0, %c0_1] : memref<2x20x32xbf16, #tpu.memory_space<vmem>>, vector<2x2x32xbf16>
    tpu.vector_store %arg14[%c0, %c0_0, %c0_1], %0 {strides = array<i32>} : memref<2x20x32xbf16, #tpu.memory_space<vmem>>, vector<2x2x32xbf16>,
    %cst_2 = arith.constant 0.000000e+00 : bf16
    %2 = vector.broadcast %cst_2 : bf16 to vector<2x2x32xbf16>
    %c0_3 = arith.constant 0 : index
    %c18 = arith.constant 18 : index
    %c0_4 = arith.constant 0 : index
    %3 = vector.load %arg14[%c0_3, %c18, %c0_4] : memref<2x20x32xbf16, #tpu.memory_space<vmem>>, vector<2x2x32xbf16>
    tpu.vector_store %arg14[%c0_3, %c18, %c0_4], %2 {strides = array<i32>} : memref<2x20x32xbf16, #tpu.memory_space<vmem>>, vector<2x2x32xbf16>,
    %c0_5 = arith.constant 0 : index
    %c0_6 = arith.constant 0 : index
    %c0_7 = arith.constant 0 : index
    %4 = vector.load %arg1[%c0_5, %c0_6, %c0_7] : memref<2x16x32xf32, #tpu.memory_space<vmem>>, vector<2x16x32xf32>
    %5 = arith.truncf %4 : vector<2x16x32xf32> to vector<2x16x32xbf16>
    %c0_8 = arith.constant 0 : index
    %c2 = arith.constant 2 : index
    %c0_9 = arith.constant 0 : index
    %6 = vector.load %arg14[%c0_8, %c2, %c0_9] : memref<2x20x32xbf16, #tpu.memory_space<vmem>>, vector<2x16x32xbf16>
    tpu.vector_store %arg14[%c0_8, %c2, %c0_9], %5 {strides = array<i32>} : memref<2x20x32xbf16, #tpu.memory_space<vmem>>, vector<2x16x32xbf16>,
    %c0_10 = arith.constant 0 : index
    %c0_11 = arith.constant 0 : index
    %c0_12 = arith.constant 0 : index
    %7 = vector.load %arg14[%c0_10, %c0_11, %c0_12] : memref<2x20x32xbf16, #tpu.memory_space<vmem>>, vector<2x16x32xbf16>
    %c0_13 = arith.constant 0 : index
    %c1 = arith.constant 1 : index
    %c0_14 = arith.constant 0 : index
    %8 = vector.load %arg14[%c0_13, %c1, %c0_14] : memref<2x20x32xbf16, #tpu.memory_space<vmem>>, vector<2x16x32xbf16>
    %c0_15 = arith.constant 0 : index
    %c2_16 = arith.constant 2 : index
    %c0_17 = arith.constant 0 : index
    %9 = vector.load %arg14[%c0_15, %c2_16, %c0_17] : memref<2x20x32xbf16, #tpu.memory_space<vmem>>, vector<2x16x32xbf16>
    %c0_18 = arith.constant 0 : index
    %c3 = arith.constant 3 : index
    %c0_19 = arith.constant 0 : index
    %10 = vector.load %arg14[%c0_18, %c3, %c0_19] : memref<2x20x32xbf16, #tpu.memory_space<vmem>>, vector<2x16x32xbf16>
    %c0_20 = arith.constant 0 : index
    %c4 = arith.constant 4 : index
    %c0_21 = arith.constant 0 : index
    %11 = vector.load %arg14[%c0_20, %c4, %c0_21] : memref<2x20x32xbf16, #tpu.memory_space<vmem>>, vector<2x16x32xbf16>
    %12 = tpu.concatenate %7, %8, %9, %10, %11 in 2 : vector<2x16x32xbf16>, vector<2x16x32xbf16>, vector<2x16x32xbf16>, vector<2x16x32xbf16>, vector<2x16x32xbf16> -> vector<2x16x160xbf16>
    %13 = vector.shape_cast %12 : vector<2x16x160xbf16> to vector<32x160xbf16>
    %c0_22 = arith.constant 0 : index
    %c0_23 = arith.constant 0 : index
    %14 = vector.load %arg2[%c0_22, %c0_23] : memref<160x128xbf16, #tpu.memory_space<vmem>>, vector<160x128xbf16>
    %cst_24 = arith.constant dense<0.000000e+00> : vector<32x128xf32>
    %15 = tpu.matmul %13, %14, %cst_24 {dimension_numbers = #tpu.dot_dimension_numbers<[1], [0], [0], [1], [0, 0, 1, 1], [], []>} : vector<32x160xbf16>, vector<160x128xbf16>, vector<32x128xf32> -> vector<32x128xf32>
    %c0_25 = arith.constant 0 : index
    %c0_26 = arith.constant 0 : index
    %16 = vector.load %arg3[%c0_25, %c0_26] : memref<1x128xf32, #tpu.memory_space<vmem>>, vector<1x128xf32>
    %17 = vector.shape_cast %16 : vector<1x128xf32> to vector<128xf32>
    %18 = vector.shape_cast %17 : vector<128xf32> to vector<1x128xf32>
    %19 = vector.broadcast %18 : vector<1x128xf32> to vector<32x128xf32>
    %20 = arith.addf %15, %19 : vector<32x128xf32>
    %cst_27 = arith.constant 0.000000e+00 : f32
    %21 = vector.broadcast %cst_27 : f32 to vector<32x128xf32>
    %22 = arith.maximumf %20, %21 : vector<32x128xf32>
    %23 = vector.shape_cast %22 : vector<32x128xf32> to vector<16x2x128xf32>
    %cst_28 = arith.constant dense<0xFF800000> : vector<16x128xf32>
    %24 = vector.multi_reduction <maximumf>, %23, %cst_28 [1] : vector<16x2x128xf32> to vector<16x128xf32>
    %cst_29 = arith.constant 0.000000e+00 : bf16
    %25 = vector.broadcast %cst_29 : bf16 to vector<2x2x128xbf16>
    %c0_30 = arith.constant 0 : index
    %c0_31 = arith.constant 0 : index
    %c0_32 = arith.constant 0 : index
    %26 = vector.load %arg15[%c0_30, %c0_31, %c0_32] : memref<2x12x128xbf16, #tpu.memory_space<vmem>>, vector<2x2x128xbf16>
    tpu.vector_store %arg15[%c0_30, %c0_31, %c0_32], %25 {strides = array<i32>} : memref<2x12x128xbf16, #tpu.memory_space<vmem>>, vector<2x2x128xbf16>,
    %cst_33 = arith.constant 0.000000e+00 : bf16
    %27 = vector.broadcast %cst_33 : bf16 to vector<2x2x128xbf16>
    %c0_34 = arith.constant 0 : index
    %c10 = arith.constant 10 : index
    %c0_35 = arith.constant 0 : index
    %28 = vector.load %arg15[%c0_34, %c10, %c0_35] : memref<2x12x128xbf16, #tpu.memory_space<vmem>>, vector<2x2x128xbf16>
    tpu.vector_store %arg15[%c0_34, %c10, %c0_35], %27 {strides = array<i32>} : memref<2x12x128xbf16, #tpu.memory_space<vmem>>, vector<2x2x128xbf16>,
    %29 = vector.shape_cast %24 : vector<16x128xf32> to vector<2x8x128xf32>
    %30 = arith.truncf %29 : vector<2x8x128xf32> to vector<2x8x128xbf16>
    %c0_36 = arith.constant 0 : index
    %c2_37 = arith.constant 2 : index
    %c0_38 = arith.constant 0 : index
    %31 = vector.load %arg15[%c0_36, %c2_37, %c0_38] : memref<2x12x128xbf16, #tpu.memory_space<vmem>>, vector<2x8x128xbf16>
    tpu.vector_store %arg15[%c0_36, %c2_37, %c0_38], %30 {strides = array<i32>} : memref<2x12x128xbf16, #tpu.memory_space<vmem>>, vector<2x8x128xbf16>,
    %c0_39 = arith.constant 0 : index
    %c0_40 = arith.constant 0 : index
    %c0_41 = arith.constant 0 : index
    %32 = vector.load %arg15[%c0_39, %c0_40, %c0_41] : memref<2x12x128xbf16, #tpu.memory_space<vmem>>, vector<2x8x128xbf16>
    %c0_42 = arith.constant 0 : index
    %c1_43 = arith.constant 1 : index
    %c0_44 = arith.constant 0 : index
    %33 = vector.load %arg15[%c0_42, %c1_43, %c0_44] : memref<2x12x128xbf16, #tpu.memory_space<vmem>>, vector<2x8x128xbf16>
    %c0_45 = arith.constant 0 : index
    %c2_46 = arith.constant 2 : index
    %c0_47 = arith.constant 0 : index
    %34 = vector.load %arg15[%c0_45, %c2_46, %c0_47] : memref<2x12x128xbf16, #tpu.memory_space<vmem>>, vector<2x8x128xbf16>
    %c0_48 = arith.constant 0 : index
    %c3_49 = arith.constant 3 : index
    %c0_50 = arith.constant 0 : index
    %35 = vector.load %arg15[%c0_48, %c3_49, %c0_50] : memref<2x12x128xbf16, #tpu.memory_space<vmem>>, vector<2x8x128xbf16>
    %c0_51 = arith.constant 0 : index
    %c4_52 = arith.constant 4 : index
    %c0_53 = arith.constant 0 : index
    %36 = vector.load %arg15[%c0_51, %c4_52, %c0_53] : memref<2x12x128xbf16, #tpu.memory_space<vmem>>, vector<2x8x128xbf16>
    %37 = tpu.concatenate %32, %33, %34, %35, %36 in 2 : vector<2x8x128xbf16>, vector<2x8x128xbf16>, vector<2x8x128xbf16>, vector<2x8x128xbf16>, vector<2x8x128xbf16> -> vector<2x8x640xbf16>
    %38 = vector.shape_cast %37 : vector<2x8x640xbf16> to vector<16x640xbf16>
    %c0_54 = arith.constant 0 : index
    %c0_55 = arith.constant 0 : index
    %39 = vector.load %arg4[%c0_54, %c0_55] : memref<640x128xbf16, #tpu.memory_space<vmem>>, vector<640x128xbf16>
    %cst_56 = arith.constant dense<0.000000e+00> : vector<16x128xf32>
    %40 = tpu.matmul %38, %39, %cst_56 {dimension_numbers = #tpu.dot_dimension_numbers<[1], [0], [0], [1], [0, 0, 1, 1], [], []>} : vector<16x640xbf16>, vector<640x128xbf16>, vector<16x128xf32> -> vector<16x128xf32>
    %c0_57 = arith.constant 0 : index
    %c0_58 = arith.constant 0 : index
    %41 = vector.load %arg5[%c0_57, %c0_58] : memref<1x128xf32, #tpu.memory_space<vmem>>, vector<1x128xf32>
    %42 = vector.shape_cast %41 : vector<1x128xf32> to vector<128xf32>
    %43 = vector.shape_cast %42 : vector<128xf32> to vector<1x128xf32>
    %44 = vector.broadcast %43 : vector<1x128xf32> to vector<16x128xf32>
    %45 = arith.addf %40, %44 : vector<16x128xf32>
    %cst_59 = arith.constant 0.000000e+00 : f32
    %46 = vector.broadcast %cst_59 : f32 to vector<16x128xf32>
    %47 = arith.maximumf %45, %46 : vector<16x128xf32>
    %48 = vector.shape_cast %47 : vector<16x128xf32> to vector<8x2x128xf32>
    %cst_60 = arith.constant dense<0xFF800000> : vector<8x128xf32>
    %49 = vector.multi_reduction <maximumf>, %48, %cst_60 [1] : vector<8x2x128xf32> to vector<8x128xf32>
    %50 = arith.truncf %49 : vector<8x128xf32> to vector<8x128xbf16>
    %c0_61 = arith.constant 0 : index
    %c0_62 = arith.constant 0 : index
    %51 = vector.load %arg6[%c0_61, %c0_62] : memref<128x1024xbf16, #tpu.memory_space<vmem>>, vector<128x1024xbf16>
    %cst_63 = arith.constant dense<0.000000e+00> : vector<8x1024xf32>
    %52 = tpu.matmul %50, %51, %cst_63 {dimension_numbers = #tpu.dot_dimension_numbers<[1], [0], [0], [1], [0, 0, 1, 1], [], []>} : vector<8x128xbf16>, vector<128x1024xbf16>, vector<8x1024xf32> -> vector<8x1024xf32>
    %c0_64 = arith.constant 0 : index
    %c0_65 = arith.constant 0 : index
    %53 = vector.load %arg7[%c0_64, %c0_65] : memref<1x1024xf32, #tpu.memory_space<vmem>>, vector<1x1024xf32>
    %54 = vector.shape_cast %53 : vector<1x1024xf32> to vector<1024xf32>
    %55 = vector.shape_cast %54 : vector<1024xf32> to vector<1x1024xf32>
    %56 = vector.broadcast %55 : vector<1x1024xf32> to vector<8x1024xf32>
    %57 = arith.addf %52, %56 : vector<8x1024xf32>
    %58 = vector.shape_cast %57 : vector<8x1024xf32> to vector<2x4x1024xf32>
    %59 = vector.extract_strided_slice %58 {offsets = [0, 0, 0], sizes = [2, 1, 1024], strides = [1, 1, 1]} : vector<2x4x1024xf32> to vector<2x1x1024xf32>
    %60 = vector.shape_cast %59 : vector<2x1x1024xf32> to vector<2x1024xf32>
    %c0_66 = arith.constant 0 : index
    %c0_67 = arith.constant 0 : index
    %c0_68 = arith.constant 0 : index
    %61 = vector.load %arg16[%c0_66, %c0_67, %c0_68] : memref<4x2x1024xf32, #tpu.memory_space<vmem>>, vector<1x2x1024xf32>
    %62 = vector.shape_cast %61 : vector<1x2x1024xf32> to vector<2x1024xf32>
    %63 = vector.shape_cast %60 : vector<2x1024xf32> to vector<1x2x1024xf32>
    tpu.vector_store %arg16[%c0_66, %c0_67, %c0_68], %63 {strides = array<i32>} : memref<4x2x1024xf32, #tpu.memory_space<vmem>>, vector<1x2x1024xf32>,
    %64 = vector.extract_strided_slice %58 {offsets = [0, 1, 0], sizes = [2, 1, 1024], strides = [1, 1, 1]} : vector<2x4x1024xf32> to vector<2x1x1024xf32>
    %65 = vector.shape_cast %64 : vector<2x1x1024xf32> to vector<2x1024xf32>
    %c1_69 = arith.constant 1 : index
    %c0_70 = arith.constant 0 : index
    %c0_71 = arith.constant 0 : index
    %66 = vector.load %arg16[%c1_69, %c0_70, %c0_71] : memref<4x2x1024xf32, #tpu.memory_space<vmem>>, vector<1x2x1024xf32>
    %67 = vector.shape_cast %66 : vector<1x2x1024xf32> to vector<2x1024xf32>
    %68 = vector.shape_cast %65 : vector<2x1024xf32> to vector<1x2x1024xf32>
    tpu.vector_store %arg16[%c1_69, %c0_70, %c0_71], %68 {strides = array<i32>} : memref<4x2x1024xf32, #tpu.memory_space<vmem>>, vector<1x2x1024xf32>,
    %69 = vector.extract_strided_slice %58 {offsets = [0, 2, 0], sizes = [2, 1, 1024], strides = [1, 1, 1]} : vector<2x4x1024xf32> to vector<2x1x1024xf32>
    %70 = vector.shape_cast %69 : vector<2x1x1024xf32> to vector<2x1024xf32>
    %c2_72 = arith.constant 2 : index
    %c0_73 = arith.constant 0 : index
    %c0_74 = arith.constant 0 : index
    %71 = vector.load %arg16[%c2_72, %c0_73, %c0_74] : memref<4x2x1024xf32, #tpu.memory_space<vmem>>, vector<1x2x1024xf32>
    %72 = vector.shape_cast %71 : vector<1x2x1024xf32> to vector<2x1024xf32>
    %73 = vector.shape_cast %70 : vector<2x1024xf32> to vector<1x2x1024xf32>
    tpu.vector_store %arg16[%c2_72, %c0_73, %c0_74], %73 {strides = array<i32>} : memref<4x2x1024xf32, #tpu.memory_space<vmem>>, vector<1x2x1024xf32>,
    %74 = vector.extract_strided_slice %58 {offsets = [0, 3, 0], sizes = [2, 1, 1024], strides = [1, 1, 1]} : vector<2x4x1024xf32> to vector<2x1x1024xf32>
    %75 = vector.shape_cast %74 : vector<2x1x1024xf32> to vector<2x1024xf32>
    %c3_75 = arith.constant 3 : index
    %c0_76 = arith.constant 0 : index
    %c0_77 = arith.constant 0 : index
    %76 = vector.load %arg16[%c3_75, %c0_76, %c0_77] : memref<4x2x1024xf32, #tpu.memory_space<vmem>>, vector<1x2x1024xf32>
    %77 = vector.shape_cast %76 : vector<1x2x1024xf32> to vector<2x1024xf32>
    %78 = vector.shape_cast %75 : vector<2x1024xf32> to vector<1x2x1024xf32>
    tpu.vector_store %arg16[%c3_75, %c0_76, %c0_77], %78 {strides = array<i32>} : memref<4x2x1024xf32, #tpu.memory_space<vmem>>, vector<1x2x1024xf32>,
    %c0_78 = arith.constant 0 : index
    %c0_79 = arith.constant 0 : index
    %79 = vector.load %arg8[%c0_78, %c0_79] : memref<256x1024xbf16, #tpu.memory_space<vmem>>, vector<256x1024xbf16>
    %cst_80 = arith.constant 0.000000e+00 : f32
    %80 = vector.broadcast %cst_80 : f32 to vector<2x128xf32>
    %c0_i32 = arith.constant 0 : i32
    %81 = arith.index_cast %c0_i32 : i32 to index
    %c0_81 = arith.constant 0 : index
    %c0_82 = arith.constant 0 : index
    %82 = vector.load %arg16[%81, %c0_81, %c0_82] : memref<4x2x1024xf32, #tpu.memory_space<vmem>>, vector<1x2x1024xf32>
    %83 = vector.shape_cast %82 : vector<1x2x1024xf32> to vector<2x1024xf32>
    %84 = vector.extract_strided_slice %83 {offsets = [0, 0], sizes = [2, 512], strides = [1, 1]} : vector<2x1024xf32> to vector<2x512xf32>
    %c3_i32 = arith.constant 3 : i32
    %85 = arith.subi %c3_i32, %c0_i32 : i32
    %86 = arith.index_cast %85 : i32 to index
    %c0_83 = arith.constant 0 : index
    %c0_84 = arith.constant 0 : index
    %87 = vector.load %arg16[%86, %c0_83, %c0_84] : memref<4x2x1024xf32, #tpu.memory_space<vmem>>, vector<1x2x1024xf32>
    %88 = vector.shape_cast %87 : vector<1x2x1024xf32> to vector<2x1024xf32>
    %89 = vector.extract_strided_slice %88 {offsets = [0, 512], sizes = [2, 512], strides = [1, 1]} : vector<2x1024xf32> to vector<2x512xf32>
    %90 = tpu.concatenate %80, %80 in 1 : vector<2x128xf32>, vector<2x128xf32> -> vector<2x256xf32>
    %91 = tpu.concatenate %84, %89 in 1 : vector<2x512xf32>, vector<2x512xf32> -> vector<2x1024xf32>
    %92 = arith.truncf %90 : vector<2x256xf32> to vector<2x256xbf16>
    %cst_85 = arith.constant dense<0.000000e+00> : vector<2x1024xf32>
    %93 = tpu.matmul %92, %79, %cst_85 {dimension_numbers = #tpu.dot_dimension_numbers<[1], [0], [0], [1], [0, 0, 1, 1], [], []>} : vector<2x256xbf16>, vector<256x1024xbf16>, vector<2x1024xf32> -> vector<2x1024xf32>
    %94 = arith.addf %91, %93 : vector<2x1024xf32>
    %95 = vector.extract_strided_slice %94 {offsets = [0, 0], sizes = [2, 512], strides = [1, 1]} : vector<2x1024xf32> to vector<2x512xf32>
    %96 = vector.extract_strided_slice %95 {offsets = [0, 0], sizes = [2, 128], strides = [1, 1]} : vector<2x512xf32> to vector<2x128xf32>
    %97 = arith.negf %96 : vector<2x128xf32>
    %98 = math.exp %97 : vector<2x128xf32>
    %cst_86 = arith.constant 1.000000e+00 : f32
    %99 = vector.broadcast %cst_86 : f32 to vector<2x128xf32>
    %100 = arith.addf %99, %98 : vector<2x128xf32>
    %101 = arith.divf %99, %100 : vector<2x128xf32>
    %102 = vector.extract_strided_slice %95 {offsets = [0, 128], sizes = [2, 128], strides = [1, 1]} : vector<2x512xf32> to vector<2x128xf32>
    %103 = arith.negf %102 : vector<2x128xf32>
    %104 = math.exp %103 : vector<2x128xf32>
    %cst_87 = arith.constant 1.000000e+00 : f32
    %105 = vector.broadcast %cst_87 : f32 to vector<2x128xf32>
    %106 = arith.addf %105, %104 : vector<2x128xf32>
    %107 = arith.divf %105, %106 : vector<2x128xf32>
    %108 = vector.extract_strided_slice %95 {offsets = [0, 256], sizes = [2, 128], strides = [1, 1]} : vector<2x512xf32> to vector<2x128xf32>
    %109 = math.tanh %108 : vector<2x128xf32>
    %110 = vector.extract_strided_slice %95 {offsets = [0, 384], sizes = [2, 128], strides = [1, 1]} : vector<2x512xf32> to vector<2x128xf32>
    %111 = arith.negf %110 : vector<2x128xf32>
    %112 = math.exp %111 : vector<2x128xf32>
    %cst_88 = arith.constant 1.000000e+00 : f32
    %113 = vector.broadcast %cst_88 : f32 to vector<2x128xf32>
    %114 = arith.addf %113, %112 : vector<2x128xf32>
    %115 = arith.divf %113, %114 : vector<2x128xf32>
    %116 = vector.extract_strided_slice %94 {offsets = [0, 512], sizes = [2, 512], strides = [1, 1]} : vector<2x1024xf32> to vector<2x512xf32>
    %117 = vector.extract_strided_slice %116 {offsets = [0, 0], sizes = [2, 128], strides = [1, 1]} : vector<2x512xf32> to vector<2x128xf32>
    %118 = arith.negf %117 : vector<2x128xf32>
    %119 = math.exp %118 : vector<2x128xf32>
    %cst_89 = arith.constant 1.000000e+00 : f32
    %120 = vector.broadcast %cst_89 : f32 to vector<2x128xf32>
    %121 = arith.addf %120, %119 : vector<2x128xf32>
    %122 = arith.divf %120, %121 : vector<2x128xf32>
    %123 = vector.extract_strided_slice %116 {offsets = [0, 128], sizes = [2, 128], strides = [1, 1]} : vector<2x512xf32> to vector<2x128xf32>
    %124 = arith.negf %123 : vector<2x128xf32>
    %125 = math.exp %124 : vector<2x128xf32>
    %cst_90 = arith.constant 1.000000e+00 : f32
    %126 = vector.broadcast %cst_90 : f32 to vector<2x128xf32>
    %127 = arith.addf %126, %125 : vector<2x128xf32>
    %128 = arith.divf %126, %127 : vector<2x128xf32>
    %129 = vector.extract_strided_slice %116 {offsets = [0, 256], sizes = [2, 128], strides = [1, 1]} : vector<2x512xf32> to vector<2x128xf32>
    %130 = math.tanh %129 : vector<2x128xf32>
    %131 = vector.extract_strided_slice %116 {offsets = [0, 384], sizes = [2, 128], strides = [1, 1]} : vector<2x512xf32> to vector<2x128xf32>
    %132 = arith.negf %131 : vector<2x128xf32>
    %133 = math.exp %132 : vector<2x128xf32>
    %cst_91 = arith.constant 1.000000e+00 : f32
    %134 = vector.broadcast %cst_91 : f32 to vector<2x128xf32>
    %135 = arith.addf %134, %133 : vector<2x128xf32>
    %136 = arith.divf %134, %135 : vector<2x128xf32>
    %137 = arith.mulf %107, %80 : vector<2x128xf32>
    %138 = arith.mulf %101, %109 : vector<2x128xf32>
    %139 = arith.addf %137, %138 : vector<2x128xf32>
    %140 = math.tanh %139 : vector<2x128xf32>
    %141 = arith.mulf %115, %140 : vector<2x128xf32>
    %142 = arith.mulf %128, %80 : vector<2x128xf32>
    %143 = arith.mulf %122, %130 : vector<2x128xf32>
    %144 = arith.addf %142, %143 : vector<2x128xf32>
    %145 = math.tanh %144 : vector<2x128xf32>
    %146 = arith.mulf %136, %145 : vector<2x128xf32>
    %c1_i32 = arith.constant 1 : i32
    %147 = arith.index_cast %c1_i32 : i32 to index
    %c0_92 = arith.constant 0 : index
    %c0_93 = arith.constant 0 : index
    %148 = vector.load %arg16[%147, %c0_92, %c0_93] : memref<4x2x1024xf32, #tpu.memory_space<vmem>>, vector<1x2x1024xf32>
    %149 = vector.shape_cast %148 : vector<1x2x1024xf32> to vector<2x1024xf32>
    %150 = vector.extract_strided_slice %149 {offsets = [0, 0], sizes = [2, 512], strides = [1, 1]} : vector<2x1024xf32> to vector<2x512xf32>
    %c3_i32_94 = arith.constant 3 : i32
    %151 = arith.subi %c3_i32_94, %c1_i32 : i32
    %152 = arith.index_cast %151 : i32 to index
    %c0_95 = arith.constant 0 : index
    %c0_96 = arith.constant 0 : index
    %153 = vector.load %arg16[%152, %c0_95, %c0_96] : memref<4x2x1024xf32, #tpu.memory_space<vmem>>, vector<1x2x1024xf32>
    %154 = vector.shape_cast %153 : vector<1x2x1024xf32> to vector<2x1024xf32>
    %155 = vector.extract_strided_slice %154 {offsets = [0, 512], sizes = [2, 512], strides = [1, 1]} : vector<2x1024xf32> to vector<2x512xf32>
    %156 = tpu.concatenate %141, %146 in 1 : vector<2x128xf32>, vector<2x128xf32> -> vector<2x256xf32>
    %157 = tpu.concatenate %150, %155 in 1 : vector<2x512xf32>, vector<2x512xf32> -> vector<2x1024xf32>
    %158 = arith.truncf %156 : vector<2x256xf32> to vector<2x256xbf16>
    %cst_97 = arith.constant dense<0.000000e+00> : vector<2x1024xf32>
    %159 = tpu.matmul %158, %79, %cst_97 {dimension_numbers = #tpu.dot_dimension_numbers<[1], [0], [0], [1], [0, 0, 1, 1], [], []>} : vector<2x256xbf16>, vector<256x1024xbf16>, vector<2x1024xf32> -> vector<2x1024xf32>
    %160 = arith.addf %157, %159 : vector<2x1024xf32>
    %161 = vector.extract_strided_slice %160 {offsets = [0, 0], sizes = [2, 512], strides = [1, 1]} : vector<2x1024xf32> to vector<2x512xf32>
    %162 = vector.extract_strided_slice %161 {offsets = [0, 0], sizes = [2, 128], strides = [1, 1]} : vector<2x512xf32> to vector<2x128xf32>
    %163 = arith.negf %162 : vector<2x128xf32>
    %164 = math.exp %163 : vector<2x128xf32>
    %cst_98 = arith.constant 1.000000e+00 : f32
    %165 = vector.broadcast %cst_98 : f32 to vector<2x128xf32>
    %166 = arith.addf %165, %164 : vector<2x128xf32>
    %167 = arith.divf %165, %166 : vector<2x128xf32>
    %168 = vector.extract_strided_slice %161 {offsets = [0, 128], sizes = [2, 128], strides = [1, 1]} : vector<2x512xf32> to vector<2x128xf32>
    %169 = arith.negf %168 : vector<2x128xf32>
    %170 = math.exp %169 : vector<2x128xf32>
    %cst_99 = arith.constant 1.000000e+00 : f32
    %171 = vector.broadcast %cst_99 : f32 to vector<2x128xf32>
    %172 = arith.addf %171, %170 : vector<2x128xf32>
    %173 = arith.divf %171, %172 : vector<2x128xf32>
    %174 = vector.extract_strided_slice %161 {offsets = [0, 256], sizes = [2, 128], strides = [1, 1]} : vector<2x512xf32> to vector<2x128xf32>
    %175 = math.tanh %174 : vector<2x128xf32>
    %176 = vector.extract_strided_slice %161 {offsets = [0, 384], sizes = [2, 128], strides = [1, 1]} : vector<2x512xf32> to vector<2x128xf32>
    %177 = arith.negf %176 : vector<2x128xf32>
    %178 = math.exp %177 : vector<2x128xf32>
    %cst_100 = arith.constant 1.000000e+00 : f32
    %179 = vector.broadcast %cst_100 : f32 to vector<2x128xf32>
    %180 = arith.addf %179, %178 : vector<2x128xf32>
    %181 = arith.divf %179, %180 : vector<2x128xf32>
    %182 = vector.extract_strided_slice %160 {offsets = [0, 512], sizes = [2, 512], strides = [1, 1]} : vector<2x1024xf32> to vector<2x512xf32>
    %183 = vector.extract_strided_slice %182 {offsets = [0, 0], sizes = [2, 128], strides = [1, 1]} : vector<2x512xf32> to vector<2x128xf32>
    %184 = arith.negf %183 : vector<2x128xf32>
    %185 = math.exp %184 : vector<2x128xf32>
    %cst_101 = arith.constant 1.000000e+00 : f32
    %186 = vector.broadcast %cst_101 : f32 to vector<2x128xf32>
    %187 = arith.addf %186, %185 : vector<2x128xf32>
    %188 = arith.divf %186, %187 : vector<2x128xf32>
    %189 = vector.extract_strided_slice %182 {offsets = [0, 128], sizes = [2, 128], strides = [1, 1]} : vector<2x512xf32> to vector<2x128xf32>
    %190 = arith.negf %189 : vector<2x128xf32>
    %191 = math.exp %190 : vector<2x128xf32>
    %cst_102 = arith.constant 1.000000e+00 : f32
    %192 = vector.broadcast %cst_102 : f32 to vector<2x128xf32>
    %193 = arith.addf %192, %191 : vector<2x128xf32>
    %194 = arith.divf %192, %193 : vector<2x128xf32>
    %195 = vector.extract_strided_slice %182 {offsets = [0, 256], sizes = [2, 128], strides = [1, 1]} : vector<2x512xf32> to vector<2x128xf32>
    %196 = math.tanh %195 : vector<2x128xf32>
    %197 = vector.extract_strided_slice %182 {offsets = [0, 384], sizes = [2, 128], strides = [1, 1]} : vector<2x512xf32> to vector<2x128xf32>
    %198 = arith.negf %197 : vector<2x128xf32>
    %199 = math.exp %198 : vector<2x128xf32>
    %cst_103 = arith.constant 1.000000e+00 : f32
    %200 = vector.broadcast %cst_103 : f32 to vector<2x128xf32>
    %201 = arith.addf %200, %199 : vector<2x128xf32>
    %202 = arith.divf %200, %201 : vector<2x128xf32>
    %203 = arith.mulf %173, %139 : vector<2x128xf32>
    %204 = arith.mulf %167, %175 : vector<2x128xf32>
    %205 = arith.addf %203, %204 : vector<2x128xf32>
    %206 = math.tanh %205 : vector<2x128xf32>
    %207 = arith.mulf %181, %206 : vector<2x128xf32>
    %208 = arith.mulf %194, %144 : vector<2x128xf32>
    %209 = arith.mulf %188, %196 : vector<2x128xf32>
    %210 = arith.addf %208, %209 : vector<2x128xf32>
    %211 = math.tanh %210 : vector<2x128xf32>
    %212 = arith.mulf %202, %211 : vector<2x128xf32>
    %c2_i32 = arith.constant 2 : i32
    %213 = arith.index_cast %c2_i32 : i32 to index
    %c0_104 = arith.constant 0 : index
    %c0_105 = arith.constant 0 : index
    %214 = vector.load %arg16[%213, %c0_104, %c0_105] : memref<4x2x1024xf32, #tpu.memory_space<vmem>>, vector<1x2x1024xf32>
    %215 = vector.shape_cast %214 : vector<1x2x1024xf32> to vector<2x1024xf32>
    %216 = vector.extract_strided_slice %215 {offsets = [0, 0], sizes = [2, 512], strides = [1, 1]} : vector<2x1024xf32> to vector<2x512xf32>
    %c3_i32_106 = arith.constant 3 : i32
    %217 = arith.subi %c3_i32_106, %c2_i32 : i32
    %218 = arith.index_cast %217 : i32 to index
    %c0_107 = arith.constant 0 : index
    %c0_108 = arith.constant 0 : index
    %219 = vector.load %arg16[%218, %c0_107, %c0_108] : memref<4x2x1024xf32, #tpu.memory_space<vmem>>, vector<1x2x1024xf32>
    %220 = vector.shape_cast %219 : vector<1x2x1024xf32> to vector<2x1024xf32>
    %221 = vector.extract_strided_slice %220 {offsets = [0, 512], sizes = [2, 512], strides = [1, 1]} : vector<2x1024xf32> to vector<2x512xf32>
    %222 = tpu.concatenate %207, %212 in 1 : vector<2x128xf32>, vector<2x128xf32> -> vector<2x256xf32>
    %223 = tpu.concatenate %216, %221 in 1 : vector<2x512xf32>, vector<2x512xf32> -> vector<2x1024xf32>
    %224 = arith.truncf %222 : vector<2x256xf32> to vector<2x256xbf16>
    %cst_109 = arith.constant dense<0.000000e+00> : vector<2x1024xf32>
    %225 = tpu.matmul %224, %79, %cst_109 {dimension_numbers = #tpu.dot_dimension_numbers<[1], [0], [0], [1], [0, 0, 1, 1], [], []>} : vector<2x256xbf16>, vector<256x1024xbf16>, vector<2x1024xf32> -> vector<2x1024xf32>
    %226 = arith.addf %223, %225 : vector<2x1024xf32>
    %227 = vector.extract_strided_slice %226 {offsets = [0, 0], sizes = [2, 512], strides = [1, 1]} : vector<2x1024xf32> to vector<2x512xf32>
    %228 = vector.extract_strided_slice %227 {offsets = [0, 0], sizes = [2, 128], strides = [1, 1]} : vector<2x512xf32> to vector<2x128xf32>
    %229 = arith.negf %228 : vector<2x128xf32>
    %230 = math.exp %229 : vector<2x128xf32>
    %cst_110 = arith.constant 1.000000e+00 : f32
    %231 = vector.broadcast %cst_110 : f32 to vector<2x128xf32>
    %232 = arith.addf %231, %230 : vector<2x128xf32>
    %233 = arith.divf %231, %232 : vector<2x128xf32>
    %234 = vector.extract_strided_slice %227 {offsets = [0, 128], sizes = [2, 128], strides = [1, 1]} : vector<2x512xf32> to vector<2x128xf32>
    %235 = arith.negf %234 : vector<2x128xf32>
    %236 = math.exp %235 : vector<2x128xf32>
    %cst_111 = arith.constant 1.000000e+00 : f32
    %237 = vector.broadcast %cst_111 : f32 to vector<2x128xf32>
    %238 = arith.addf %237, %236 : vector<2x128xf32>
    %239 = arith.divf %237, %238 : vector<2x128xf32>
    %240 = vector.extract_strided_slice %227 {offsets = [0, 256], sizes = [2, 128], strides = [1, 1]} : vector<2x512xf32> to vector<2x128xf32>
    %241 = math.tanh %240 : vector<2x128xf32>
    %242 = vector.extract_strided_slice %227 {offsets = [0, 384], sizes = [2, 128], strides = [1, 1]} : vector<2x512xf32> to vector<2x128xf32>
    %243 = arith.negf %242 : vector<2x128xf32>
    %244 = math.exp %243 : vector<2x128xf32>
    %cst_112 = arith.constant 1.000000e+00 : f32
    %245 = vector.broadcast %cst_112 : f32 to vector<2x128xf32>
    %246 = arith.addf %245, %244 : vector<2x128xf32>
    %247 = arith.divf %245, %246 : vector<2x128xf32>
    %248 = vector.extract_strided_slice %226 {offsets = [0, 512], sizes = [2, 512], strides = [1, 1]} : vector<2x1024xf32> to vector<2x512xf32>
    %249 = vector.extract_strided_slice %248 {offsets = [0, 0], sizes = [2, 128], strides = [1, 1]} : vector<2x512xf32> to vector<2x128xf32>
    %250 = arith.negf %249 : vector<2x128xf32>
    %251 = math.exp %250 : vector<2x128xf32>
    %cst_113 = arith.constant 1.000000e+00 : f32
    %252 = vector.broadcast %cst_113 : f32 to vector<2x128xf32>
    %253 = arith.addf %252, %251 : vector<2x128xf32>
    %254 = arith.divf %252, %253 : vector<2x128xf32>
    %255 = vector.extract_strided_slice %248 {offsets = [0, 128], sizes = [2, 128], strides = [1, 1]} : vector<2x512xf32> to vector<2x128xf32>
    %256 = arith.negf %255 : vector<2x128xf32>
    %257 = math.exp %256 : vector<2x128xf32>
    %cst_114 = arith.constant 1.000000e+00 : f32
    %258 = vector.broadcast %cst_114 : f32 to vector<2x128xf32>
    %259 = arith.addf %258, %257 : vector<2x128xf32>
    %260 = arith.divf %258, %259 : vector<2x128xf32>
    %261 = vector.extract_strided_slice %248 {offsets = [0, 256], sizes = [2, 128], strides = [1, 1]} : vector<2x512xf32> to vector<2x128xf32>
    %262 = math.tanh %261 : vector<2x128xf32>
    %263 = vector.extract_strided_slice %248 {offsets = [0, 384], sizes = [2, 128], strides = [1, 1]} : vector<2x512xf32> to vector<2x128xf32>
    %264 = arith.negf %263 : vector<2x128xf32>
    %265 = math.exp %264 : vector<2x128xf32>
    %cst_115 = arith.constant 1.000000e+00 : f32
    %266 = vector.broadcast %cst_115 : f32 to vector<2x128xf32>
    %267 = arith.addf %266, %265 : vector<2x128xf32>
    %268 = arith.divf %266, %267 : vector<2x128xf32>
    %269 = arith.mulf %239, %205 : vector<2x128xf32>
    %270 = arith.mulf %233, %241 : vector<2x128xf32>
    %271 = arith.addf %269, %270 : vector<2x128xf32>
    %272 = math.tanh %271 : vector<2x128xf32>
    %273 = arith.mulf %247, %272 : vector<2x128xf32>
    %274 = arith.mulf %260, %210 : vector<2x128xf32>
    %275 = arith.mulf %254, %262 : vector<2x128xf32>
    %276 = arith.addf %274, %275 : vector<2x128xf32>
    %277 = math.tanh %276 : vector<2x128xf32>
    %278 = arith.mulf %268, %277 : vector<2x128xf32>
    %c3_i32_116 = arith.constant 3 : i32
    %279 = arith.index_cast %c3_i32_116 : i32 to index
    %c0_117 = arith.constant 0 : index
    %c0_118 = arith.constant 0 : index
    %280 = vector.load %arg16[%279, %c0_117, %c0_118] : memref<4x2x1024xf32, #tpu.memory_space<vmem>>, vector<1x2x1024xf32>
    %281 = vector.shape_cast %280 : vector<1x2x1024xf32> to vector<2x1024xf32>
    %282 = vector.extract_strided_slice %281 {offsets = [0, 0], sizes = [2, 512], strides = [1, 1]} : vector<2x1024xf32> to vector<2x512xf32>
    %c3_i32_119 = arith.constant 3 : i32
    %283 = arith.subi %c3_i32_119, %c3_i32_116 : i32
    %284 = arith.index_cast %283 : i32 to index
    %c0_120 = arith.constant 0 : index
    %c0_121 = arith.constant 0 : index
    %285 = vector.load %arg16[%284, %c0_120, %c0_121] : memref<4x2x1024xf32, #tpu.memory_space<vmem>>, vector<1x2x1024xf32>
    %286 = vector.shape_cast %285 : vector<1x2x1024xf32> to vector<2x1024xf32>
    %287 = vector.extract_strided_slice %286 {offsets = [0, 512], sizes = [2, 512], strides = [1, 1]} : vector<2x1024xf32> to vector<2x512xf32>
    %288 = tpu.concatenate %273, %278 in 1 : vector<2x128xf32>, vector<2x128xf32> -> vector<2x256xf32>
    %289 = tpu.concatenate %282, %287 in 1 : vector<2x512xf32>, vector<2x512xf32> -> vector<2x1024xf32>
    %290 = arith.truncf %288 : vector<2x256xf32> to vector<2x256xbf16>
    %cst_122 = arith.constant dense<0.000000e+00> : vector<2x1024xf32>
    %291 = tpu.matmul %290, %79, %cst_122 {dimension_numbers = #tpu.dot_dimension_numbers<[1], [0], [0], [1], [0, 0, 1, 1], [], []>} : vector<2x256xbf16>, vector<256x1024xbf16>, vector<2x1024xf32> -> vector<2x1024xf32>
    %292 = arith.addf %289, %291 : vector<2x1024xf32>
    %293 = vector.extract_strided_slice %292 {offsets = [0, 0], sizes = [2, 512], strides = [1, 1]} : vector<2x1024xf32> to vector<2x512xf32>
    %294 = vector.extract_strided_slice %293 {offsets = [0, 0], sizes = [2, 128], strides = [1, 1]} : vector<2x512xf32> to vector<2x128xf32>
    %295 = arith.negf %294 : vector<2x128xf32>
    %296 = math.exp %295 : vector<2x128xf32>
    %cst_123 = arith.constant 1.000000e+00 : f32
    %297 = vector.broadcast %cst_123 : f32 to vector<2x128xf32>
    %298 = arith.addf %297, %296 : vector<2x128xf32>
    %299 = arith.divf %297, %298 : vector<2x128xf32>
    %300 = vector.extract_strided_slice %293 {offsets = [0, 128], sizes = [2, 128], strides = [1, 1]} : vector<2x512xf32> to vector<2x128xf32>
    %301 = arith.negf %300 : vector<2x128xf32>
    %302 = math.exp %301 : vector<2x128xf32>
    %cst_124 = arith.constant 1.000000e+00 : f32
    %303 = vector.broadcast %cst_124 : f32 to vector<2x128xf32>
    %304 = arith.addf %303, %302 : vector<2x128xf32>
    %305 = arith.divf %303, %304 : vector<2x128xf32>
    %306 = vector.extract_strided_slice %293 {offsets = [0, 256], sizes = [2, 128], strides = [1, 1]} : vector<2x512xf32> to vector<2x128xf32>
    %307 = math.tanh %306 : vector<2x128xf32>
    %308 = vector.extract_strided_slice %293 {offsets = [0, 384], sizes = [2, 128], strides = [1, 1]} : vector<2x512xf32> to vector<2x128xf32>
    %309 = arith.negf %308 : vector<2x128xf32>
    %310 = math.exp %309 : vector<2x128xf32>
    %cst_125 = arith.constant 1.000000e+00 : f32
    %311 = vector.broadcast %cst_125 : f32 to vector<2x128xf32>
    %312 = arith.addf %311, %310 : vector<2x128xf32>
    %313 = arith.divf %311, %312 : vector<2x128xf32>
    %314 = vector.extract_strided_slice %292 {offsets = [0, 512], sizes = [2, 512], strides = [1, 1]} : vector<2x1024xf32> to vector<2x512xf32>
    %315 = vector.extract_strided_slice %314 {offsets = [0, 0], sizes = [2, 128], strides = [1, 1]} : vector<2x512xf32> to vector<2x128xf32>
    %316 = arith.negf %315 : vector<2x128xf32>
    %317 = math.exp %316 : vector<2x128xf32>
    %cst_126 = arith.constant 1.000000e+00 : f32
    %318 = vector.broadcast %cst_126 : f32 to vector<2x128xf32>
    %319 = arith.addf %318, %317 : vector<2x128xf32>
    %320 = arith.divf %318, %319 : vector<2x128xf32>
    %321 = vector.extract_strided_slice %314 {offsets = [0, 128], sizes = [2, 128], strides = [1, 1]} : vector<2x512xf32> to vector<2x128xf32>
    %322 = arith.negf %321 : vector<2x128xf32>
    %323 = math.exp %322 : vector<2x128xf32>
    %cst_127 = arith.constant 1.000000e+00 : f32
    %324 = vector.broadcast %cst_127 : f32 to vector<2x128xf32>
    %325 = arith.addf %324, %323 : vector<2x128xf32>
    %326 = arith.divf %324, %325 : vector<2x128xf32>
    %327 = vector.extract_strided_slice %314 {offsets = [0, 256], sizes = [2, 128], strides = [1, 1]} : vector<2x512xf32> to vector<2x128xf32>
    %328 = math.tanh %327 : vector<2x128xf32>
    %329 = vector.extract_strided_slice %314 {offsets = [0, 384], sizes = [2, 128], strides = [1, 1]} : vector<2x512xf32> to vector<2x128xf32>
    %330 = arith.negf %329 : vector<2x128xf32>
    %331 = math.exp %330 : vector<2x128xf32>
    %cst_128 = arith.constant 1.000000e+00 : f32
    %332 = vector.broadcast %cst_128 : f32 to vector<2x128xf32>
    %333 = arith.addf %332, %331 : vector<2x128xf32>
    %334 = arith.divf %332, %333 : vector<2x128xf32>
    %335 = arith.mulf %305, %271 : vector<2x128xf32>
    %336 = arith.mulf %299, %307 : vector<2x128xf32>
    %337 = arith.addf %335, %336 : vector<2x128xf32>
    %338 = math.tanh %337 : vector<2x128xf32>
    %339 = arith.mulf %313, %338 : vector<2x128xf32>
    %340 = arith.mulf %326, %276 : vector<2x128xf32>
    %341 = arith.mulf %320, %328 : vector<2x128xf32>
    %342 = arith.addf %340, %341 : vector<2x128xf32>
    %343 = math.tanh %342 : vector<2x128xf32>
    %344 = arith.mulf %334, %343 : vector<2x128xf32>
    %c4_i32 = arith.constant 4 : i32
    %345 = tpu.concatenate %339, %344 in 1 : vector<2x128xf32>, vector<2x128xf32> -> vector<2x256xf32>
    %346 = arith.truncf %345 : vector<2x256xf32> to vector<2x256xbf16>
    %c0_129 = arith.constant 0 : index
    %c0_130 = arith.constant 0 : index
    %347 = vector.load %arg9[%c0_129, %c0_130] : memref<256x128xbf16, #tpu.memory_space<vmem>>, vector<256x128xbf16>
    %cst_131 = arith.constant dense<0.000000e+00> : vector<2x128xf32>
    %348 = tpu.matmul %346, %347, %cst_131 {dimension_numbers = #tpu.dot_dimension_numbers<[1], [0], [0], [1], [0, 0, 1, 1], [], []>} : vector<2x256xbf16>, vector<256x128xbf16>, vector<2x128xf32> -> vector<2x128xf32>
    %c0_132 = arith.constant 0 : index
    %c0_133 = arith.constant 0 : index
    %349 = vector.load %arg10[%c0_132, %c0_133] : memref<1x128xf32, #tpu.memory_space<vmem>>, vector<1x128xf32>
    %350 = vector.shape_cast %349 : vector<1x128xf32> to vector<128xf32>
    %351 = vector.shape_cast %350 : vector<128xf32> to vector<1x128xf32>
    %352 = vector.broadcast %351 : vector<1x128xf32> to vector<2x128xf32>
    %353 = arith.addf %348, %352 : vector<2x128xf32>
    %cst_134 = arith.constant 0.000000e+00 : f32
    %354 = vector.broadcast %cst_134 : f32 to vector<2x128xf32>
    %355 = arith.maximumf %353, %354 : vector<2x128xf32>
    %356 = arith.truncf %355 : vector<2x128xf32> to vector<2x128xbf16>
    %c0_135 = arith.constant 0 : index
    %c0_136 = arith.constant 0 : index
    %357 = vector.load %arg11[%c0_135, %c0_136] : memref<128x128xbf16, #tpu.memory_space<vmem>>, vector<128x128xbf16>
    %cst_137 = arith.constant dense<0.000000e+00> : vector<2x128xf32>
    %358 = tpu.matmul %356, %357, %cst_137 {dimension_numbers = #tpu.dot_dimension_numbers<[1], [0], [0], [1], [0, 0, 1, 1], [], []>} : vector<2x128xbf16>, vector<128x128xbf16>, vector<2x128xf32> -> vector<2x128xf32>
    %c0_138 = arith.constant 0 : index
    %c0_139 = arith.constant 0 : index
    %359 = vector.load %arg12[%c0_138, %c0_139] : memref<1x128xf32, #tpu.memory_space<vmem>>, vector<1x128xf32>
    %360 = vector.shape_cast %359 : vector<1x128xf32> to vector<128xf32>
    %361 = vector.shape_cast %360 : vector<128xf32> to vector<1x128xf32>
    %362 = vector.broadcast %361 : vector<1x128xf32> to vector<2x128xf32>
    %363 = arith.addf %358, %362 : vector<2x128xf32>
    %cst_140 = arith.constant dense<0xFF800000> : vector<2xf32>
    %364 = vector.multi_reduction <maximumf>, %363, %cst_140 [1] : vector<2x128xf32> to vector<2xf32>
    %365 = vector.shape_cast %364 : vector<2xf32> to vector<2x1xf32>
    %366 = vector.broadcast %365 : vector<2x1xf32> to vector<2x128xf32>
    %367 = arith.subf %363, %366 : vector<2x128xf32>
    %368 = math.exp %367 : vector<2x128xf32>
    %cst_141 = arith.constant dense<0.000000e+00> : vector<2xf32>
    %369 = vector.multi_reduction <add>, %368, %cst_141 [1] : vector<2x128xf32> to vector<2xf32>
    %370 = vector.shape_cast %369 : vector<2xf32> to vector<2x1xf32>
    %371 = vector.broadcast %370 : vector<2x1xf32> to vector<2x128xf32>
    %372 = arith.divf %368, %371 : vector<2x128xf32>
    %c0_142 = arith.constant 0 : index
    %c0_143 = arith.constant 0 : index
    %373 = vector.load %arg13[%c0_142, %c0_143] : memref<2x128xf32, #tpu.memory_space<vmem>>, vector<2x128xf32>
    tpu.vector_store %arg13[%c0_142, %c0_143], %372 {strides = array<i32>} : memref<2x128xf32, #tpu.memory_space<vmem>>, vector<2x128xf32>,
    return
  }
  func.func @transform_0(%arg0: i32) -> (i32, i32, i32) {
    %c0_i32 = arith.constant 0 : i32
    %c0_i32_0 = arith.constant 0 : i32
    %c0_i32_1 = arith.constant 0 : i32
    return %arg0, %c0_i32, %c0_i32_0 : i32, i32, i32
  }
  func.func @transform_1(%arg0: i32) -> (i32, i32) {
    %c0_i32 = arith.constant 0 : i32
    %c0_i32_0 = arith.constant 0 : i32
    %c0_i32_1 = arith.constant 0 : i32
    return %c0_i32, %c0_i32_0 : i32, i32
  }
  func.func @transform_2(%arg0: i32) -> (i32, i32) {
    %c0_i32 = arith.constant 0 : i32
    %c0_i32_0 = arith.constant 0 : i32
    %c0_i32_1 = arith.constant 0 : i32
    return %c0_i32, %c0_i32_0 : i32, i32
  }
  func.func @transform_3(%arg0: i32) -> (i32, i32) {
    %c0_i32 = arith.constant 0 : i32
    %c0_i32_0 = arith.constant 0 : i32
    %c0_i32_1 = arith.constant 0 : i32
    return %c0_i32, %c0_i32_0 : i32, i32
  }
  func.func @transform_4(%arg0: i32) -> (i32, i32) {
    %c0_i32 = arith.constant 0 : i32
    %c0_i32_0 = arith.constant 0 : i32
    %c0_i32_1 = arith.constant 0 : i32
    return %c0_i32, %c0_i32_0 : i32, i32
  }
  func.func @transform_5(%arg0: i32) -> (i32, i32) {
    %c0_i32 = arith.constant 0 : i32
    %c0_i32_0 = arith.constant 0 : i32
    %c0_i32_1 = arith.constant 0 : i32
    return %c0_i32, %c0_i32_0 : i32, i32
  }
  func.func @transform_6(%arg0: i32) -> (i32, i32) {
    %c0_i32 = arith.constant 0 : i32
    %c0_i32_0 = arith.constant 0 : i32
    %c0_i32_1 = arith.constant 0 : i32
    return %c0_i32, %c0_i32_0 : i32, i32
  }
  func.func @transform_7(%arg0: i32) -> (i32, i32) {
    %c0_i32 = arith.constant 0 : i32
    %c0_i32_0 = arith.constant 0 : i32
    %c0_i32_1 = arith.constant 0 : i32
    return %c0_i32, %c0_i32_0 : i32, i32
  }
  func.func @transform_8(%arg0: i32) -> (i32, i32) {
    %c0_i32 = arith.constant 0 : i32
    %c0_i32_0 = arith.constant 0 : i32
    %c0_i32_1 = arith.constant 0 : i32
    return %c0_i32, %c0_i32_0 : i32, i32
  }
  func.func @transform_9(%arg0: i32) -> (i32, i32) {
    %c0_i32 = arith.constant 0 : i32
    %c0_i32_0 = arith.constant 0 : i32
    %c0_i32_1 = arith.constant 0 : i32
    return %c0_i32, %c0_i32_0 : i32, i32
  }
  func.func @transform_10(%arg0: i32) -> (i32, i32) {
    %c0_i32 = arith.constant 0 : i32
    %c0_i32_0 = arith.constant 0 : i32
    %c0_i32_1 = arith.constant 0 : i32
    return %c0_i32, %c0_i32_0 : i32, i32
  }
  func.func @transform_11(%arg0: i32) -> (i32, i32) {
    %c0_i32 = arith.constant 0 : i32
    %c0_i32_0 = arith.constant 0 : i32
    %c0_i32_1 = arith.constant 0 : i32
    return %c0_i32, %c0_i32_0 : i32, i32
  }
  func.func @transform_12(%arg0: i32) -> (i32, i32) {
    %c0_i32 = arith.constant 0 : i32
    %c0_i32_0 = arith.constant 0 : i32
    return %arg0, %c0_i32 : i32, i32
  }
}

</mosaic_0001>

<llo_original>
// kernel: _lambda_.1
$region0: #{_lambda_.1}
  #allocation0 [shape = 'u32[]', space=smem, size = 0x4, offset = 0x4, fixed_abs, tag = 'smem constant byte address 0x4 - core index']
  #allocation1 [shape = 'u32[144,128]{1,0:T(1,128)}', space=vmem, size = 0x12000, scoped, tag = 'internal scratch']
  #allocation2 [shape = 'bf16[2,20,32]{2,1,0:T(8,128)(2,1)}', space=vmem, size = 0x3000, scoped, tag = 'scratch operand']
  #allocation3 [shape = 'bf16[2,12,128]{2,1,0:T(8,128)(2,1)}', space=vmem, size = 0x2000, scoped, tag = 'scratch operand']
  #allocation4 [shape = 'f32[4,2,1024]{2,1,0:T(2,128)}', space=vmem, size = 0x8000, scoped, tag = 'scratch operand']
  %s0 = inlined_call_operand.vmem [shape: f32[2,16,32], index: 0, kind: input, shape index: {}]
  %s1 = inlined_call_operand.vmem [shape: bf16[160,128], index: 1, kind: input, shape index: {}]
  %s2 = inlined_call_operand.vmem [shape: f32[1,128], index: 2, kind: input, shape index: {}]
  %s3 = inlined_call_operand.vmem [shape: bf16[640,128], index: 3, kind: input, shape index: {}]
  %s4 = inlined_call_operand.vmem [shape: f32[1,128], index: 4, kind: input, shape index: {}]
  %s5 = inlined_call_operand.vmem [shape: bf16[128,1024], index: 5, kind: input, shape index: {}]
  %s6 = inlined_call_operand.vmem [shape: f32[1,1024], index: 6, kind: input, shape index: {}]
  %s7 = inlined_call_operand.vmem [shape: bf16[256,1024], index: 7, kind: input, shape index: {}]
  %s8 = inlined_call_operand.vmem [shape: bf16[256,128], index: 8, kind: input, shape index: {}]
  %s9 = inlined_call_operand.vmem [shape: f32[1,128], index: 9, kind: input, shape index: {}]
  %s10 = inlined_call_operand.vmem [shape: bf16[128,128], index: 10, kind: input, shape index: {}]
  %s11 = inlined_call_operand.vmem [shape: f32[1,128], index: 11, kind: input, shape index: {}]
  %s12 = inlined_call_operand.hbm [shape: f32[2,128], index: 12, kind: output, shape index: {}]
  %s13 = sld [smem:[#allocation0]]
  $region58: #{_lambda_.1} parent=0
    _
  %s15 = ssub.s32 1, %s13
  %s16 = scalar_select 0, %s15, %s13
  $region1: #{_lambda_.1} parent=0
    #allocation5 [shape = 'u8[1024]{0}', space=vmem, size = 0x400, scoped, tag = 'output window, operand 0, single buffered']
    #allocation6 [shape = 's32[1]{0}', space=sflag, size = 0x4, scoped, tag = 'scoped memory for _lambda_.1']
    %17 = vsyncpa [#allocation6], 0
    // Predicated region
    $region2: #{_lambda_.1} parent=1 // pred_check
      _
    $region3: #{_lambda_.1} parent=1 // pred_check_branch
      %19 = sbr.rel (0) target = $region5
    $region4: #{_lambda_.1} parent=1 // pred_region
      _
    $region5: #{_lambda_.1} parent=1 // pred_fallthru
      _
    // Predicated region
    $region6: #{_lambda_.1} parent=1 // pred_check
      _
    $region7: #{_lambda_.1} parent=1 // pred_check_branch
      %21 = sbr.rel (0) target = $region9
    $region8: #{_lambda_.1} parent=1 // pred_region
      _
    $region9: #{_lambda_.1} parent=1 // pred_fallthru
      _
    // Predicated region
    $region10: #{_lambda_.1} parent=1 // pred_check
      _
    $region11: #{_lambda_.1} parent=1 // pred_check_branch
      %23 = sbr.rel (0) target = $region13
    $region12: #{_lambda_.1} parent=1 // pred_region
      _
    $region13: #{_lambda_.1} parent=1 // pred_fallthru
      _
    // Predicated region
    $region14: #{_lambda_.1} parent=1 // pred_check
      _
    $region15: #{_lambda_.1} parent=1 // pred_check_branch
      %25 = sbr.rel (0) target = $region17
    $region16: #{_lambda_.1} parent=1 // pred_region
      _
    $region17: #{_lambda_.1} parent=1 // pred_fallthru
      _
    // Predicated region
    $region18: #{_lambda_.1} parent=1 // pred_check
      _
    $region19: #{_lambda_.1} parent=1 // pred_check_branch
      %27 = sbr.rel (0) target = $region21
    $region20: #{_lambda_.1} parent=1 // pred_region
      _
    $region21: #{_lambda_.1} parent=1 // pred_fallthru
      _
    // Predicated region
    $region22: #{_lambda_.1} parent=1 // pred_check
      _
    $region23: #{_lambda_.1} parent=1 // pred_check_branch
      %29 = sbr.rel (0) target = $region25
    $region24: #{_lambda_.1} parent=1 // pred_region
      _
    $region25: #{_lambda_.1} parent=1 // pred_fallthru
      _
    // Predicated region
    $region26: #{_lambda_.1} parent=1 // pred_check
      _
    $region27: #{_lambda_.1} parent=1 // pred_check_branch
      %31 = sbr.rel (0) target = $region29
    $region28: #{_lambda_.1} parent=1 // pred_region
      _
    $region29: #{_lambda_.1} parent=1 // pred_fallthru
      _
    // Predicated region
    $region30: #{_lambda_.1} parent=1 // pred_check
      _
    $region31: #{_lambda_.1} parent=1 // pred_check_branch
      %33 = sbr.rel (0) target = $region33
    $region32: #{_lambda_.1} parent=1 // pred_region
      _
    $region33: #{_lambda_.1} parent=1 // pred_fallthru
      _
    // Predicated region
    $region34: #{_lambda_.1} parent=1 // pred_check
      _
    $region35: #{_lambda_.1} parent=1 // pred_check_branch
      %35 = sbr.rel (0) target = $region37
    $region36: #{_lambda_.1} parent=1 // pred_region
      _
    $region37: #{_lambda_.1} parent=1 // pred_fallthru
      _
    // Predicated region
    $region38: #{_lambda_.1} parent=1 // pred_check
      _
    $region39: #{_lambda_.1} parent=1 // pred_check_branch
      %37 = sbr.rel (0) target = $region41
    $region40: #{_lambda_.1} parent=1 // pred_region
      _
    $region41: #{_lambda_.1} parent=1 // pred_fallthru
      _
    // Predicated region
    $region42: #{_lambda_.1} parent=1 // pred_check
      _
    $region43: #{_lambda_.1} parent=1 // pred_check_branch
      %39 = sbr.rel (0) target = $region45
    $region44: #{_lambda_.1} parent=1 // pred_region
      _
    $region45: #{_lambda_.1} parent=1 // pred_fallthru
      _
    // Predicated region
    $region46: #{_lambda_.1} parent=1 // pred_check
      _
    $region47: #{_lambda_.1} parent=1 // pred_check_branch
      %41 = sbr.rel (0) target = $region49
    $region48: #{_lambda_.1} parent=1 // pred_region
      _
    $region49: #{_lambda_.1} parent=1 // pred_fallthru
      _
    %vm43 = vcmask 253952
    %44 = vst.msk [vmem:[#allocation2] sm:$0x1] %vm43, 0
    %45 = vst.msk [vmem:[#allocation2 + $0xc] sm:$0x1] %vm43, 0
    %vm46 = vcmask 254977
    %47 = vst.msk [vmem:[#allocation2 + $0x8] sm:$0x2] %vm46, 0
    %48 = vst.msk [vmem:[#allocation2 + $0x14] sm:$0x2] %vm46, 0
    %v49 = vld [vmem:[%s0] sm:$0xff]
    %v50 = vld [vmem:[%s0 + $0x8] sm:$0xff]
    %v51 = vld [vmem:[%s0 + $0x10] sm:$0xff]
    %v52 = vld [vmem:[%s0 + $0x18] sm:$0xff]
    %v53 = vpack.c.bf16 %v50, %v49
    %v54 = vpack.c.bf16 %v52, %v51
    %v57 = vunpack.c.l.b16 %v53
    %v58 = vunpack.c.h.b16 %v53
    %v59 = vunpack.c.l.b16 %v54
    %v60 = vunpack.c.h.b16 %v54
    %v61 = vpack.c.b16 %v57, %v57
    %v62 = vpack.c.b16 %v58, %v58
    %v63 = vpack.c.b16 %v59, %v59
    %v64 = vpack.c.b16 %v60, %v60
    %vm65 = vcmask 1040384
    %vm66 = vcmask 1044484
    %vm67 = vmor %vm65, %vm66
    %v68 = vrot.slane %v61, 7
    %v69 = vrot.slane %v68, 4
    %v70 = vrot.slane %v62, 7
    %v71 = vsel %vm67, %v69, %v70
    %v72 = vrot.slane %v70, 4
    %v73 = vrot.slane %v63, 7
    %v74 = vrot.slane %v73, 4
    %v75 = vrot.slane %v64, 7
    %v76 = vsel %vm67, %v74, %v75
    %v77 = vrot.slane %v75, 4
    %vm84 = vcmask 257025
    %85 = vst.msk [vmem:[#allocation2] sm:$0xe] %vm84, %v68
    %vm86 = vcmask 257024
    %87 = vst.msk [vmem:[#allocation2 + $0x4] sm:$0xf] %vm86, %v71
    %88 = vst.msk [vmem:[#allocation2 + $0x8] sm:$0x1] %vm43, %v72
    %89 = vst.msk [vmem:[#allocation2 + $0xc] sm:$0xe] %vm84, %v73
    %90 = vst.msk [vmem:[#allocation2 + $0x10] sm:$0xf] %vm86, %v76
    %91 = vst.msk [vmem:[#allocation2 + $0x14] sm:$0x1] %vm43, %v77
    %v92 = vld [vmem:[#allocation2] sm:$0xf]
    %v93 = vld [vmem:[#allocation2 + $0x4] sm:$0xf]
    %v94 = vld [vmem:[#allocation2 + $0xc] sm:$0xf]
    %v95 = vld [vmem:[#allocation2 + $0x10] sm:$0xf]
    %v96 = vld [vmem:[#allocation2 + $0x8] sm:$0x1]
    %v97 = vld [vmem:[#allocation2 + $0x14] sm:$0x1]
    %v98 = vld [vmem:[#allocation2] sm:$0xe]
    %v99 = vld [vmem:[#allocation2 + $0xc] sm:$0xe]
    %v100 = vld [vmem:[#allocation2 + $0x8] sm:$0x3]
    %v101 = vld [vmem:[#allocation2 + $0x14] sm:$0x3]
    %v102 = vld [vmem:[#allocation2] sm:$0xc]
    %v103 = vld [vmem:[#allocation2 + $0xc] sm:$0xc]
    %v108 = vunpack.c.l.b16 %v92
    %v109 = vunpack.c.l.b16 %v93
    %v110 = vunpack.c.l.b16 %v94
    %v111 = vunpack.c.l.b16 %v95
    %v112 = vpack.c.b16 %v109, %v108
    %v113 = vpack.c.b16 %v111, %v110
    %v116 = vunpack.c.l.b16 %v96
    %v117 = vunpack.c.l.b16 %v97
    %v118 = vpack.c.b16 %v116, %v116
    %v119 = vpack.c.b16 %v117, %v117
    %vm120 = vsmask.f32 7424
    %v122 = vshrl.u32 %v112, 16
    %v124 = vshll.u32 %v112, 16
    %v126 = vrot.slane %v124, 1
    %v127 = vor.u32 %v122, %v126
    %v129 = vshll.u32 %v118, 16
    %v131 = vrot.slane %v129, 1
    %v132 = vsel %vm120, %v127, %v131
    %v134 = vshrl.u32 %v113, 16
    %v136 = vshll.u32 %v113, 16
    %v138 = vrot.slane %v136, 1
    %v139 = vor.u32 %v134, %v138
    %v141 = vshll.u32 %v119, 16
    %v143 = vrot.slane %v141, 1
    %v144 = vsel %vm120, %v139, %v143
    %145 = vrot.lane.b32.xlu0 %v132, 32
    %v146 = vpop.permute.xlu0 %145
    %147 = vrot.lane.b32.xlu0 %v144, 32
    %v148 = vpop.permute.xlu0 %147
    %v151 = vunpack.c.l.b16 %v98
    %v152 = vunpack.c.l.b16 %v99
    %v153 = vpack.c.b16 %v109, %v151
    %v154 = vpack.c.b16 %v111, %v152
    %vm155 = vcmask 1046528
    %v156 = vrot.slane %v153, 1
    %v157 = vrot.slane %v118, 1
    %v158 = vsel %vm155, %v156, %v157
    %v159 = vrot.slane %v154, 1
    %v160 = vrot.slane %v119, 1
    %v161 = vsel %vm155, %v159, %v160
    %162 = vrot.lane.b32.xlu0 %v158, 64
    %v163 = vpop.permute.xlu0 %162
    %164 = vrot.lane.b32.xlu0 %v161, 64
    %v165 = vpop.permute.xlu0 %164
    %v168 = vunpack.c.l.b16 %v100
    %v169 = vunpack.c.l.b16 %v101
    %v170 = vpack.c.b16 %v168, %v168
    %v171 = vpack.c.b16 %v169, %v169
    %vm172 = vsmask.f32 6400
    %v174 = vshrl.u32 %v153, 16
    %v176 = vrot.slane %v174, 1
    %v177 = vshll.u32 %v153, 16
    %v179 = vrot.slane %v177, 2
    %v180 = vor.u32 %v176, %v179
    %v182 = vshrl.u32 %v170, 16
    %v184 = vrot.slane %v182, 1
    %v185 = vshll.u32 %v170, 16
    %v187 = vrot.slane %v185, 2
    %v188 = vor.u32 %v184, %v187
    %v189 = vsel %vm172, %v180, %v188
    %v191 = vshrl.u32 %v154, 16
    %v193 = vrot.slane %v191, 1
    %v194 = vshll.u32 %v154, 16
    %v196 = vrot.slane %v194, 2
    %v197 = vor.u32 %v193, %v196
    %v199 = vshrl.u32 %v171, 16
    %v201 = vrot.slane %v199, 1
    %v202 = vshll.u32 %v171, 16
    %v204 = vrot.slane %v202, 2
    %v205 = vor.u32 %v201, %v204
    %v206 = vsel %vm172, %v197, %v205
    %207 = vrot.lane.b32.xlu0 %v189, 96
    %v208 = vpop.permute.xlu0 %207
    %209 = vrot.lane.b32.xlu0 %v206, 96
    %v210 = vpop.permute.xlu0 %209
    %v213 = vunpack.c.l.b16 %v102
    %v214 = vunpack.c.l.b16 %v103
    %v215 = vpack.c.b16 %v109, %v213
    %v216 = vpack.c.b16 %v111, %v214
    %vm217 = vcmask 1045504
    %v218 = vrot.slane %v215, 2
    %v219 = vrot.slane %v170, 2
    %v220 = vsel %vm217, %v218, %v219
    %v221 = vrot.slane %v216, 2
    %v222 = vrot.slane %v171, 2
    %v223 = vsel %vm217, %v221, %v222
    %vm224 = vcmask 261120
    %v226 = vsel %vm224, %v112, %v146
    %v228 = vsel %vm224, %v113, %v148
    %vm229 = vcmask 523264
    %v231 = vsel %vm229, %v226, %v163
    %v233 = vsel %vm229, %v228, %v165
    %vm234 = vcmask 785408
    %v236 = vsel %vm234, %v231, %v208
    %v239 = vsel %vm234, %v233, %v210
    %v241 = vld [vmem:[%s1] sm:$0xf]
    %v242 = vld [vmem:[%s1 + $0x4] sm:$0xf]
    %v243 = vld [vmem:[%s1 + $0x8] sm:$0xf]
    %v244 = vld [vmem:[%s1 + $0xc] sm:$0xf]
    %v245 = vld [vmem:[%s1 + $0x10] sm:$0xf]
    %v246 = vld [vmem:[%s1 + $0x14] sm:$0xf]
    %v247 = vld [vmem:[%s1 + $0x18] sm:$0xf]
    %v248 = vld [vmem:[%s1 + $0x1c] sm:$0xf]
    %v249 = vld [vmem:[%s1 + $0x20] sm:$0xf]
    %v250 = vld [vmem:[%s1 + $0x24] sm:$0xf]
    %v251 = vld [vmem:[%s1 + $0x28] sm:$0xf]
    %v252 = vld [vmem:[%s1 + $0x2c] sm:$0xf]
    %v253 = vld [vmem:[%s1 + $0x30] sm:$0xf]
    %v254 = vld [vmem:[%s1 + $0x34] sm:$0xf]
    %v255 = vld [vmem:[%s1 + $0x38] sm:$0xf]
    %v256 = vld [vmem:[%s1 + $0x3c] sm:$0xf]
    %v257 = vld [vmem:[%s1 + $0x40] sm:$0xf]
    %v258 = vld [vmem:[%s1 + $0x44] sm:$0xf]
    %v259 = vld [vmem:[%s1 + $0x48] sm:$0xf]
    %v260 = vld [vmem:[%s1 + $0x4c] sm:$0xf]
    %v261 = vld [vmem:[%s2] sm:$0x1]
    %v263 = vlaneseq
    %v264 = vshrl.u32 %v263, 7
    %v265 = vsub.s32 0, %v264
    %v266 = vrot.slane %v261, %v265
    %v288 = vunpack.c.l.b16 %v241
    %v289 = vunpack.c.l.b16 %v242
    %v290 = vunpack.c.l.b16 %v243
    %v291 = vunpack.c.l.b16 %v244
    %v292 = vunpack.c.l.b16 %v245
    %v293 = vunpack.c.l.b16 %v246
    %v294 = vunpack.c.l.b16 %v247
    %v295 = vunpack.c.l.b16 %v248
    %v296 = vunpack.c.l.b16 %v249
    %v297 = vunpack.c.l.b16 %v250
    %v298 = vunpack.c.l.b16 %v251
    %v299 = vunpack.c.l.b16 %v252
    %v300 = vunpack.c.l.b16 %v253
    %v301 = vunpack.c.l.b16 %v254
    %v302 = vunpack.c.l.b16 %v255
    %v303 = vunpack.c.l.b16 %v256
    %v304 = vunpack.c.l.b16 %v257
    %v305 = vunpack.c.l.b16 %v258
    %v306 = vunpack.c.l.b16 %v259
    %v307 = vunpack.c.l.b16 %v260
    %v308 = vpack.c.b16 %v289, %v288
    %v309 = vpack.c.b16 %v291, %v290
    %v310 = vpack.c.b16 %v293, %v292
    %v311 = vpack.c.b16 %v295, %v294
    %v312 = vpack.c.b16 %v297, %v296
    %v313 = vpack.c.b16 %v299, %v298
    %v314 = vpack.c.b16 %v301, %v300
    %v315 = vpack.c.b16 %v303, %v302
    %v316 = vpack.c.b16 %v305, %v304
    %v317 = vpack.c.b16 %v307, %v306
    %v329 = vsel %vm224, %v220, 0
    %v332 = vsel %vm224, %v223, 0
    %334 = vmatprep.subr.bf16.mxu0 0
    %335 = vmatpush1.bf16.msra.mxu0 %v308
    %336 = vmatprep.subr.bf16.mxu0 0
    %337 = vmatpush1.bf16.msra.mxu0 %v309
    %338 = vmatprep.subr.bf16.mxu0 0
    %339 = vmatpush1.bf16.msra.mxu0 %v310
    %340 = vmatprep.subr.bf16.mxu0 0
    %341 = vmatpush1.bf16.msra.mxu0 %v311
    %342 = vmatprep.subr.bf16.mxu0 0
    %343 = vmatpush1.bf16.msra.mxu0 %v312
    %344 = vmatprep.subr.bf16.mxu0 0
    %345 = vmatpush1.bf16.msra.mxu0 %v313
    %346 = vmatprep.subr.bf16.mxu0 0
    %347 = vmatpush1.bf16.msra.mxu0 %v314
    %348 = vmatprep.subr.bf16.mxu0 0
    %349 = vmatpush1.bf16.msra.mxu0 %v315
    %350 = vmatprep.subr.bf16.mxu0 0
    %351 = vmatpush1.bf16.msra.mxu0 %v316
    %352 = vmatprep.subr.bf16.mxu0 0
    %353 = vmatpush1.bf16.msra.mxu0 %v317
    %354 = vmatprep.subr.bf16.mxu0 0
    %355 = vmatpush1.bf16.msra.mxu0 0
    %356 = vmatprep.subr.bf16.mxu0 0
    %357 = vmatpush1.bf16.msra.mxu0 0
    %358 = vmatprep.subr.bf16.mxu0 0
    %359 = vmatpush1.bf16.msra.mxu0 0
    %360 = vmatprep.subr.bf16.mxu0 0
    %361 = vmatpush1.bf16.msra.mxu0 0
    %362 = vmatprep.subr.bf16.mxu0 0
    %363 = vmatpush1.bf16.msra.mxu0 0
    %364 = vmatprep.subr.bf16.mxu0 0
    %365 = vmatpush1.bf16.msra.mxu0 0
    %366 = vmatprep.mubr.bf16.mxu0 %v329
    %367 = vmatmul.mubr.bf16.gmra.mrb[0].mxu0 %v236
    %v368 = vpop.f32.mrb[0].mxu0
    %v369 = vadd.f32 %v266, %v368
    %v370 = vpop.f32.mrb[0].mxu0
    %v371 = vpop.f32.mrb[0].mxu0
    %v372 = vadd.f32 %v266, %v371
    %v373 = vpop.f32.mrb[0].mxu0
    %374 = vmatprep.mubr.bf16.mxu0 %v332
    %375 = vmatmul.mubr.bf16.gmra.mrb[0].mxu0 %v239
    %v376 = vpop.f32.mrb[0].mxu0
    %v377 = vadd.f32 %v266, %v376
    %v378 = vpop.f32.mrb[0].mxu0
    %v379 = vpop.f32.mrb[0].mxu0
    %v380 = vadd.f32 %v266, %v379
    %v381 = vpop.f32.mrb[0].mxu0
    %382 = vdwg.mxu0
    %v383 = vmax.f32 %v369, 0.0
    %v384 = vmax.f32 %v372, 0.0
    %v385 = vmax.f32 %v377, 0.0
    %v386 = vmax.f32 %v380, 0.0
    %v391 = vcombine.high %v383, %v383
    %v393 = vunpack.c.l.s4 1983009808
    %v394 = vunpack.c.0.s8 %v393
    %v395 = vlaneseq
    %v396 = vshrl.u32 %v395, 7
    %v397 = vsub.s32 %v394, %v396
    %v398 = vrot.slane %v383, %v397
    %v400 = vunpack.c.l.s4 1983009808
    %v401 = vunpack.c.0.s8 %v400
    %v402 = vlaneseq
    %v403 = vshrl.u32 %v402, 7
    %v404 = vsub.s32 %v401, %v403
    %v405 = vrot.slane %v391, %v404
    %v406 = vcombine.high %v398, %v398
    %v407 = vcombine.high %v405, %v405
    %v408 = vcombine.high %v384, %v384
    %v410 = vunpack.c.l.s4 1983009808
    %v411 = vunpack.c.0.s8 %v410
    %v412 = vlaneseq
    %v413 = vshrl.u32 %v412, 7
    %v414 = vsub.s32 %v411, %v413
    %v415 = vrot.slane %v384, %v414
    %v417 = vunpack.c.l.s4 1983009808
    %v418 = vunpack.c.0.s8 %v417
    %v419 = vlaneseq
    %v420 = vshrl.u32 %v419, 7
    %v421 = vsub.s32 %v418, %v420
    %v422 = vrot.slane %v408, %v421
    %v423 = vcombine.high %v415, %v415
    %v424 = vcombine.high %v422, %v422
    %v425 = vcombine.high %v385, %v385
    %v427 = vunpack.c.l.s4 1983009808
    %v428 = vunpack.c.0.s8 %v427
    %v429 = vlaneseq
    %v430 = vshrl.u32 %v429, 7
    %v431 = vsub.s32 %v428, %v430
    %v432 = vrot.slane %v385, %v431
    %v434 = vunpack.c.l.s4 1983009808
    %v435 = vunpack.c.0.s8 %v434
    %v436 = vlaneseq
    %v437 = vshrl.u32 %v436, 7
    %v438 = vsub.s32 %v435, %v437
    %v439 = vrot.slane %v425, %v438
    %v440 = vcombine.high %v432, %v432
    %v441 = vcombine.high %v439, %v439
    %v442 = vcombine.high %v386, %v386
    %v444 = vunpack.c.l.s4 1983009808
    %v445 = vunpack.c.0.s8 %v444
    %v446 = vlaneseq
    %v447 = vshrl.u32 %v446, 7
    %v448 = vsub.s32 %v445, %v447
    %v449 = vrot.slane %v386, %v448
    %v451 = vunpack.c.l.s4 1983009808
    %v452 = vunpack.c.0.s8 %v451
    %v453 = vlaneseq
    %v454 = vshrl.u32 %v453, 7
    %v455 = vsub.s32 %v452, %v454
    %v456 = vrot.slane %v442, %v455
    %v457 = vcombine.high %v449, %v449
    %v458 = vcombine.high %v456, %v456
    %vm475 = vcmask 1041408
    %v476 = vsel %vm475, %v398, -inf
    %v477 = vrot.slane %v476, 4
    %v478 = vmax.f32 %v476, %v477
    %v479 = vrot.slane %v478, 2
    %v480 = vmax.f32 %v478, %v479
    %v481 = vrot.slane %v480, 1
    %v482 = vmax.f32 %v480, %v481
    %v483 = vsel %vm475, %v406, -inf
    %v484 = vrot.slane %v483, 4
    %v485 = vmax.f32 %v483, %v484
    %v486 = vrot.slane %v485, 2
    %v487 = vmax.f32 %v485, %v486
    %v488 = vrot.slane %v487, 1
    %v489 = vmax.f32 %v487, %v488
    %v490 = vsel %vm475, %v405, -inf
    %v491 = vrot.slane %v490, 4
    %v492 = vmax.f32 %v490, %v491
    %v493 = vrot.slane %v492, 2
    %v494 = vmax.f32 %v492, %v493
    %v495 = vrot.slane %v494, 1
    %v496 = vmax.f32 %v494, %v495
    %v497 = vsel %vm475, %v407, -inf
    %v498 = vrot.slane %v497, 4
    %v499 = vmax.f32 %v497, %v498
    %v500 = vrot.slane %v499, 2
    %v501 = vmax.f32 %v499, %v500
    %v502 = vrot.slane %v501, 1
    %v503 = vmax.f32 %v501, %v502
    %v504 = vsel %vm475, %v415, -inf
    %v505 = vrot.slane %v504, 4
    %v506 = vmax.f32 %v504, %v505
    %v507 = vrot.slane %v506, 2
    %v508 = vmax.f32 %v506, %v507
    %v509 = vrot.slane %v508, 1
    %v510 = vmax.f32 %v508, %v509
    %v511 = vsel %vm475, %v423, -inf
    %v512 = vrot.slane %v511, 4
    %v513 = vmax.f32 %v511, %v512
    %v514 = vrot.slane %v513, 2
    %v515 = vmax.f32 %v513, %v514
    %v516 = vrot.slane %v515, 1
    %v517 = vmax.f32 %v515, %v516
    %v518 = vsel %vm475, %v422, -inf
    %v519 = vrot.slane %v518, 4
    %v520 = vmax.f32 %v518, %v519
    %v521 = vrot.slane %v520, 2
    %v522 = vmax.f32 %v520, %v521
    %v523 = vrot.slane %v522, 1
    %v524 = vmax.f32 %v522, %v523
    %v525 = vsel %vm475, %v424, -inf
    %v526 = vrot.slane %v525, 4
    %v527 = vmax.f32 %v525, %v526
    %v528 = vrot.slane %v527, 2
    %v529 = vmax.f32 %v527, %v528
    %v530 = vrot.slane %v529, 1
    %v531 = vmax.f32 %v529, %v530
    %v532 = vsel %vm475, %v432, -inf
    %v533 = vrot.slane %v532, 4
    %v534 = vmax.f32 %v532, %v533
    %v535 = vrot.slane %v534, 2
    %v536 = vmax.f32 %v534, %v535
    %v537 = vrot.slane %v536, 1
    %v538 = vmax.f32 %v536, %v537
    %v539 = vsel %vm475, %v440, -inf
    %v540 = vrot.slane %v539, 4
    %v541 = vmax.f32 %v539, %v540
    %v542 = vrot.slane %v541, 2
    %v543 = vmax.f32 %v541, %v542
    %v544 = vrot.slane %v543, 1
    %v545 = vmax.f32 %v543, %v544
    %v546 = vsel %vm475, %v439, -inf
    %v547 = vrot.slane %v546, 4
    %v548 = vmax.f32 %v546, %v547
    %v549 = vrot.slane %v548, 2
    %v550 = vmax.f32 %v548, %v549
    %v551 = vrot.slane %v550, 1
    %v552 = vmax.f32 %v550, %v551
    %v553 = vsel %vm475, %v441, -inf
    %v554 = vrot.slane %v553, 4
    %v555 = vmax.f32 %v553, %v554
    %v556 = vrot.slane %v555, 2
    %v557 = vmax.f32 %v555, %v556
    %v558 = vrot.slane %v557, 1
    %v559 = vmax.f32 %v557, %v558
    %v560 = vsel %vm475, %v449, -inf
    %v561 = vrot.slane %v560, 4
    %v562 = vmax.f32 %v560, %v561
    %v563 = vrot.slane %v562, 2
    %v564 = vmax.f32 %v562, %v563
    %v565 = vrot.slane %v564, 1
    %v566 = vmax.f32 %v564, %v565
    %v567 = vsel %vm475, %v457, -inf
    %v568 = vrot.slane %v567, 4
    %v569 = vmax.f32 %v567, %v568
    %v570 = vrot.slane %v569, 2
    %v571 = vmax.f32 %v569, %v570
    %v572 = vrot.slane %v571, 1
    %v573 = vmax.f32 %v571, %v572
    %v574 = vsel %vm475, %v456, -inf
    %v575 = vrot.slane %v574, 4
    %v576 = vmax.f32 %v574, %v575
    %v577 = vrot.slane %v576, 2
    %v578 = vmax.f32 %v576, %v577
    %v579 = vrot.slane %v578, 1
    %v580 = vmax.f32 %v578, %v579
    %v581 = vsel %vm475, %v458, -inf
    %v582 = vrot.slane %v581, 4
    %v583 = vmax.f32 %v581, %v582
    %v584 = vrot.slane %v583, 2
    %v585 = vmax.f32 %v583, %v584
    %v586 = vrot.slane %v585, 1
    %v587 = vmax.f32 %v585, %v586
    %588 = vst [vmem:[#allocation3] sm:$0x1] 0
    %589 = vst [vmem:[#allocation3 + $0x8] sm:$0x1] 0
    %590 = vst [vmem:[#allocation3 + $0x4] sm:$0x2] 0
    %591 = vst [vmem:[#allocation3 + $0xc] sm:$0x2] 0
    %v592 = vpack.c.bf16 %v482, %v482
    %v593 = vpack.c.bf16 %v489, %v489
    %v594 = vpack.c.bf16 %v496, %v496
    %v595 = vpack.c.bf16 %v503, %v503
    %v596 = vpack.c.bf16 %v510, %v510
    %v597 = vpack.c.bf16 %v517, %v517
    %v598 = vpack.c.bf16 %v524, %v524
    %v599 = vpack.c.bf16 %v531, %v531
    %v600 = vpack.c.bf16 %v538, %v538
    %v601 = vpack.c.bf16 %v545, %v545
    %v602 = vpack.c.bf16 %v552, %v552
    %v603 = vpack.c.bf16 %v559, %v559
    %v604 = vpack.c.bf16 %v566, %v566
    %v605 = vpack.c.bf16 %v573, %v573
    %v606 = vpack.c.bf16 %v580, %v580
    %v607 = vpack.c.bf16 %v587, %v587
    %v624 = vunpack.c.l.b16 %v592
    %v625 = vunpack.c.l.b16 %v593
    %v626 = vunpack.c.l.b16 %v594
    %v627 = vunpack.c.l.b16 %v595
    %v628 = vunpack.c.l.b16 %v596
    %v629 = vunpack.c.l.b16 %v597
    %v630 = vunpack.c.l.b16 %v598
    %v631 = vunpack.c.l.b16 %v599
    %v632 = vunpack.c.l.b16 %v600
    %v633 = vunpack.c.l.b16 %v601
    %v634 = vunpack.c.l.b16 %v602
    %v635 = vunpack.c.l.b16 %v603
    %v636 = vunpack.c.l.b16 %v604
    %v637 = vunpack.c.l.b16 %v605
    %v638 = vunpack.c.l.b16 %v606
    %v639 = vunpack.c.l.b16 %v607
    %v640 = vpack.c.b16 %v624, %v624
    %v641 = vpack.c.b16 %v625, %v625
    %v642 = vpack.c.b16 %v626, %v626
    %v643 = vpack.c.b16 %v627, %v627
    %v644 = vpack.c.b16 %v628, %v628
    %v645 = vpack.c.b16 %v629, %v629
    %v646 = vpack.c.b16 %v630, %v630
    %v647 = vpack.c.b16 %v631, %v631
    %v648 = vpack.c.b16 %v632, %v632
    %v649 = vpack.c.b16 %v633, %v633
    %v650 = vpack.c.b16 %v634, %v634
    %v651 = vpack.c.b16 %v635, %v635
    %v652 = vpack.c.b16 %v636, %v636
    %v653 = vpack.c.b16 %v637, %v637
    %v654 = vpack.c.b16 %v638, %v638
    %v655 = vpack.c.b16 %v639, %v639
    %v656 = vunpack.c.l.b16 %v640
    %v657 = vunpack.c.l.b16 %v641
    %v658 = vunpack.c.l.b16 %v642
    %v659 = vunpack.c.l.b16 %v643
    %v660 = vunpack.c.l.b16 %v644
    %v661 = vunpack.c.l.b16 %v645
    %v662 = vunpack.c.l.b16 %v646
    %v663 = vunpack.c.l.b16 %v647
    %v664 = vunpack.c.l.b16 %v648
    %v665 = vunpack.c.l.b16 %v649
    %v666 = vunpack.c.l.b16 %v650
    %v667 = vunpack.c.l.b16 %v651
    %v668 = vunpack.c.l.b16 %v652
    %v669 = vunpack.c.l.b16 %v653
    %v670 = vunpack.c.l.b16 %v654
    %v671 = vunpack.c.l.b16 %v655
    %vm672 = vcmask 1043459
    %v673 = vsel %vm672, %v657, %v656
    %vm674 = vcmask 1044484
    %v675 = vsel %vm674, %v658, %v673
    %vm676 = vcmask 1045509
    %v677 = vsel %vm676, %v659, %v675
    %vm678 = vcmask 1046534
    %v679 = vsel %vm678, %v660, %v677
    %vm680 = vcmask 1047559
    %v681 = vsel %vm680, %v661, %v679
    %vm682 = vcmask 1041409
    %v683 = vsel %vm682, %v663, %v662
    %v684 = vsel %vm672, %v665, %v664
    %v685 = vsel %vm674, %v666, %v684
    %v686 = vsel %vm676, %v667, %v685
    %v687 = vsel %vm678, %v668, %v686
    %v688 = vsel %vm680, %v669, %v687
    %v689 = vsel %vm682, %v671, %v670
    %v690 = vpack.c.b16 %v681, %v681
    %v691 = vpack.c.b16 %v683, %v683
    %v692 = vpack.c.b16 %v688, %v688
    %v693 = vpack.c.b16 %v689, %v689
    %698 = vst [vmem:[#allocation3] sm:$0xe] %v690
    %699 = vst [vmem:[#allocation3 + $0x4] sm:$0x1] %v691
    %700 = vst [vmem:[#allocation3 + $0x8] sm:$0xe] %v692
    %701 = vst [vmem:[#allocation3 + $0xc] sm:$0x1] %v693
    %v702 = vld [vmem:[#allocation3] sm:$0xf]
    %v703 = vld [vmem:[#allocation3 + $0x8] sm:$0xf]
    %v704 = vld [vmem:[#allocation3 + $0x4] sm:$0x1]
    %v705 = vld [vmem:[#allocation3 + $0xc] sm:$0x1]
    %v706 = vld [vmem:[#allocation3] sm:$0xe]
    %v707 = vld [vmem:[#allocation3 + $0x8] sm:$0xe]
    %v708 = vld [vmem:[#allocation3 + $0x4] sm:$0x3]
    %v709 = vld [vmem:[#allocation3 + $0xc] sm:$0x3]
    %v710 = vld [vmem:[#allocation3] sm:$0xc]
    %v711 = vld [vmem:[#allocation3 + $0x8] sm:$0xc]
    %v716 = vunpack.c.l.b16 %v702
    %v717 = vunpack.c.l.b16 %v704
    %v718 = vunpack.c.l.b16 %v703
    %v719 = vunpack.c.l.b16 %v705
    %v720 = vpack.c.b16 %v717, %v716
    %v721 = vpack.c.b16 %v719, %v718
    %v723 = vshrl.u32 %v720, 16
    %v725 = vshll.u32 %v720, 16
    %v727 = vrot.slane %v725, 1
    %v728 = vor.u32 %v723, %v727
    %v730 = vshrl.u32 %v721, 16
    %v732 = vshll.u32 %v721, 16
    %v734 = vrot.slane %v732, 1
    %v735 = vor.u32 %v730, %v734
    %v738 = vunpack.c.l.b16 %v706
    %v739 = vunpack.c.l.b16 %v707
    %v740 = vpack.c.b16 %v717, %v738
    %v741 = vpack.c.b16 %v719, %v739
    %v742 = vrot.slane %v740, 1
    %v743 = vrot.slane %v741, 1
    %v746 = vunpack.c.l.b16 %v708
    %v747 = vunpack.c.l.b16 %v709
    %v748 = vpack.c.b16 %v746, %v738
    %v749 = vpack.c.b16 %v747, %v739
    %v751 = vshrl.u32 %v748, 16
    %v753 = vrot.slane %v751, 1
    %v754 = vshll.u32 %v748, 16
    %v756 = vrot.slane %v754, 2
    %v757 = vor.u32 %v753, %v756
    %v759 = vshrl.u32 %v749, 16
    %v761 = vrot.slane %v759, 1
    %v762 = vshll.u32 %v749, 16
    %v764 = vrot.slane %v762, 2
    %v765 = vor.u32 %v761, %v764
    %v768 = vunpack.c.l.b16 %v710
    %v769 = vunpack.c.l.b16 %v711
    %v770 = vpack.c.b16 %v746, %v768
    %v771 = vpack.c.b16 %v747, %v769
    %v772 = vrot.slane %v770, 2
    %v773 = vrot.slane %v771, 2
    %v774 = vunpack.c.l.b16 %v728
    %v775 = vunpack.c.l.b16 %v742
    %v776 = vunpack.c.l.b16 %v757
    %v777 = vunpack.c.l.b16 %v772
    %v778 = vunpack.c.l.b16 %v735
    %v779 = vunpack.c.l.b16 %v743
    %v780 = vunpack.c.l.b16 %v765
    %v781 = vunpack.c.l.b16 %v773
    %v782 = vld [vmem:[%s3] sm:$0xf]
    %v783 = vld [vmem:[%s3 + $0x4] sm:$0xf]
    %v784 = vld [vmem:[%s3 + $0x8] sm:$0xf]
    %v785 = vld [vmem:[%s3 + $0xc] sm:$0xf]
    %v786 = vld [vmem:[%s3 + $0x10] sm:$0xf]
    %v787 = vld [vmem:[%s3 + $0x14] sm:$0xf]
    %v788 = vld [vmem:[%s3 + $0x18] sm:$0xf]
    %v789 = vld [vmem:[%s3 + $0x1c] sm:$0xf]
    %v790 = vld [vmem:[%s3 + $0x20] sm:$0xf]
    %v791 = vld [vmem:[%s3 + $0x24] sm:$0xf]
    %v792 = vld [vmem:[%s3 + $0x28] sm:$0xf]
    %v793 = vld [vmem:[%s3 + $0x2c] sm:$0xf]
    %v794 = vld [vmem:[%s3 + $0x30] sm:$0xf]
    %v795 = vld [vmem:[%s3 + $0x34] sm:$0xf]
    %v796 = vld [vmem:[%s3 + $0x38] sm:$0xf]
    %v797 = vld [vmem:[%s3 + $0x3c] sm:$0xf]
    %v798 = vld [vmem:[%s3 + $0x40] sm:$0xf]
    %v799 = vld [vmem:[%s3 + $0x44] sm:$0xf]
    %v800 = vld [vmem:[%s3 + $0x48] sm:$0xf]
    %v801 = vld [vmem:[%s3 + $0x4c] sm:$0xf]
    %v802 = vld [vmem:[%s3 + $0x50] sm:$0xf]
    %v803 = vld [vmem:[%s3 + $0x54] sm:$0xf]
    %v804 = vld [vmem:[%s3 + $0x58] sm:$0xf]
    %v805 = vld [vmem:[%s3 + $0x5c] sm:$0xf]
    %v806 = vld [vmem:[%s3 + $0x60] sm:$0xf]
    %v807 = vld [vmem:[%s3 + $0x64] sm:$0xf]
    %v808 = vld [vmem:[%s3 + $0x68] sm:$0xf]
    %v809 = vld [vmem:[%s3 + $0x6c] sm:$0xf]
    %v810 = vld [vmem:[%s3 + $0x70] sm:$0xf]
    %v811 = vld [vmem:[%s3 + $0x74] sm:$0xf]
    %v812 = vld [vmem:[%s3 + $0x78] sm:$0xf]
    %v813 = vld [vmem:[%s3 + $0x7c] sm:$0xf]
    %v814 = vld [vmem:[%s3 + $0x80] sm:$0xf]
    %v815 = vld [vmem:[%s3 + $0x84] sm:$0xf]
    %v816 = vld [vmem:[%s3 + $0x88] sm:$0xf]
    %v817 = vld [vmem:[%s3 + $0x8c] sm:$0xf]
    %v818 = vld [vmem:[%s3 + $0x90] sm:$0xf]
    %v819 = vld [vmem:[%s3 + $0x94] sm:$0xf]
    %v820 = vld [vmem:[%s3 + $0x98] sm:$0xf]
    %v821 = vld [vmem:[%s3 + $0x9c] sm:$0xf]
    %v822 = vld [vmem:[%s3 + $0xa0] sm:$0xf]
    %v823 = vld [vmem:[%s3 + $0xa4] sm:$0xf]
    %v824 = vld [vmem:[%s3 + $0xa8] sm:$0xf]
    %v825 = vld [vmem:[%s3 + $0xac] sm:$0xf]
    %v826 = vld [vmem:[%s3 + $0xb0] sm:$0xf]
    %v827 = vld [vmem:[%s3 + $0xb4] sm:$0xf]
    %v828 = vld [vmem:[%s3 + $0xb8] sm:$0xf]
    %v829 = vld [vmem:[%s3 + $0xbc] sm:$0xf]
    %v830 = vld [vmem:[%s3 + $0xc0] sm:$0xf]
    %v831 = vld [vmem:[%s3 + $0xc4] sm:$0xf]
    %v832 = vld [vmem:[%s3 + $0xc8] sm:$0xf]
    %v833 = vld [vmem:[%s3 + $0xcc] sm:$0xf]
    %v834 = vld [vmem:[%s3 + $0xd0] sm:$0xf]
    %v835 = vld [vmem:[%s3 + $0xd4] sm:$0xf]
    %v836 = vld [vmem:[%s3 + $0xd8] sm:$0xf]
    %v837 = vld [vmem:[%s3 + $0xdc] sm:$0xf]
    %v838 = vld [vmem:[%s3 + $0xe0] sm:$0xf]
    %v839 = vld [vmem:[%s3 + $0xe4] sm:$0xf]
    %v840 = vld [vmem:[%s3 + $0xe8] sm:$0xf]
    %v841 = vld [vmem:[%s3 + $0xec] sm:$0xf]
    %v842 = vld [vmem:[%s3 + $0xf0] sm:$0xf]
    %v843 = vld [vmem:[%s3 + $0xf4] sm:$0xf]
    %v844 = vld [vmem:[%s3 + $0xf8] sm:$0xf]
    %v845 = vld [vmem:[%s3 + $0xfc] sm:$0xf]
    %v846 = vld [vmem:[%s3 + $0x100] sm:$0xf]
    %v847 = vld [vmem:[%s3 + $0x104] sm:$0xf]
    %v848 = vld [vmem:[%s3 + $0x108] sm:$0xf]
    %v849 = vld [vmem:[%s3 + $0x10c] sm:$0xf]
    %v850 = vld [vmem:[%s3 + $0x110] sm:$0xf]
    %v851 = vld [vmem:[%s3 + $0x114] sm:$0xf]
    %v852 = vld [vmem:[%s3 + $0x118] sm:$0xf]
    %v853 = vld [vmem:[%s3 + $0x11c] sm:$0xf]
    %v854 = vld [vmem:[%s3 + $0x120] sm:$0xf]
    %v855 = vld [vmem:[%s3 + $0x124] sm:$0xf]
    %v856 = vld [vmem:[%s3 + $0x128] sm:$0xf]
    %v857 = vld [vmem:[%s3 + $0x12c] sm:$0xf]
    %v858 = vld [vmem:[%s3 + $0x130] sm:$0xf]
    %v859 = vld [vmem:[%s3 + $0x134] sm:$0xf]
    %v860 = vld [vmem:[%s3 + $0x138] sm:$0xf]
    %v861 = vld [vmem:[%s3 + $0x13c] sm:$0xf]
    %v862 = vld [vmem:[%s4] sm:$0x1]
    %v864 = vlaneseq
    %v865 = vshrl.u32 %v864, 7
    %v866 = vsub.s32 0, %v865
    %v867 = vrot.slane %v862, %v866
    %v869 = vpack.c.b16 %v718, %v716
    %v870 = vpack.c.b16 %v778, %v774
    %v871 = vpack.c.b16 %v779, %v775
    %v872 = vpack.c.b16 %v780, %v776
    %v873 = vpack.c.b16 %v781, %v777
    %v959 = vunpack.c.l.b16 %v782
    %v960 = vunpack.c.l.b16 %v783
    %v961 = vunpack.c.l.b16 %v784
    %v962 = vunpack.c.l.b16 %v785
    %v963 = vunpack.c.l.b16 %v786
    %v964 = vunpack.c.l.b16 %v787
    %v965 = vunpack.c.l.b16 %v788
    %v966 = vunpack.c.l.b16 %v789
    %v967 = vunpack.c.l.b16 %v790
    %v968 = vunpack.c.l.b16 %v791
    %v969 = vunpack.c.l.b16 %v792
    %v970 = vunpack.c.l.b16 %v793
    %v971 = vunpack.c.l.b16 %v794
    %v972 = vunpack.c.l.b16 %v795
    %v973 = vunpack.c.l.b16 %v796
    %v974 = vunpack.c.l.b16 %v797
    %v975 = vunpack.c.l.b16 %v798
    %v976 = vunpack.c.l.b16 %v799
    %v977 = vunpack.c.l.b16 %v800
    %v978 = vunpack.c.l.b16 %v801
    %v979 = vunpack.c.l.b16 %v802
    %v980 = vunpack.c.l.b16 %v803
    %v981 = vunpack.c.l.b16 %v804
    %v982 = vunpack.c.l.b16 %v805
    %v983 = vunpack.c.l.b16 %v806
    %v984 = vunpack.c.l.b16 %v807
    %v985 = vunpack.c.l.b16 %v808
    %v986 = vunpack.c.l.b16 %v809
    %v987 = vunpack.c.l.b16 %v810
    %v988 = vunpack.c.l.b16 %v811
    %v989 = vunpack.c.l.b16 %v812
    %v990 = vunpack.c.l.b16 %v813
    %v991 = vunpack.c.l.b16 %v814
    %v992 = vunpack.c.l.b16 %v815
    %v993 = vunpack.c.l.b16 %v816
    %v994 = vunpack.c.l.b16 %v817
    %v995 = vunpack.c.l.b16 %v818
    %v996 = vunpack.c.l.b16 %v819
    %v997 = vunpack.c.l.b16 %v820
    %v998 = vunpack.c.l.b16 %v821
    %v999 = vunpack.c.l.b16 %v822
    %v1000 = vunpack.c.l.b16 %v823
    %v1001 = vunpack.c.l.b16 %v824
    %v1002 = vunpack.c.l.b16 %v825
    %v1003 = vunpack.c.l.b16 %v826
    %v1004 = vunpack.c.l.b16 %v827
    %v1005 = vunpack.c.l.b16 %v828
    %v1006 = vunpack.c.l.b16 %v829
    %v1007 = vunpack.c.l.b16 %v830
    %v1008 = vunpack.c.l.b16 %v831
    %v1009 = vunpack.c.l.b16 %v832
    %v1010 = vunpack.c.l.b16 %v833
    %v1011 = vunpack.c.l.b16 %v834
    %v1012 = vunpack.c.l.b16 %v835
    %v1013 = vunpack.c.l.b16 %v836
    %v1014 = vunpack.c.l.b16 %v837
    %v1015 = vunpack.c.l.b16 %v838
    %v1016 = vunpack.c.l.b16 %v839
    %v1017 = vunpack.c.l.b16 %v840
    %v1018 = vunpack.c.l.b16 %v841
    %v1019 = vunpack.c.l.b16 %v842
    %v1020 = vunpack.c.l.b16 %v843
    %v1021 = vunpack.c.l.b16 %v844
    %v1022 = vunpack.c.l.b16 %v845
    %v1023 = vunpack.c.l.b16 %v846
    %v1024 = vunpack.c.l.b16 %v847
    %v1025 = vunpack.c.l.b16 %v848
    %v1026 = vunpack.c.l.b16 %v849
    %v1027 = vunpack.c.l.b16 %v850
    %v1028 = vunpack.c.l.b16 %v851
    %v1029 = vunpack.c.l.b16 %v852
    %v1030 = vunpack.c.l.b16 %v853
    %v1031 = vunpack.c.l.b16 %v854
    %v1032 = vunpack.c.l.b16 %v855
    %v1033 = vunpack.c.l.b16 %v856
    %v1034 = vunpack.c.l.b16 %v857
    %v1035 = vunpack.c.l.b16 %v858
    %v1036 = vunpack.c.l.b16 %v859
    %v1037 = vunpack.c.l.b16 %v860
    %v1038 = vunpack.c.l.b16 %v861
    %v1039 = vpack.c.b16 %v960, %v959
    %v1040 = vpack.c.b16 %v962, %v961
    %v1041 = vpack.c.b16 %v964, %v963
    %v1042 = vpack.c.b16 %v966, %v965
    %v1043 = vpack.c.b16 %v968, %v967
    %v1044 = vpack.c.b16 %v970, %v969
    %v1045 = vpack.c.b16 %v972, %v971
    %v1046 = vpack.c.b16 %v974, %v973
    %v1047 = vpack.c.b16 %v976, %v975
    %v1048 = vpack.c.b16 %v978, %v977
    %v1049 = vpack.c.b16 %v980, %v979
    %v1050 = vpack.c.b16 %v982, %v981
    %v1051 = vpack.c.b16 %v984, %v983
    %v1052 = vpack.c.b16 %v986, %v985
    %v1053 = vpack.c.b16 %v988, %v987
    %v1054 = vpack.c.b16 %v990, %v989
    %v1055 = vpack.c.b16 %v992, %v991
    %v1056 = vpack.c.b16 %v994, %v993
    %v1057 = vpack.c.b16 %v996, %v995
    %v1058 = vpack.c.b16 %v998, %v997
    %v1059 = vpack.c.b16 %v1000, %v999
    %v1060 = vpack.c.b16 %v1002, %v1001
    %v1061 = vpack.c.b16 %v1004, %v1003
    %v1062 = vpack.c.b16 %v1006, %v1005
    %v1063 = vpack.c.b16 %v1008, %v1007
    %v1064 = vpack.c.b16 %v1010, %v1009
    %v1065 = vpack.c.b16 %v1012, %v1011
    %v1066 = vpack.c.b16 %v1014, %v1013
    %v1067 = vpack.c.b16 %v1016, %v1015
    %v1068 = vpack.c.b16 %v1018, %v1017
    %v1069 = vpack.c.b16 %v1020, %v1019
    %v1070 = vpack.c.b16 %v1022, %v1021
    %v1071 = vpack.c.b16 %v1024, %v1023
    %v1072 = vpack.c.b16 %v1026, %v1025
    %v1073 = vpack.c.b16 %v1028, %v1027
    %v1074 = vpack.c.b16 %v1030, %v1029
    %v1075 = vpack.c.b16 %v1032, %v1031
    %v1076 = vpack.c.b16 %v1034, %v1033
    %v1077 = vpack.c.b16 %v1036, %v1035
    %v1078 = vpack.c.b16 %v1038, %v1037
    %1119 = vmatprep.subr.bf16.mxu0 0
    %1120 = vmatpush1.bf16.msra.mxu0 %v1039
    %1121 = vmatprep.subr.bf16.mxu0 0
    %1122 = vmatpush1.bf16.msra.mxu0 %v1040
    %1123 = vmatprep.subr.bf16.mxu0 0
    %1124 = vmatpush1.bf16.msra.mxu0 %v1041
    %1125 = vmatprep.subr.bf16.mxu0 0
    %1126 = vmatpush1.bf16.msra.mxu0 %v1042
    %1127 = vmatprep.subr.bf16.mxu0 0
    %1128 = vmatpush1.bf16.msra.mxu0 %v1043
    %1129 = vmatprep.subr.bf16.mxu0 0
    %1130 = vmatpush1.bf16.msra.mxu0 %v1044
    %1131 = vmatprep.subr.bf16.mxu0 0
    %1132 = vmatpush1.bf16.msra.mxu0 %v1045
    %1133 = vmatprep.subr.bf16.mxu0 0
    %1134 = vmatpush1.bf16.msra.mxu0 %v1046
    %1135 = vmatprep.subr.bf16.mxu0 0
    %1136 = vmatpush1.bf16.msra.mxu0 %v1047
    %1137 = vmatprep.subr.bf16.mxu0 0
    %1138 = vmatpush1.bf16.msra.mxu0 %v1048
    %1139 = vmatprep.subr.bf16.mxu0 0
    %1140 = vmatpush1.bf16.msra.mxu0 %v1049
    %1141 = vmatprep.subr.bf16.mxu0 0
    %1142 = vmatpush1.bf16.msra.mxu0 %v1050
    %1143 = vmatprep.subr.bf16.mxu0 0
    %1144 = vmatpush1.bf16.msra.mxu0 %v1051
    %1145 = vmatprep.subr.bf16.mxu0 0
    %1146 = vmatpush1.bf16.msra.mxu0 %v1052
    %1147 = vmatprep.subr.bf16.mxu0 0
    %1148 = vmatpush1.bf16.msra.mxu0 %v1053
    %1149 = vmatprep.subr.bf16.mxu0 0
    %1150 = vmatpush1.bf16.msra.mxu0 %v1054
    %1151 = vmatprep.mubr.bf16.mxu0 %v870
    %1152 = vmatmul.mubr.bf16.gmra.mrb[0].mxu0 %v869
    %v1153 = vpop.f32.mrb[0].mxu0
    %v1154 = vadd.f32 %v867, %v1153
    %v1155 = vpop.f32.mrb[0].mxu0
    %v1156 = vpop.f32.mrb[0].mxu0
    %v1157 = vadd.f32 %v867, %v1156
    %v1158 = vpop.f32.mrb[0].mxu0
    %1159 = vdwg.mxu0
    %1160 = vmatprep.subr.bf16.mxu0 0
    %1161 = vmatpush1.bf16.msra.mxu0 %v1055
    %1162 = vmatprep.subr.bf16.mxu0 0
    %1163 = vmatpush1.bf16.msra.mxu0 %v1056
    %1164 = vmatprep.subr.bf16.mxu0 0
    %1165 = vmatpush1.bf16.msra.mxu0 %v1057
    %1166 = vmatprep.subr.bf16.mxu0 0
    %1167 = vmatpush1.bf16.msra.mxu0 %v1058
    %1168 = vmatprep.subr.bf16.mxu0 0
    %1169 = vmatpush1.bf16.msra.mxu0 %v1059
    %1170 = vmatprep.subr.bf16.mxu0 0
    %1171 = vmatpush1.bf16.msra.mxu0 %v1060
    %1172 = vmatprep.subr.bf16.mxu0 0
    %1173 = vmatpush1.bf16.msra.mxu0 %v1061
    %1174 = vmatprep.subr.bf16.mxu0 0
    %1175 = vmatpush1.bf16.msra.mxu0 %v1062
    %1176 = vmatprep.subr.bf16.mxu0 0
    %1177 = vmatpush1.bf16.msra.mxu0 %v1063
    %1178 = vmatprep.subr.bf16.mxu0 0
    %1179 = vmatpush1.bf16.msra.mxu0 %v1064
    %1180 = vmatprep.subr.bf16.mxu0 0
    %1181 = vmatpush1.bf16.msra.mxu0 %v1065
    %1182 = vmatprep.subr.bf16.mxu0 0
    %1183 = vmatpush1.bf16.msra.mxu0 %v1066
    %1184 = vmatprep.subr.bf16.mxu0 0
    %1185 = vmatpush1.bf16.msra.mxu0 %v1067
    %1186 = vmatprep.subr.bf16.mxu0 0
    %1187 = vmatpush1.bf16.msra.mxu0 %v1068
    %1188 = vmatprep.subr.bf16.mxu0 0
    %1189 = vmatpush1.bf16.msra.mxu0 %v1069
    %1190 = vmatprep.subr.bf16.mxu0 0
    %1191 = vmatpush1.bf16.msra.mxu0 %v1070
    %1192 = vmatprep.mubr.bf16.mxu0 %v872
    %1193 = vmatmul.mubr.bf16.gmra.mrb[0].mxu0 %v871
    %v1194 = vpop.f32.mrb[0].mxu0
    %v1195 = vadd.f32 %v1154, %v1194
    %v1196 = vpop.f32.mrb[0].mxu0
    %v1197 = vpop.f32.mrb[0].mxu0
    %v1198 = vadd.f32 %v1157, %v1197
    %v1199 = vpop.f32.mrb[0].mxu0
    %1200 = vdwg.mxu0
    %1201 = vmatprep.subr.bf16.mxu0 0
    %1202 = vmatpush1.bf16.msra.mxu0 %v1071
    %1203 = vmatprep.subr.bf16.mxu0 0
    %1204 = vmatpush1.bf16.msra.mxu0 %v1072
    %1205 = vmatprep.subr.bf16.mxu0 0
    %1206 = vmatpush1.bf16.msra.mxu0 %v1073
    %1207 = vmatprep.subr.bf16.mxu0 0
    %1208 = vmatpush1.bf16.msra.mxu0 %v1074
    %1209 = vmatprep.subr.bf16.mxu0 0
    %1210 = vmatpush1.bf16.msra.mxu0 %v1075
    %1211 = vmatprep.subr.bf16.mxu0 0
    %1212 = vmatpush1.bf16.msra.mxu0 %v1076
    %1213 = vmatprep.subr.bf16.mxu0 0
    %1214 = vmatpush1.bf16.msra.mxu0 %v1077
    %1215 = vmatprep.subr.bf16.mxu0 0
    %1216 = vmatpush1.bf16.msra.mxu0 %v1078
    %1217 = vmatprep.subr.bf16.mxu0 0
    %1218 = vmatpush1.bf16.msra.mxu0 0
    %1219 = vmatprep.subr.bf16.mxu0 0
    %1220 = vmatpush1.bf16.msra.mxu0 0
    %1221 = vmatprep.subr.bf16.mxu0 0
    %1222 = vmatpush1.bf16.msra.mxu0 0
    %1223 = vmatprep.subr.bf16.mxu0 0
    %1224 = vmatpush1.bf16.msra.mxu0 0
    %1225 = vmatprep.subr.bf16.mxu0 0
    %1226 = vmatpush1.bf16.msra.mxu0 0
    %1227 = vmatprep.subr.bf16.mxu0 0
    %1228 = vmatpush1.bf16.msra.mxu0 0
    %1229 = vmatprep.subr.bf16.mxu0 0
    %1230 = vmatpush1.bf16.msra.mxu0 0
    %1231 = vmatprep.subr.bf16.mxu0 0
    %1232 = vmatpush1.bf16.msra.mxu0 0
    %1233 = vmatprep.mubr.bf16.mxu0 0
    %1234 = vmatmul.mubr.bf16.gmra.mrb[0].mxu0 %v873
    %v1235 = vpop.f32.mrb[0].mxu0
    %v1236 = vadd.f32 %v1195, %v1235
    %v1237 = vpop.f32.mrb[0].mxu0
    %v1238 = vpop.f32.mrb[0].mxu0
    %v1239 = vadd.f32 %v1198, %v1238
    %v1240 = vpop.f32.mrb[0].mxu0
    %1241 = vdwg.mxu0
    %v1242 = vmax.f32 %v1236, 0.0
    %v1243 = vmax.f32 %v1239, 0.0
    %v1246 = vcombine.high %v1242, %v1242
    %v1248 = vunpack.c.l.s4 1983009808
    %v1249 = vunpack.c.0.s8 %v1248
    %v1250 = vlaneseq
    %v1251 = vshrl.u32 %v1250, 7
    %v1252 = vsub.s32 %v1249, %v1251
    %v1253 = vrot.slane %v1242, %v1252
    %v1255 = vunpack.c.l.s4 1983009808
    %v1256 = vunpack.c.0.s8 %v1255
    %v1257 = vlaneseq
    %v1258 = vshrl.u32 %v1257, 7
    %v1259 = vsub.s32 %v1256, %v1258
    %v1260 = vrot.slane %v1246, %v1259
    %v1261 = vcombine.high %v1253, %v1253
    %v1262 = vcombine.high %v1260, %v1260
    %v1263 = vcombine.high %v1243, %v1243
    %v1265 = vunpack.c.l.s4 1983009808
    %v1266 = vunpack.c.0.s8 %v1265
    %v1267 = vlaneseq
    %v1268 = vshrl.u32 %v1267, 7
    %v1269 = vsub.s32 %v1266, %v1268
    %v1270 = vrot.slane %v1243, %v1269
    %v1272 = vunpack.c.l.s4 1983009808
    %v1273 = vunpack.c.0.s8 %v1272
    %v1274 = vlaneseq
    %v1275 = vshrl.u32 %v1274, 7
    %v1276 = vsub.s32 %v1273, %v1275
    %v1277 = vrot.slane %v1263, %v1276
    %v1278 = vcombine.high %v1270, %v1270
    %v1279 = vcombine.high %v1277, %v1277
    %v1288 = vsel %vm475, %v1253, -inf
    %v1289 = vrot.slane %v1288, 4
    %v1290 = vmax.f32 %v1288, %v1289
    %v1291 = vrot.slane %v1290, 2
    %v1292 = vmax.f32 %v1290, %v1291
    %v1293 = vrot.slane %v1292, 1
    %v1294 = vmax.f32 %v1292, %v1293
    %v1295 = vsel %vm475, %v1261, -inf
    %v1296 = vrot.slane %v1295, 4
    %v1297 = vmax.f32 %v1295, %v1296
    %v1298 = vrot.slane %v1297, 2
    %v1299 = vmax.f32 %v1297, %v1298
    %v1300 = vrot.slane %v1299, 1
    %v1301 = vmax.f32 %v1299, %v1300
    %v1302 = vsel %vm475, %v1260, -inf
    %v1303 = vrot.slane %v1302, 4
    %v1304 = vmax.f32 %v1302, %v1303
    %v1305 = vrot.slane %v1304, 2
    %v1306 = vmax.f32 %v1304, %v1305
    %v1307 = vrot.slane %v1306, 1
    %v1308 = vmax.f32 %v1306, %v1307
    %v1309 = vsel %vm475, %v1262, -inf
    %v1310 = vrot.slane %v1309, 4
    %v1311 = vmax.f32 %v1309, %v1310
    %v1312 = vrot.slane %v1311, 2
    %v1313 = vmax.f32 %v1311, %v1312
    %v1314 = vrot.slane %v1313, 1
    %v1315 = vmax.f32 %v1313, %v1314
    %v1316 = vsel %vm475, %v1270, -inf
    %v1317 = vrot.slane %v1316, 4
    %v1318 = vmax.f32 %v1316, %v1317
    %v1319 = vrot.slane %v1318, 2
    %v1320 = vmax.f32 %v1318, %v1319
    %v1321 = vrot.slane %v1320, 1
    %v1322 = vmax.f32 %v1320, %v1321
    %v1323 = vsel %vm475, %v1278, -inf
    %v1324 = vrot.slane %v1323, 4
    %v1325 = vmax.f32 %v1323, %v1324
    %v1326 = vrot.slane %v1325, 2
    %v1327 = vmax.f32 %v1325, %v1326
    %v1328 = vrot.slane %v1327, 1
    %v1329 = vmax.f32 %v1327, %v1328
    %v1330 = vsel %vm475, %v1277, -inf
    %v1331 = vrot.slane %v1330, 4
    %v1332 = vmax.f32 %v1330, %v1331
    %v1333 = vrot.slane %v1332, 2
    %v1334 = vmax.f32 %v1332, %v1333
    %v1335 = vrot.slane %v1334, 1
    %v1336 = vmax.f32 %v1334, %v1335
    %v1337 = vsel %vm475, %v1279, -inf
    %v1338 = vrot.slane %v1337, 4
    %v1339 = vmax.f32 %v1337, %v1338
    %v1340 = vrot.slane %v1339, 2
    %v1341 = vmax.f32 %v1339, %v1340
    %v1342 = vrot.slane %v1341, 1
    %v1343 = vmax.f32 %v1341, %v1342
    %v1344 = vpack.c.bf16 %v1294, %v1294
    %v1345 = vpack.c.bf16 %v1301, %v1301
    %v1346 = vpack.c.bf16 %v1308, %v1308
    %v1347 = vpack.c.bf16 %v1315, %v1315
    %v1348 = vpack.c.bf16 %v1322, %v1322
    %v1349 = vpack.c.bf16 %v1329, %v1329
    %v1350 = vpack.c.bf16 %v1336, %v1336
    %v1351 = vpack.c.bf16 %v1343, %v1343
    %v1352 = vld [vmem:[%s5] sm:$0xff]
    %v1353 = vld [vmem:[%s5 + $0x8] sm:$0xff]
    %v1354 = vld [vmem:[%s5 + $0x10] sm:$0xff]
    %v1355 = vld [vmem:[%s5 + $0x18] sm:$0xff]
    %v1356 = vld [vmem:[%s5 + $0x20] sm:$0xff]
    %v1357 = vld [vmem:[%s5 + $0x28] sm:$0xff]
    %v1358 = vld [vmem:[%s5 + $0x30] sm:$0xff]
    %v1359 = vld [vmem:[%s5 + $0x38] sm:$0xff]
    %v1360 = vld [vmem:[%s5 + $0x40] sm:$0xff]
    %v1361 = vld [vmem:[%s5 + $0x48] sm:$0xff]
    %v1362 = vld [vmem:[%s5 + $0x50] sm:$0xff]
    %v1363 = vld [vmem:[%s5 + $0x58] sm:$0xff]
    %v1364 = vld [vmem:[%s5 + $0x60] sm:$0xff]
    %v1365 = vld [vmem:[%s5 + $0x68] sm:$0xff]
    %v1366 = vld [vmem:[%s5 + $0x70] sm:$0xff]
    %v1367 = vld [vmem:[%s5 + $0x78] sm:$0xff]
    %v1368 = vld [vmem:[%s5 + $0x80] sm:$0xff]
    %v1369 = vld [vmem:[%s5 + $0x88] sm:$0xff]
    %v1370 = vld [vmem:[%s5 + $0x90] sm:$0xff]
    %v1371 = vld [vmem:[%s5 + $0x98] sm:$0xff]
    %v1372 = vld [vmem:[%s5 + $0xa0] sm:$0xff]
    %v1373 = vld [vmem:[%s5 + $0xa8] sm:$0xff]
    %v1374 = vld [vmem:[%s5 + $0xb0] sm:$0xff]
    %v1375 = vld [vmem:[%s5 + $0xb8] sm:$0xff]
    %v1376 = vld [vmem:[%s5 + $0xc0] sm:$0xff]
    %v1377 = vld [vmem:[%s5 + $0xc8] sm:$0xff]
    %v1378 = vld [vmem:[%s5 + $0xd0] sm:$0xff]
    %v1379 = vld [vmem:[%s5 + $0xd8] sm:$0xff]
    %v1380 = vld [vmem:[%s5 + $0xe0] sm:$0xff]
    %v1381 = vld [vmem:[%s5 + $0xe8] sm:$0xff]
    %v1382 = vld [vmem:[%s5 + $0xf0] sm:$0xff]
    %v1383 = vld [vmem:[%s5 + $0xf8] sm:$0xff]
    %v1384 = vld [vmem:[%s5 + $0x100] sm:$0xff]
    %v1385 = vld [vmem:[%s5 + $0x108] sm:$0xff]
    %v1386 = vld [vmem:[%s5 + $0x110] sm:$0xff]
    %v1387 = vld [vmem:[%s5 + $0x118] sm:$0xff]
    %v1388 = vld [vmem:[%s5 + $0x120] sm:$0xff]
    %v1389 = vld [vmem:[%s5 + $0x128] sm:$0xff]
    %v1390 = vld [vmem:[%s5 + $0x130] sm:$0xff]
    %v1391 = vld [vmem:[%s5 + $0x138] sm:$0xff]
    %v1392 = vld [vmem:[%s5 + $0x140] sm:$0xff]
    %v1393 = vld [vmem:[%s5 + $0x148] sm:$0xff]
    %v1394 = vld [vmem:[%s5 + $0x150] sm:$0xff]
    %v1395 = vld [vmem:[%s5 + $0x158] sm:$0xff]
    %v1396 = vld [vmem:[%s5 + $0x160] sm:$0xff]
    %v1397 = vld [vmem:[%s5 + $0x168] sm:$0xff]
    %v1398 = vld [vmem:[%s5 + $0x170] sm:$0xff]
    %v1399 = vld [vmem:[%s5 + $0x178] sm:$0xff]
    %v1400 = vld [vmem:[%s5 + $0x180] sm:$0xff]
    %v1401 = vld [vmem:[%s5 + $0x188] sm:$0xff]
    %v1402 = vld [vmem:[%s5 + $0x190] sm:$0xff]
    %v1403 = vld [vmem:[%s5 + $0x198] sm:$0xff]
    %v1404 = vld [vmem:[%s5 + $0x1a0] sm:$0xff]
    %v1405 = vld [vmem:[%s5 + $0x1a8] sm:$0xff]
    %v1406 = vld [vmem:[%s5 + $0x1b0] sm:$0xff]
    %v1407 = vld [vmem:[%s5 + $0x1b8] sm:$0xff]
    %v1408 = vld [vmem:[%s5 + $0x1c0] sm:$0xff]
    %v1409 = vld [vmem:[%s5 + $0x1c8] sm:$0xff]
    %v1410 = vld [vmem:[%s5 + $0x1d0] sm:$0xff]
    %v1411 = vld [vmem:[%s5 + $0x1d8] sm:$0xff]
    %v1412 = vld [vmem:[%s5 + $0x1e0] sm:$0xff]
    %v1413 = vld [vmem:[%s5 + $0x1e8] sm:$0xff]
    %v1414 = vld [vmem:[%s5 + $0x1f0] sm:$0xff]
    %v1415 = vld [vmem:[%s5 + $0x1f8] sm:$0xff]
    %v1416 = vld [vmem:[%s6] sm:$0xff]
    %v1418 = vlaneseq
    %v1419 = vshrl.u32 %v1418, 7
    %v1420 = vsub.s32 0, %v1419
    %v1421 = vrot.slane %v1416, %v1420
    %v1422 = vlaneseq
    %v1423 = vshrl.u32 %v1422, 7
    %v1424 = vsub.s32 1, %v1423
    %v1425 = vrot.slane %v1416, %v1424
    %v1426 = vlaneseq
    %v1427 = vshrl.u32 %v1426, 7
    %v1428 = vsub.s32 2, %v1427
    %v1429 = vrot.slane %v1416, %v1428
    %v1430 = vlaneseq
    %v1431 = vshrl.u32 %v1430, 7
    %v1432 = vsub.s32 3, %v1431
    %v1433 = vrot.slane %v1416, %v1432
    %v1434 = vlaneseq
    %v1435 = vshrl.u32 %v1434, 7
    %v1436 = vsub.s32 4, %v1435
    %v1437 = vrot.slane %v1416, %v1436
    %v1438 = vlaneseq
    %v1439 = vshrl.u32 %v1438, 7
    %v1440 = vsub.s32 5, %v1439
    %v1441 = vrot.slane %v1416, %v1440
    %v1442 = vlaneseq
    %v1443 = vshrl.u32 %v1442, 7
    %v1444 = vsub.s32 6, %v1443
    %v1445 = vrot.slane %v1416, %v1444
    %v1446 = vlaneseq
    %v1447 = vshrl.u32 %v1446, 7
    %v1448 = vsub.s32 7, %v1447
    %v1449 = vrot.slane %v1416, %v1448
    %v1466 = vunpack.c.l.b16 %v1344
    %v1467 = vunpack.c.l.b16 %v1345
    %v1468 = vunpack.c.l.b16 %v1346
    %v1469 = vunpack.c.l.b16 %v1347
    %v1470 = vunpack.c.l.b16 %v1348
    %v1471 = vunpack.c.l.b16 %v1349
    %v1472 = vunpack.c.l.b16 %v1350
    %v1473 = vunpack.c.l.b16 %v1351
    %v1474 = vsel %vm682, %v1467, %v1466
    %vm1475 = vcmask 1042434
    %v1476 = vsel %vm1475, %v1468, %v1474
    %v1477 = vsel %vm672, %v1469, %v1476
    %v1478 = vsel %vm674, %v1470, %v1477
    %v1479 = vsel %vm676, %v1471, %v1478
    %v1480 = vsel %vm678, %v1472, %v1479
    %v1481 = vsel %vm680, %v1473, %v1480
    %v1482 = vpack.c.b16 %v1481, %v1481
    %v1548 = vunpack.c.l.b16 %v1352
    %v1549 = vunpack.c.h.b16 %v1352
    %v1550 = vunpack.c.l.b16 %v1353
    %v1551 = vunpack.c.h.b16 %v1353
    %v1552 = vunpack.c.l.b16 %v1354
    %v1553 = vunpack.c.h.b16 %v1354
    %v1554 = vunpack.c.l.b16 %v1355
    %v1555 = vunpack.c.h.b16 %v1355
    %v1556 = vunpack.c.l.b16 %v1356
    %v1557 = vunpack.c.h.b16 %v1356
    %v1558 = vunpack.c.l.b16 %v1357
    %v1559 = vunpack.c.h.b16 %v1357
    %v1560 = vunpack.c.l.b16 %v1358
    %v1561 = vunpack.c.h.b16 %v1358
    %v1562 = vunpack.c.l.b16 %v1359
    %v1563 = vunpack.c.h.b16 %v1359
    %v1564 = vunpack.c.l.b16 %v1360
    %v1565 = vunpack.c.h.b16 %v1360
    %v1566 = vunpack.c.l.b16 %v1361
    %v1567 = vunpack.c.h.b16 %v1361
    %v1568 = vunpack.c.l.b16 %v1362
    %v1569 = vunpack.c.h.b16 %v1362
    %v1570 = vunpack.c.l.b16 %v1363
    %v1571 = vunpack.c.h.b16 %v1363
    %v1572 = vunpack.c.l.b16 %v1364
    %v1573 = vunpack.c.h.b16 %v1364
    %v1574 = vunpack.c.l.b16 %v1365
    %v1575 = vunpack.c.h.b16 %v1365
    %v1576 = vunpack.c.l.b16 %v1366
    %v1577 = vunpack.c.h.b16 %v1366
    %v1578 = vunpack.c.l.b16 %v1367
    %v1579 = vunpack.c.h.b16 %v1367
    %v1580 = vunpack.c.l.b16 %v1368
    %v1581 = vunpack.c.h.b16 %v1368
    %v1582 = vunpack.c.l.b16 %v1369
    %v1583 = vunpack.c.h.b16 %v1369
    %v1584 = vunpack.c.l.b16 %v1370
    %v1585 = vunpack.c.h.b16 %v1370
    %v1586 = vunpack.c.l.b16 %v1371
    %v1587 = vunpack.c.h.b16 %v1371
    %v1588 = vunpack.c.l.b16 %v1372
    %v1589 = vunpack.c.h.b16 %v1372
    %v1590 = vunpack.c.l.b16 %v1373
    %v1591 = vunpack.c.h.b16 %v1373
    %v1592 = vunpack.c.l.b16 %v1374
    %v1593 = vunpack.c.h.b16 %v1374
    %v1594 = vunpack.c.l.b16 %v1375
    %v1595 = vunpack.c.h.b16 %v1375
    %v1596 = vunpack.c.l.b16 %v1376
    %v1597 = vunpack.c.h.b16 %v1376
    %v1598 = vunpack.c.l.b16 %v1377
    %v1599 = vunpack.c.h.b16 %v1377
    %v1600 = vunpack.c.l.b16 %v1378
    %v1601 = vunpack.c.h.b16 %v1378
    %v1602 = vunpack.c.l.b16 %v1379
    %v1603 = vunpack.c.h.b16 %v1379
    %v1604 = vunpack.c.l.b16 %v1380
    %v1605 = vunpack.c.h.b16 %v1380
    %v1606 = vunpack.c.l.b16 %v1381
    %v1607 = vunpack.c.h.b16 %v1381
    %v1608 = vunpack.c.l.b16 %v1382
    %v1609 = vunpack.c.h.b16 %v1382
    %v1610 = vunpack.c.l.b16 %v1383
    %v1611 = vunpack.c.h.b16 %v1383
    %v1612 = vunpack.c.l.b16 %v1384
    %v1613 = vunpack.c.h.b16 %v1384
    %v1614 = vunpack.c.l.b16 %v1385
    %v1615 = vunpack.c.h.b16 %v1385
    %v1616 = vunpack.c.l.b16 %v1386
    %v1617 = vunpack.c.h.b16 %v1386
    %v1618 = vunpack.c.l.b16 %v1387
    %v1619 = vunpack.c.h.b16 %v1387
    %v1620 = vunpack.c.l.b16 %v1388
    %v1621 = vunpack.c.h.b16 %v1388
    %v1622 = vunpack.c.l.b16 %v1389
    %v1623 = vunpack.c.h.b16 %v1389
    %v1624 = vunpack.c.l.b16 %v1390
    %v1625 = vunpack.c.h.b16 %v1390
    %v1626 = vunpack.c.l.b16 %v1391
    %v1627 = vunpack.c.h.b16 %v1391
    %v1628 = vunpack.c.l.b16 %v1392
    %v1629 = vunpack.c.h.b16 %v1392
    %v1630 = vunpack.c.l.b16 %v1393
    %v1631 = vunpack.c.h.b16 %v1393
    %v1632 = vunpack.c.l.b16 %v1394
    %v1633 = vunpack.c.h.b16 %v1394
    %v1634 = vunpack.c.l.b16 %v1395
    %v1635 = vunpack.c.h.b16 %v1395
    %v1636 = vunpack.c.l.b16 %v1396
    %v1637 = vunpack.c.h.b16 %v1396
    %v1638 = vunpack.c.l.b16 %v1397
    %v1639 = vunpack.c.h.b16 %v1397
    %v1640 = vunpack.c.l.b16 %v1398
    %v1641 = vunpack.c.h.b16 %v1398
    %v1642 = vunpack.c.l.b16 %v1399
    %v1643 = vunpack.c.h.b16 %v1399
    %v1644 = vunpack.c.l.b16 %v1400
    %v1645 = vunpack.c.h.b16 %v1400
    %v1646 = vunpack.c.l.b16 %v1401
    %v1647 = vunpack.c.h.b16 %v1401
    %v1648 = vunpack.c.l.b16 %v1402
    %v1649 = vunpack.c.h.b16 %v1402
    %v1650 = vunpack.c.l.b16 %v1403
    %v1651 = vunpack.c.h.b16 %v1403
    %v1652 = vunpack.c.l.b16 %v1404
    %v1653 = vunpack.c.h.b16 %v1404
    %v1654 = vunpack.c.l.b16 %v1405
    %v1655 = vunpack.c.h.b16 %v1405
    %v1656 = vunpack.c.l.b16 %v1406
    %v1657 = vunpack.c.h.b16 %v1406
    %v1658 = vunpack.c.l.b16 %v1407
    %v1659 = vunpack.c.h.b16 %v1407
    %v1660 = vunpack.c.l.b16 %v1408
    %v1661 = vunpack.c.h.b16 %v1408
    %v1662 = vunpack.c.l.b16 %v1409
    %v1663 = vunpack.c.h.b16 %v1409
    %v1664 = vunpack.c.l.b16 %v1410
    %v1665 = vunpack.c.h.b16 %v1410
    %v1666 = vunpack.c.l.b16 %v1411
    %v1667 = vunpack.c.h.b16 %v1411
    %v1668 = vunpack.c.l.b16 %v1412
    %v1669 = vunpack.c.h.b16 %v1412
    %v1670 = vunpack.c.l.b16 %v1413
    %v1671 = vunpack.c.h.b16 %v1413
    %v1672 = vunpack.c.l.b16 %v1414
    %v1673 = vunpack.c.h.b16 %v1414
    %v1674 = vunpack.c.l.b16 %v1415
    %v1675 = vunpack.c.h.b16 %v1415
    %v1676 = vpack.c.b16 %v1556, %v1548
    %v1677 = vpack.c.b16 %v1557, %v1549
    %v1678 = vpack.c.b16 %v1558, %v1550
    %v1679 = vpack.c.b16 %v1559, %v1551
    %v1680 = vpack.c.b16 %v1560, %v1552
    %v1681 = vpack.c.b16 %v1561, %v1553
    %v1682 = vpack.c.b16 %v1562, %v1554
    %v1683 = vpack.c.b16 %v1563, %v1555
    %v1684 = vpack.c.b16 %v1572, %v1564
    %v1685 = vpack.c.b16 %v1573, %v1565
    %v1686 = vpack.c.b16 %v1574, %v1566
    %v1687 = vpack.c.b16 %v1575, %v1567
    %v1688 = vpack.c.b16 %v1576, %v1568
    %v1689 = vpack.c.b16 %v1577, %v1569
    %v1690 = vpack.c.b16 %v1578, %v1570
    %v1691 = vpack.c.b16 %v1579, %v1571
    %v1692 = vpack.c.b16 %v1588, %v1580
    %v1693 = vpack.c.b16 %v1589, %v1581
    %v1694 = vpack.c.b16 %v1590, %v1582
    %v1695 = vpack.c.b16 %v1591, %v1583
    %v1696 = vpack.c.b16 %v1592, %v1584
    %v1697 = vpack.c.b16 %v1593, %v1585
    %v1698 = vpack.c.b16 %v1594, %v1586
    %v1699 = vpack.c.b16 %v1595, %v1587
    %v1700 = vpack.c.b16 %v1604, %v1596
    %v1701 = vpack.c.b16 %v1605, %v1597
    %v1702 = vpack.c.b16 %v1606, %v1598
    %v1703 = vpack.c.b16 %v1607, %v1599
    %v1704 = vpack.c.b16 %v1608, %v1600
    %v1705 = vpack.c.b16 %v1609, %v1601
    %v1706 = vpack.c.b16 %v1610, %v1602
    %v1707 = vpack.c.b16 %v1611, %v1603
    %v1708 = vpack.c.b16 %v1620, %v1612
    %v1709 = vpack.c.b16 %v1621, %v1613
    %v1710 = vpack.c.b16 %v1622, %v1614
    %v1711 = vpack.c.b16 %v1623, %v1615
    %v1712 = vpack.c.b16 %v1624, %v1616
    %v1713 = vpack.c.b16 %v1625, %v1617
    %v1714 = vpack.c.b16 %v1626, %v1618
    %v1715 = vpack.c.b16 %v1627, %v1619
    %v1716 = vpack.c.b16 %v1636, %v1628
    %v1717 = vpack.c.b16 %v1637, %v1629
    %v1718 = vpack.c.b16 %v1638, %v1630
    %v1719 = vpack.c.b16 %v1639, %v1631
    %v1720 = vpack.c.b16 %v1640, %v1632
    %v1721 = vpack.c.b16 %v1641, %v1633
    %v1722 = vpack.c.b16 %v1642, %v1634
    %v1723 = vpack.c.b16 %v1643, %v1635
    %v1724 = vpack.c.b16 %v1652, %v1644
    %v1725 = vpack.c.b16 %v1653, %v1645
    %v1726 = vpack.c.b16 %v1654, %v1646
    %v1727 = vpack.c.b16 %v1655, %v1647
    %v1728 = vpack.c.b16 %v1656, %v1648
    %v1729 = vpack.c.b16 %v1657, %v1649
    %v1730 = vpack.c.b16 %v1658, %v1650
    %v1731 = vpack.c.b16 %v1659, %v1651
    %v1732 = vpack.c.b16 %v1668, %v1660
    %v1733 = vpack.c.b16 %v1669, %v1661
    %v1734 = vpack.c.b16 %v1670, %v1662
    %v1735 = vpack.c.b16 %v1671, %v1663
    %v1736 = vpack.c.b16 %v1672, %v1664
    %v1737 = vpack.c.b16 %v1673, %v1665
    %v1738 = vpack.c.b16 %v1674, %v1666
    %v1739 = vpack.c.b16 %v1675, %v1667
    %1804 = vmatprep.subr.bf16.mxu0 %v1677
    %1805 = vmatpush1.bf16.msra.mxu0 %v1676
    %1806 = vmatprep.subr.bf16.mxu0 %v1685
    %1807 = vmatpush1.bf16.msra.mxu0 %v1684
    %1808 = vmatprep.subr.bf16.mxu0 %v1693
    %1809 = vmatpush1.bf16.msra.mxu0 %v1692
    %1810 = vmatprep.subr.bf16.mxu0 %v1701
    %1811 = vmatpush1.bf16.msra.mxu0 %v1700
    %1812 = vmatprep.subr.bf16.mxu0 %v1709
    %1813 = vmatpush1.bf16.msra.mxu0 %v1708
    %1814 = vmatprep.subr.bf16.mxu0 %v1717
    %1815 = vmatpush1.bf16.msra.mxu0 %v1716
    %1816 = vmatprep.subr.bf16.mxu0 %v1725
    %1817 = vmatpush1.bf16.msra.mxu0 %v1724
    %1818 = vmatprep.subr.bf16.mxu0 %v1733
    %1819 = vmatpush1.bf16.msra.mxu0 %v1732
    %1820 = vmatprep.subr.bf16.mxu0 0
    %1821 = vmatpush1.bf16.msra.mxu0 0
    %1822 = vmatprep.subr.bf16.mxu0 0
    %1823 = vmatpush1.bf16.msra.mxu0 0
    %1824 = vmatprep.subr.bf16.mxu0 0
    %1825 = vmatpush1.bf16.msra.mxu0 0
    %1826 = vmatprep.subr.bf16.mxu0 0
    %1827 = vmatpush1.bf16.msra.mxu0 0
    %1828 = vmatprep.subr.bf16.mxu0 0
    %1829 = vmatpush1.bf16.msra.mxu0 0
    %1830 = vmatprep.subr.bf16.mxu0 0
    %1831 = vmatpush1.bf16.msra.mxu0 0
    %1832 = vmatprep.subr.bf16.mxu0 0
    %1833 = vmatpush1.bf16.msra.mxu0 0
    %1834 = vmatprep.subr.bf16.mxu0 0
    %1835 = vmatpush1.bf16.msra.mxu0 0
    %1836 = vmatprep.mubr.bf16.mxu0 0
    %1837 = vmatmul.mubr.bf16.gmra.mrb[0].mxu0 %v1482
    %v1838 = vpop.f32.mrb[0].mxu0
    %v1839 = vadd.f32 %v1421, %v1838
    %v1840 = vpop.f32.mrb[0].mxu0
    %v1841 = vadd.f32 %v1425, %v1840
    %v1842 = vpop.f32.mrb[0].mxu0
    %v1843 = vpop.f32.mrb[0].mxu0
    %1844 = vdwg.mxu0
    %1845 = vmatprep.subr.bf16.mxu0 %v1679
    %1846 = vmatpush1.bf16.msra.mxu0 %v1678
    %1847 = vmatprep.subr.bf16.mxu0 %v1687
    %1848 = vmatpush1.bf16.msra.mxu0 %v1686
    %1849 = vmatprep.subr.bf16.mxu0 %v1695
    %1850 = vmatpush1.bf16.msra.mxu0 %v1694
    %1851 = vmatprep.subr.bf16.mxu0 %v1703
    %1852 = vmatpush1.bf16.msra.mxu0 %v1702
    %1853 = vmatprep.subr.bf16.mxu0 %v1711
    %1854 = vmatpush1.bf16.msra.mxu0 %v1710
    %1855 = vmatprep.subr.bf16.mxu0 %v1719
    %1856 = vmatpush1.bf16.msra.mxu0 %v1718
    %1857 = vmatprep.subr.bf16.mxu0 %v1727
    %1858 = vmatpush1.bf16.msra.mxu0 %v1726
    %1859 = vmatprep.subr.bf16.mxu0 %v1735
    %1860 = vmatpush1.bf16.msra.mxu0 %v1734
    %1861 = vmatprep.subr.bf16.mxu0 0
    %1862 = vmatpush1.bf16.msra.mxu0 0
    %1863 = vmatprep.subr.bf16.mxu0 0
    %1864 = vmatpush1.bf16.msra.mxu0 0
    %1865 = vmatprep.subr.bf16.mxu0 0
    %1866 = vmatpush1.bf16.msra.mxu0 0
    %1867 = vmatprep.subr.bf16.mxu0 0
    %1868 = vmatpush1.bf16.msra.mxu0 0
    %1869 = vmatprep.subr.bf16.mxu0 0
    %1870 = vmatpush1.bf16.msra.mxu0 0
    %1871 = vmatprep.subr.bf16.mxu0 0
    %1872 = vmatpush1.bf16.msra.mxu0 0
    %1873 = vmatprep.subr.bf16.mxu0 0
    %1874 = vmatpush1.bf16.msra.mxu0 0
    %1875 = vmatprep.subr.bf16.mxu0 0
    %1876 = vmatpush1.bf16.msra.mxu0 0
    %1877 = vmatprep.mubr.bf16.mxu0 0
    %1878 = vmatmul.mubr.bf16.gmra.mrb[0].mxu0 %v1482
    %v1879 = vpop.f32.mrb[0].mxu0
    %v1880 = vadd.f32 %v1429, %v1879
    %v1881 = vpop.f32.mrb[0].mxu0
    %v1882 = vadd.f32 %v1433, %v1881
    %v1883 = vpop.f32.mrb[0].mxu0
    %v1884 = vpop.f32.mrb[0].mxu0
    %1885 = vdwg.mxu0
    %1886 = vmatprep.subr.bf16.mxu0 %v1681
    %1887 = vmatpush1.bf16.msra.mxu0 %v1680
    %1888 = vmatprep.subr.bf16.mxu0 %v1689
    %1889 = vmatpush1.bf16.msra.mxu0 %v1688
    %1890 = vmatprep.subr.bf16.mxu0 %v1697
    %1891 = vmatpush1.bf16.msra.mxu0 %v1696
    %1892 = vmatprep.subr.bf16.mxu0 %v1705
    %1893 = vmatpush1.bf16.msra.mxu0 %v1704
    %1894 = vmatprep.subr.bf16.mxu0 %v1713
    %1895 = vmatpush1.bf16.msra.mxu0 %v1712
    %1896 = vmatprep.subr.bf16.mxu0 %v1721
    %1897 = vmatpush1.bf16.msra.mxu0 %v1720
    %1898 = vmatprep.subr.bf16.mxu0 %v1729
    %1899 = vmatpush1.bf16.msra.mxu0 %v1728
    %1900 = vmatprep.subr.bf16.mxu0 %v1737
    %1901 = vmatpush1.bf16.msra.mxu0 %v1736
    %1902 = vmatprep.subr.bf16.mxu0 0
    %1903 = vmatpush1.bf16.msra.mxu0 0
    %1904 = vmatprep.subr.bf16.mxu0 0
    %1905 = vmatpush1.bf16.msra.mxu0 0
    %1906 = vmatprep.subr.bf16.mxu0 0
    %1907 = vmatpush1.bf16.msra.mxu0 0
    %1908 = vmatprep.subr.bf16.mxu0 0
    %1909 = vmatpush1.bf16.msra.mxu0 0
    %1910 = vmatprep.subr.bf16.mxu0 0
    %1911 = vmatpush1.bf16.msra.mxu0 0
    %1912 = vmatprep.subr.bf16.mxu0 0
    %1913 = vmatpush1.bf16.msra.mxu0 0
    %1914 = vmatprep.subr.bf16.mxu0 0
    %1915 = vmatpush1.bf16.msra.mxu0 0
    %1916 = vmatprep.subr.bf16.mxu0 0
    %1917 = vmatpush1.bf16.msra.mxu0 0
    %1918 = vmatprep.mubr.bf16.mxu0 0
    %1919 = vmatmul.mubr.bf16.gmra.mrb[0].mxu0 %v1482
    %v1920 = vpop.f32.mrb[0].mxu0
    %v1921 = vadd.f32 %v1437, %v1920
    %v1922 = vpop.f32.mrb[0].mxu0
    %v1923 = vadd.f32 %v1441, %v1922
    %v1924 = vpop.f32.mrb[0].mxu0
    %v1925 = vpop.f32.mrb[0].mxu0
    %1926 = vdwg.mxu0
    %1927 = vmatprep.subr.bf16.mxu0 %v1683
    %1928 = vmatpush1.bf16.msra.mxu0 %v1682
    %1929 = vmatprep.subr.bf16.mxu0 %v1691
    %1930 = vmatpush1.bf16.msra.mxu0 %v1690
    %1931 = vmatprep.subr.bf16.mxu0 %v1699
    %1932 = vmatpush1.bf16.msra.mxu0 %v1698
    %1933 = vmatprep.subr.bf16.mxu0 %v1707
    %1934 = vmatpush1.bf16.msra.mxu0 %v1706
    %1935 = vmatprep.subr.bf16.mxu0 %v1715
    %1936 = vmatpush1.bf16.msra.mxu0 %v1714
    %1937 = vmatprep.subr.bf16.mxu0 %v1723
    %1938 = vmatpush1.bf16.msra.mxu0 %v1722
    %1939 = vmatprep.subr.bf16.mxu0 %v1731
    %1940 = vmatpush1.bf16.msra.mxu0 %v1730
    %1941 = vmatprep.subr.bf16.mxu0 %v1739
    %1942 = vmatpush1.bf16.msra.mxu0 %v1738
    %1943 = vmatprep.subr.bf16.mxu0 0
    %1944 = vmatpush1.bf16.msra.mxu0 0
    %1945 = vmatprep.subr.bf16.mxu0 0
    %1946 = vmatpush1.bf16.msra.mxu0 0
    %1947 = vmatprep.subr.bf16.mxu0 0
    %1948 = vmatpush1.bf16.msra.mxu0 0
    %1949 = vmatprep.subr.bf16.mxu0 0
    %1950 = vmatpush1.bf16.msra.mxu0 0
    %1951 = vmatprep.subr.bf16.mxu0 0
    %1952 = vmatpush1.bf16.msra.mxu0 0
    %1953 = vmatprep.subr.bf16.mxu0 0
    %1954 = vmatpush1.bf16.msra.mxu0 0
    %1955 = vmatprep.subr.bf16.mxu0 0
    %1956 = vmatpush1.bf16.msra.mxu0 0
    %1957 = vmatprep.subr.bf16.mxu0 0
    %1958 = vmatpush1.bf16.msra.mxu0 0
    %1959 = vmatprep.mubr.bf16.mxu0 0
    %1960 = vmatmul.mubr.bf16.gmra.mrb[0].mxu0 %v1482
    %v1961 = vpop.f32.mrb[0].mxu0
    %v1962 = vadd.f32 %v1445, %v1961
    %v1963 = vpop.f32.mrb[0].mxu0
    %v1964 = vadd.f32 %v1449, %v1963
    %v1965 = vpop.f32.mrb[0].mxu0
    %v1966 = vpop.f32.mrb[0].mxu0
    %1967 = vdwg.mxu0
    %v1976 = vcombine.low %v1839, %v1841
    %v1977 = vcombine.high %v1839, %v1841
    %v1978 = vcombine.low %v1880, %v1882
    %v1979 = vcombine.high %v1880, %v1882
    %v1980 = vcombine.low %v1921, %v1923
    %v1981 = vcombine.high %v1921, %v1923
    %v1982 = vcombine.low %v1962, %v1964
    %v1983 = vcombine.high %v1962, %v1964
    %v1985 = vunpack.c.l.s4 1983009808
    %v1986 = vunpack.c.0.s8 %v1985
    %v1987 = vlaneseq
    %v1988 = vshrl.u32 %v1987, 7
    %v1989 = vsub.s32 %v1986, %v1988
    %v1990 = vrot.slane %v1976, %v1989
    %v1992 = vunpack.c.l.s4 1983009808
    %v1993 = vunpack.c.0.s8 %v1992
    %v1994 = vlaneseq
    %v1995 = vshrl.u32 %v1994, 7
    %v1996 = vsub.s32 %v1993, %v1995
    %v1997 = vrot.slane %v1978, %v1996
    %v1998 = vcombine.low %v1990, %v1997
    %v2000 = vunpack.c.l.s4 1983009808
    %v2001 = vunpack.c.0.s8 %v2000
    %v2002 = vlaneseq
    %v2003 = vshrl.u32 %v2002, 7
    %v2004 = vsub.s32 %v2001, %v2003
    %v2005 = vrot.slane %v1980, %v2004
    %v2007 = vunpack.c.l.s4 1983009808
    %v2008 = vunpack.c.0.s8 %v2007
    %v2009 = vlaneseq
    %v2010 = vshrl.u32 %v2009, 7
    %v2011 = vsub.s32 %v2008, %v2010
    %v2012 = vrot.slane %v1982, %v2011
    %v2013 = vcombine.low %v2005, %v2012
    %v2015 = vunpack.c.l.s4 1983009808
    %v2016 = vunpack.c.0.s8 %v2015
    %v2017 = vlaneseq
    %v2018 = vshrl.u32 %v2017, 7
    %v2019 = vsub.s32 %v2016, %v2018
    %v2020 = vrot.slane %v1977, %v2019
    %v2022 = vunpack.c.l.s4 1983009808
    %v2023 = vunpack.c.0.s8 %v2022
    %v2024 = vlaneseq
    %v2025 = vshrl.u32 %v2024, 7
    %v2026 = vsub.s32 %v2023, %v2025
    %v2027 = vrot.slane %v1979, %v2026
    %v2028 = vcombine.low %v2020, %v2027
    %v2030 = vunpack.c.l.s4 1983009808
    %v2031 = vunpack.c.0.s8 %v2030
    %v2032 = vlaneseq
    %v2033 = vshrl.u32 %v2032, 7
    %v2034 = vsub.s32 %v2031, %v2033
    %v2035 = vrot.slane %v1981, %v2034
    %v2037 = vunpack.c.l.s4 1983009808
    %v2038 = vunpack.c.0.s8 %v2037
    %v2039 = vlaneseq
    %v2040 = vshrl.u32 %v2039, 7
    %v2041 = vsub.s32 %v2038, %v2040
    %v2042 = vrot.slane %v1983, %v2041
    %v2043 = vcombine.low %v2035, %v2042
    %v2044 = vsel %vm674, %v1998, %v1998
    %v2045 = vsel %vm678, %v1998, %v2044
    %v2046 = vrot.slane %v2028, 7
    %v2047 = vsel %vm682, %v2046, %v2045
    %v2048 = vsel %vm672, %v2046, %v2047
    %v2049 = vsel %vm676, %v2046, %v2048
    %v2050 = vsel %vm680, %v2046, %v2049
    %v2051 = vsel %vm674, %v2013, %v2013
    %v2052 = vsel %vm678, %v2013, %v2051
    %v2053 = vrot.slane %v2043, 7
    %v2054 = vsel %vm682, %v2053, %v2052
    %v2055 = vsel %vm672, %v2053, %v2054
    %v2056 = vsel %vm676, %v2053, %v2055
    %v2057 = vsel %vm680, %v2053, %v2056
    %2060 = vst [vmem:[#allocation4] sm:$0xff] %v2050
    %2061 = vst [vmem:[#allocation4 + $0x8] sm:$0xff] %v2057
    %v2062 = vrot.slane %v1998, 1
    %v2063 = vsel %vm674, %v2062, %v2062
    %v2064 = vsel %vm678, %v2062, %v2063
    %v2065 = vsel %vm682, %v2028, %v2064
    %v2066 = vsel %vm672, %v2028, %v2065
    %v2067 = vsel %vm676, %v2028, %v2066
    %v2068 = vsel %vm680, %v2028, %v2067
    %v2069 = vrot.slane %v2013, 1
    %v2070 = vsel %vm674, %v2069, %v2069
    %v2071 = vsel %vm678, %v2069, %v2070
    %v2072 = vsel %vm682, %v2043, %v2071
    %v2073 = vsel %vm672, %v2043, %v2072
    %v2074 = vsel %vm676, %v2043, %v2073
    %v2075 = vsel %vm680, %v2043, %v2074
    %s2078 = scalar_lea.vmem [#allocation4], 16
    %2079 = vst [vmem:[%s2078] sm:$0xff] %v2068
    %2080 = vst [vmem:[%s2078 + $0x8] sm:$0xff] %v2075
    %v2081 = vcombine.high %v1990, %v1997
    %v2082 = vcombine.high %v2005, %v2012
    %v2083 = vcombine.high %v2020, %v2027
    %v2084 = vcombine.high %v2035, %v2042
    %v2085 = vsel %vm674, %v2081, %v2081
    %v2086 = vsel %vm678, %v2081, %v2085
    %v2087 = vrot.slane %v2083, 7
    %v2088 = vsel %vm682, %v2087, %v2086
    %v2089 = vsel %vm672, %v2087, %v2088
    %v2090 = vsel %vm676, %v2087, %v2089
    %v2091 = vsel %vm680, %v2087, %v2090
    %v2092 = vsel %vm674, %v2082, %v2082
    %v2093 = vsel %vm678, %v2082, %v2092
    %v2094 = vrot.slane %v2084, 7
    %v2095 = vsel %vm682, %v2094, %v2093
    %v2096 = vsel %vm672, %v2094, %v2095
    %v2097 = vsel %vm676, %v2094, %v2096
    %v2098 = vsel %vm680, %v2094, %v2097
    %s2101 = scalar_lea.vmem [#allocation4], 32
    %2102 = vst [vmem:[%s2101] sm:$0xff] %v2091
    %2103 = vst [vmem:[%s2101 + $0x8] sm:$0xff] %v2098
    %v2104 = vrot.slane %v2081, 1
    %v2105 = vsel %vm674, %v2104, %v2104
    %v2106 = vsel %vm678, %v2104, %v2105
    %v2107 = vsel %vm682, %v2083, %v2106
    %v2108 = vsel %vm672, %v2083, %v2107
    %v2109 = vsel %vm676, %v2083, %v2108
    %v2110 = vsel %vm680, %v2083, %v2109
    %v2111 = vrot.slane %v2082, 1
    %v2112 = vsel %vm674, %v2111, %v2111
    %v2113 = vsel %vm678, %v2111, %v2112
    %v2114 = vsel %vm682, %v2084, %v2113
    %v2115 = vsel %vm672, %v2084, %v2114
    %v2116 = vsel %vm676, %v2084, %v2115
    %v2117 = vsel %vm680, %v2084, %v2116
    %s2120 = scalar_lea.vmem [#allocation4], 48
    %2121 = vst [vmem:[%s2120] sm:$0xff] %v2110
    %2122 = vst [vmem:[%s2120 + $0x8] sm:$0xff] %v2117
    %v2123 = vld [vmem:[%s7] sm:$0xff]
    %v2124 = vld [vmem:[%s7 + $0x8] sm:$0xff]
    %v2125 = vld [vmem:[%s7 + $0x10] sm:$0xff]
    %v2126 = vld [vmem:[%s7 + $0x18] sm:$0xff]
    %v2127 = vld [vmem:[%s7 + $0x20] sm:$0xff]
    %v2128 = vld [vmem:[%s7 + $0x28] sm:$0xff]
    %v2129 = vld [vmem:[%s7 + $0x30] sm:$0xff]
    %v2130 = vld [vmem:[%s7 + $0x38] sm:$0xff]
    %v2131 = vld [vmem:[%s7 + $0x40] sm:$0xff]
    %v2132 = vld [vmem:[%s7 + $0x48] sm:$0xff]
    %v2133 = vld [vmem:[%s7 + $0x50] sm:$0xff]
    %v2134 = vld [vmem:[%s7 + $0x58] sm:$0xff]
    %v2135 = vld [vmem:[%s7 + $0x60] sm:$0xff]
    %v2136 = vld [vmem:[%s7 + $0x68] sm:$0xff]
    %v2137 = vld [vmem:[%s7 + $0x70] sm:$0xff]
    %v2138 = vld [vmem:[%s7 + $0x78] sm:$0xff]
    %v2139 = vld [vmem:[%s7 + $0x80] sm:$0xff]
    %v2140 = vld [vmem:[%s7 + $0x88] sm:$0xff]
    %v2141 = vld [vmem:[%s7 + $0x90] sm:$0xff]
    %v2142 = vld [vmem:[%s7 + $0x98] sm:$0xff]
    %v2143 = vld [vmem:[%s7 + $0xa0] sm:$0xff]
    %v2144 = vld [vmem:[%s7 + $0xa8] sm:$0xff]
    %v2145 = vld [vmem:[%s7 + $0xb0] sm:$0xff]
    %v2146 = vld [vmem:[%s7 + $0xb8] sm:$0xff]
    %v2147 = vld [vmem:[%s7 + $0xc0] sm:$0xff]
    %v2148 = vld [vmem:[%s7 + $0xc8] sm:$0xff]
    %v2149 = vld [vmem:[%s7 + $0xd0] sm:$0xff]
    %v2150 = vld [vmem:[%s7 + $0xd8] sm:$0xff]
    %v2151 = vld [vmem:[%s7 + $0xe0] sm:$0xff]
    %v2152 = vld [vmem:[%s7 + $0xe8] sm:$0xff]
    %v2153 = vld [vmem:[%s7 + $0xf0] sm:$0xff]
    %v2154 = vld [vmem:[%s7 + $0xf8] sm:$0xff]
    %v2155 = vld [vmem:[%s7 + $0x100] sm:$0xff]
    %v2156 = vld [vmem:[%s7 + $0x108] sm:$0xff]
    %v2157 = vld [vmem:[%s7 + $0x110] sm:$0xff]
    %v2158 = vld [vmem:[%s7 + $0x118] sm:$0xff]
    %v2159 = vld [vmem:[%s7 + $0x120] sm:$0xff]
    %v2160 = vld [vmem:[%s7 + $0x128] sm:$0xff]
    %v2161 = vld [vmem:[%s7 + $0x130] sm:$0xff]
    %v2162 = vld [vmem:[%s7 + $0x138] sm:$0xff]
    %v2163 = vld [vmem:[%s7 + $0x140] sm:$0xff]
    %v2164 = vld [vmem:[%s7 + $0x148] sm:$0xff]
    %v2165 = vld [vmem:[%s7 + $0x150] sm:$0xff]
    %v2166 = vld [vmem:[%s7 + $0x158] sm:$0xff]
    %v2167 = vld [vmem:[%s7 + $0x160] sm:$0xff]
    %v2168 = vld [vmem:[%s7 + $0x168] sm:$0xff]
    %v2169 = vld [vmem:[%s7 + $0x170] sm:$0xff]
    %v2170 = vld [vmem:[%s7 + $0x178] sm:$0xff]
    %v2171 = vld [vmem:[%s7 + $0x180] sm:$0xff]
    %v2172 = vld [vmem:[%s7 + $0x188] sm:$0xff]
    %v2173 = vld [vmem:[%s7 + $0x190] sm:$0xff]
    %v2174 = vld [vmem:[%s7 + $0x198] sm:$0xff]
    %v2175 = vld [vmem:[%s7 + $0x1a0] sm:$0xff]
    %v2176 = vld [vmem:[%s7 + $0x1a8] sm:$0xff]
    %v2177 = vld [vmem:[%s7 + $0x1b0] sm:$0xff]
    %v2178 = vld [vmem:[%s7 + $0x1b8] sm:$0xff]
    %v2179 = vld [vmem:[%s7 + $0x1c0] sm:$0xff]
    %v2180 = vld [vmem:[%s7 + $0x1c8] sm:$0xff]
    %v2181 = vld [vmem:[%s7 + $0x1d0] sm:$0xff]
    %v2182 = vld [vmem:[%s7 + $0x1d8] sm:$0xff]
    %v2183 = vld [vmem:[%s7 + $0x1e0] sm:$0xff]
    %v2184 = vld [vmem:[%s7 + $0x1e8] sm:$0xff]
    %v2185 = vld [vmem:[%s7 + $0x1f0] sm:$0xff]
    %v2186 = vld [vmem:[%s7 + $0x1f8] sm:$0xff]
    %v2187 = vld [vmem:[%s7 + $0x200] sm:$0xff]
    %v2188 = vld [vmem:[%s7 + $0x208] sm:$0xff]
    %v2189 = vld [vmem:[%s7 + $0x210] sm:$0xff]
    %v2190 = vld [vmem:[%s7 + $0x218] sm:$0xff]
    %v2191 = vld [vmem:[%s7 + $0x220] sm:$0xff]
    %v2192 = vld [vmem:[%s7 + $0x228] sm:$0xff]
    %v2193 = vld [vmem:[%s7 + $0x230] sm:$0xff]
    %v2194 = vld [vmem:[%s7 + $0x238] sm:$0xff]
    %v2195 = vld [vmem:[%s7 + $0x240] sm:$0xff]
    %v2196 = vld [vmem:[%s7 + $0x248] sm:$0xff]
    %v2197 = vld [vmem:[%s7 + $0x250] sm:$0xff]
    %v2198 = vld [vmem:[%s7 + $0x258] sm:$0xff]
    %v2199 = vld [vmem:[%s7 + $0x260] sm:$0xff]
    %v2200 = vld [vmem:[%s7 + $0x268] sm:$0xff]
    %v2201 = vld [vmem:[%s7 + $0x270] sm:$0xff]
    %v2202 = vld [vmem:[%s7 + $0x278] sm:$0xff]
    %v2203 = vld [vmem:[%s7 + $0x280] sm:$0xff]
    %v2204 = vld [vmem:[%s7 + $0x288] sm:$0xff]
    %v2205 = vld [vmem:[%s7 + $0x290] sm:$0xff]
    %v2206 = vld [vmem:[%s7 + $0x298] sm:$0xff]
    %v2207 = vld [vmem:[%s7 + $0x2a0] sm:$0xff]
    %v2208 = vld [vmem:[%s7 + $0x2a8] sm:$0xff]
    %v2209 = vld [vmem:[%s7 + $0x2b0] sm:$0xff]
    %v2210 = vld [vmem:[%s7 + $0x2b8] sm:$0xff]
    %v2211 = vld [vmem:[%s7 + $0x2c0] sm:$0xff]
    %v2212 = vld [vmem:[%s7 + $0x2c8] sm:$0xff]
    %v2213 = vld [vmem:[%s7 + $0x2d0] sm:$0xff]
    %v2214 = vld [vmem:[%s7 + $0x2d8] sm:$0xff]
    %v2215 = vld [vmem:[%s7 + $0x2e0] sm:$0xff]
    %v2216 = vld [vmem:[%s7 + $0x2e8] sm:$0xff]
    %v2217 = vld [vmem:[%s7 + $0x2f0] sm:$0xff]
    %v2218 = vld [vmem:[%s7 + $0x2f8] sm:$0xff]
    %v2219 = vld [vmem:[%s7 + $0x300] sm:$0xff]
    %v2220 = vld [vmem:[%s7 + $0x308] sm:$0xff]
    %v2221 = vld [vmem:[%s7 + $0x310] sm:$0xff]
    %v2222 = vld [vmem:[%s7 + $0x318] sm:$0xff]
    %v2223 = vld [vmem:[%s7 + $0x320] sm:$0xff]
    %v2224 = vld [vmem:[%s7 + $0x328] sm:$0xff]
    %v2225 = vld [vmem:[%s7 + $0x330] sm:$0xff]
    %v2226 = vld [vmem:[%s7 + $0x338] sm:$0xff]
    %v2227 = vld [vmem:[%s7 + $0x340] sm:$0xff]
    %v2228 = vld [vmem:[%s7 + $0x348] sm:$0xff]
    %v2229 = vld [vmem:[%s7 + $0x350] sm:$0xff]
    %v2230 = vld [vmem:[%s7 + $0x358] sm:$0xff]
    %v2231 = vld [vmem:[%s7 + $0x360] sm:$0xff]
    %v2232 = vld [vmem:[%s7 + $0x368] sm:$0xff]
    %v2233 = vld [vmem:[%s7 + $0x370] sm:$0xff]
    %v2234 = vld [vmem:[%s7 + $0x378] sm:$0xff]
    %v2235 = vld [vmem:[%s7 + $0x380] sm:$0xff]
    %v2236 = vld [vmem:[%s7 + $0x388] sm:$0xff]
    %v2237 = vld [vmem:[%s7 + $0x390] sm:$0xff]
    %v2238 = vld [vmem:[%s7 + $0x398] sm:$0xff]
    %v2239 = vld [vmem:[%s7 + $0x3a0] sm:$0xff]
    %v2240 = vld [vmem:[%s7 + $0x3a8] sm:$0xff]
    %v2241 = vld [vmem:[%s7 + $0x3b0] sm:$0xff]
    %v2242 = vld [vmem:[%s7 + $0x3b8] sm:$0xff]
    %v2243 = vld [vmem:[%s7 + $0x3c0] sm:$0xff]
    %v2244 = vld [vmem:[%s7 + $0x3c8] sm:$0xff]
    %v2245 = vld [vmem:[%s7 + $0x3d0] sm:$0xff]
    %v2246 = vld [vmem:[%s7 + $0x3d8] sm:$0xff]
    %v2247 = vld [vmem:[%s7 + $0x3e0] sm:$0xff]
    %v2248 = vld [vmem:[%s7 + $0x3e8] sm:$0xff]
    %v2249 = vld [vmem:[%s7 + $0x3f0] sm:$0xff]
    %v2250 = vld [vmem:[%s7 + $0x3f8] sm:$0xff]
    %v2251 = vld [vmem:[#allocation4] sm:$0xff]
    %v2252 = vld [vmem:[#allocation4 + $0x8] sm:$0xff]
    %v2253 = vld [vmem:[%s2120] sm:$0xff]
    %v2254 = vld [vmem:[%s2120 + $0x8] sm:$0xff]
    %v2256 = vcombine.high %v2251, %v2251
    %v2258 = vunpack.c.l.s4 1983009808
    %v2259 = vunpack.c.0.s8 %v2258
    %v2260 = vlaneseq
    %v2261 = vshrl.u32 %v2260, 7
    %v2262 = vsub.s32 %v2259, %v2261
    %v2263 = vrot.slane %v2251, %v2262
    %v2265 = vunpack.c.l.s4 1983009808
    %v2266 = vunpack.c.0.s8 %v2265
    %v2267 = vlaneseq
    %v2268 = vshrl.u32 %v2267, 7
    %v2269 = vsub.s32 %v2266, %v2268
    %v2270 = vrot.slane %v2256, %v2269
    %v2271 = vcombine.high %v2263, %v2263
    %v2272 = vcombine.high %v2270, %v2270
    %v2278 = vcombine.high %v2254, %v2254
    %v2280 = vunpack.c.l.s4 1983009808
    %v2281 = vunpack.c.0.s8 %v2280
    %v2282 = vlaneseq
    %v2283 = vshrl.u32 %v2282, 7
    %v2284 = vsub.s32 %v2281, %v2283
    %v2285 = vrot.slane %v2254, %v2284
    %v2287 = vunpack.c.l.s4 1983009808
    %v2288 = vunpack.c.0.s8 %v2287
    %v2289 = vlaneseq
    %v2290 = vshrl.u32 %v2289, 7
    %v2291 = vsub.s32 %v2288, %v2290
    %v2292 = vrot.slane %v2278, %v2291
    %v2293 = vcombine.high %v2285, %v2285
    %v2294 = vcombine.high %v2292, %v2292
    %v2299 = vpack.c.bf16 0.0, 0.0
    %v2428 = vunpack.c.l.b16 %v2123
    %v2429 = vunpack.c.h.b16 %v2123
    %v2430 = vunpack.c.l.b16 %v2124
    %v2431 = vunpack.c.h.b16 %v2124
    %v2432 = vunpack.c.l.b16 %v2125
    %v2433 = vunpack.c.h.b16 %v2125
    %v2434 = vunpack.c.l.b16 %v2126
    %v2435 = vunpack.c.h.b16 %v2126
    %v2436 = vunpack.c.l.b16 %v2127
    %v2437 = vunpack.c.h.b16 %v2127
    %v2438 = vunpack.c.l.b16 %v2128
    %v2439 = vunpack.c.h.b16 %v2128
    %v2440 = vunpack.c.l.b16 %v2129
    %v2441 = vunpack.c.h.b16 %v2129
    %v2442 = vunpack.c.l.b16 %v2130
    %v2443 = vunpack.c.h.b16 %v2130
    %v2444 = vunpack.c.l.b16 %v2131
    %v2445 = vunpack.c.h.b16 %v2131
    %v2446 = vunpack.c.l.b16 %v2132
    %v2447 = vunpack.c.h.b16 %v2132
    %v2448 = vunpack.c.l.b16 %v2133
    %v2449 = vunpack.c.h.b16 %v2133
    %v2450 = vunpack.c.l.b16 %v2134
    %v2451 = vunpack.c.h.b16 %v2134
    %v2452 = vunpack.c.l.b16 %v2135
    %v2453 = vunpack.c.h.b16 %v2135
    %v2454 = vunpack.c.l.b16 %v2136
    %v2455 = vunpack.c.h.b16 %v2136
    %v2456 = vunpack.c.l.b16 %v2137
    %v2457 = vunpack.c.h.b16 %v2137
    %v2458 = vunpack.c.l.b16 %v2138
    %v2459 = vunpack.c.h.b16 %v2138
    %v2460 = vunpack.c.l.b16 %v2139
    %v2461 = vunpack.c.h.b16 %v2139
    %v2462 = vunpack.c.l.b16 %v2140
    %v2463 = vunpack.c.h.b16 %v2140
    %v2464 = vunpack.c.l.b16 %v2141
    %v2465 = vunpack.c.h.b16 %v2141
    %v2466 = vunpack.c.l.b16 %v2142
    %v2467 = vunpack.c.h.b16 %v2142
    %v2468 = vunpack.c.l.b16 %v2143
    %v2469 = vunpack.c.h.b16 %v2143
    %v2470 = vunpack.c.l.b16 %v2144
    %v2471 = vunpack.c.h.b16 %v2144
    %v2472 = vunpack.c.l.b16 %v2145
    %v2473 = vunpack.c.h.b16 %v2145
    %v2474 = vunpack.c.l.b16 %v2146
    %v2475 = vunpack.c.h.b16 %v2146
    %v2476 = vunpack.c.l.b16 %v2147
    %v2477 = vunpack.c.h.b16 %v2147
    %v2478 = vunpack.c.l.b16 %v2148
    %v2479 = vunpack.c.h.b16 %v2148
    %v2480 = vunpack.c.l.b16 %v2149
    %v2481 = vunpack.c.h.b16 %v2149
    %v2482 = vunpack.c.l.b16 %v2150
    %v2483 = vunpack.c.h.b16 %v2150
    %v2484 = vunpack.c.l.b16 %v2151
    %v2485 = vunpack.c.h.b16 %v2151
    %v2486 = vunpack.c.l.b16 %v2152
    %v2487 = vunpack.c.h.b16 %v2152
    %v2488 = vunpack.c.l.b16 %v2153
    %v2489 = vunpack.c.h.b16 %v2153
    %v2490 = vunpack.c.l.b16 %v2154
    %v2491 = vunpack.c.h.b16 %v2154
    %v2492 = vunpack.c.l.b16 %v2155
    %v2493 = vunpack.c.h.b16 %v2155
    %v2494 = vunpack.c.l.b16 %v2156
    %v2495 = vunpack.c.h.b16 %v2156
    %v2496 = vunpack.c.l.b16 %v2157
    %v2497 = vunpack.c.h.b16 %v2157
    %v2498 = vunpack.c.l.b16 %v2158
    %v2499 = vunpack.c.h.b16 %v2158
    %v2500 = vunpack.c.l.b16 %v2159
    %v2501 = vunpack.c.h.b16 %v2159
    %v2502 = vunpack.c.l.b16 %v2160
    %v2503 = vunpack.c.h.b16 %v2160
    %v2504 = vunpack.c.l.b16 %v2161
    %v2505 = vunpack.c.h.b16 %v2161
    %v2506 = vunpack.c.l.b16 %v2162
    %v2507 = vunpack.c.h.b16 %v2162
    %v2508 = vunpack.c.l.b16 %v2163
    %v2509 = vunpack.c.h.b16 %v2163
    %v2510 = vunpack.c.l.b16 %v2164
    %v2511 = vunpack.c.h.b16 %v2164
    %v2512 = vunpack.c.l.b16 %v2165
    %v2513 = vunpack.c.h.b16 %v2165
    %v2514 = vunpack.c.l.b16 %v2166
    %v2515 = vunpack.c.h.b16 %v2166
    %v2516 = vunpack.c.l.b16 %v2167
    %v2517 = vunpack.c.h.b16 %v2167
    %v2518 = vunpack.c.l.b16 %v2168
    %v2519 = vunpack.c.h.b16 %v2168
    %v2520 = vunpack.c.l.b16 %v2169
    %v2521 = vunpack.c.h.b16 %v2169
    %v2522 = vunpack.c.l.b16 %v2170
    %v2523 = vunpack.c.h.b16 %v2170
    %v2524 = vunpack.c.l.b16 %v2171
    %v2525 = vunpack.c.h.b16 %v2171
    %v2526 = vunpack.c.l.b16 %v2172
    %v2527 = vunpack.c.h.b16 %v2172
    %v2528 = vunpack.c.l.b16 %v2173
    %v2529 = vunpack.c.h.b16 %v2173
    %v2530 = vunpack.c.l.b16 %v2174
    %v2531 = vunpack.c.h.b16 %v2174
    %v2532 = vunpack.c.l.b16 %v2175
    %v2533 = vunpack.c.h.b16 %v2175
    %v2534 = vunpack.c.l.b16 %v2176
    %v2535 = vunpack.c.h.b16 %v2176
    %v2536 = vunpack.c.l.b16 %v2177
    %v2537 = vunpack.c.h.b16 %v2177
    %v2538 = vunpack.c.l.b16 %v2178
    %v2539 = vunpack.c.h.b16 %v2178
    %v2540 = vunpack.c.l.b16 %v2179
    %v2541 = vunpack.c.h.b16 %v2179
    %v2542 = vunpack.c.l.b16 %v2180
    %v2543 = vunpack.c.h.b16 %v2180
    %v2544 = vunpack.c.l.b16 %v2181
    %v2545 = vunpack.c.h.b16 %v2181
    %v2546 = vunpack.c.l.b16 %v2182
    %v2547 = vunpack.c.h.b16 %v2182
    %v2548 = vunpack.c.l.b16 %v2183
    %v2549 = vunpack.c.h.b16 %v2183
    %v2550 = vunpack.c.l.b16 %v2184
    %v2551 = vunpack.c.h.b16 %v2184
    %v2552 = vunpack.c.l.b16 %v2185
    %v2553 = vunpack.c.h.b16 %v2185
    %v2554 = vunpack.c.l.b16 %v2186
    %v2555 = vunpack.c.h.b16 %v2186
    %v2556 = vunpack.c.l.b16 %v2187
    %v2557 = vunpack.c.h.b16 %v2187
    %v2558 = vunpack.c.l.b16 %v2188
    %v2559 = vunpack.c.h.b16 %v2188
    %v2560 = vunpack.c.l.b16 %v2189
    %v2561 = vunpack.c.h.b16 %v2189
    %v2562 = vunpack.c.l.b16 %v2190
    %v2563 = vunpack.c.h.b16 %v2190
    %v2564 = vunpack.c.l.b16 %v2191
    %v2565 = vunpack.c.h.b16 %v2191
    %v2566 = vunpack.c.l.b16 %v2192
    %v2567 = vunpack.c.h.b16 %v2192
    %v2568 = vunpack.c.l.b16 %v2193
    %v2569 = vunpack.c.h.b16 %v2193
    %v2570 = vunpack.c.l.b16 %v2194
    %v2571 = vunpack.c.h.b16 %v2194
    %v2572 = vunpack.c.l.b16 %v2195
    %v2573 = vunpack.c.h.b16 %v2195
    %v2574 = vunpack.c.l.b16 %v2196
    %v2575 = vunpack.c.h.b16 %v2196
    %v2576 = vunpack.c.l.b16 %v2197
    %v2577 = vunpack.c.h.b16 %v2197
    %v2578 = vunpack.c.l.b16 %v2198
    %v2579 = vunpack.c.h.b16 %v2198
    %v2580 = vunpack.c.l.b16 %v2199
    %v2581 = vunpack.c.h.b16 %v2199
    %v2582 = vunpack.c.l.b16 %v2200
    %v2583 = vunpack.c.h.b16 %v2200
    %v2584 = vunpack.c.l.b16 %v2201
    %v2585 = vunpack.c.h.b16 %v2201
    %v2586 = vunpack.c.l.b16 %v2202
    %v2587 = vunpack.c.h.b16 %v2202
    %v2588 = vunpack.c.l.b16 %v2203
    %v2589 = vunpack.c.h.b16 %v2203
    %v2590 = vunpack.c.l.b16 %v2204
    %v2591 = vunpack.c.h.b16 %v2204
    %v2592 = vunpack.c.l.b16 %v2205
    %v2593 = vunpack.c.h.b16 %v2205
    %v2594 = vunpack.c.l.b16 %v2206
    %v2595 = vunpack.c.h.b16 %v2206
    %v2596 = vunpack.c.l.b16 %v2207
    %v2597 = vunpack.c.h.b16 %v2207
    %v2598 = vunpack.c.l.b16 %v2208
    %v2599 = vunpack.c.h.b16 %v2208
    %v2600 = vunpack.c.l.b16 %v2209
    %v2601 = vunpack.c.h.b16 %v2209
    %v2602 = vunpack.c.l.b16 %v2210
    %v2603 = vunpack.c.h.b16 %v2210
    %v2604 = vunpack.c.l.b16 %v2211
    %v2605 = vunpack.c.h.b16 %v2211
    %v2606 = vunpack.c.l.b16 %v2212
    %v2607 = vunpack.c.h.b16 %v2212
    %v2608 = vunpack.c.l.b16 %v2213
    %v2609 = vunpack.c.h.b16 %v2213
    %v2610 = vunpack.c.l.b16 %v2214
    %v2611 = vunpack.c.h.b16 %v2214
    %v2612 = vunpack.c.l.b16 %v2215
    %v2613 = vunpack.c.h.b16 %v2215
    %v2614 = vunpack.c.l.b16 %v2216
    %v2615 = vunpack.c.h.b16 %v2216
    %v2616 = vunpack.c.l.b16 %v2217
    %v2617 = vunpack.c.h.b16 %v2217
    %v2618 = vunpack.c.l.b16 %v2218
    %v2619 = vunpack.c.h.b16 %v2218
    %v2620 = vunpack.c.l.b16 %v2219
    %v2621 = vunpack.c.h.b16 %v2219
    %v2622 = vunpack.c.l.b16 %v2220
    %v2623 = vunpack.c.h.b16 %v2220
    %v2624 = vunpack.c.l.b16 %v2221
    %v2625 = vunpack.c.h.b16 %v2221
    %v2626 = vunpack.c.l.b16 %v2222
    %v2627 = vunpack.c.h.b16 %v2222
    %v2628 = vunpack.c.l.b16 %v2223
    %v2629 = vunpack.c.h.b16 %v2223
    %v2630 = vunpack.c.l.b16 %v2224
    %v2631 = vunpack.c.h.b16 %v2224
    %v2632 = vunpack.c.l.b16 %v2225
    %v2633 = vunpack.c.h.b16 %v2225
    %v2634 = vunpack.c.l.b16 %v2226
    %v2635 = vunpack.c.h.b16 %v2226
    %v2636 = vunpack.c.l.b16 %v2227
    %v2637 = vunpack.c.h.b16 %v2227
    %v2638 = vunpack.c.l.b16 %v2228
    %v2639 = vunpack.c.h.b16 %v2228
    %v2640 = vunpack.c.l.b16 %v2229
    %v2641 = vunpack.c.h.b16 %v2229
    %v2642 = vunpack.c.l.b16 %v2230
    %v2643 = vunpack.c.h.b16 %v2230
    %v2644 = vunpack.c.l.b16 %v2231
    %v2645 = vunpack.c.h.b16 %v2231
    %v2646 = vunpack.c.l.b16 %v2232
    %v2647 = vunpack.c.h.b16 %v2232
    %v2648 = vunpack.c.l.b16 %v2233
    %v2649 = vunpack.c.h.b16 %v2233
    %v2650 = vunpack.c.l.b16 %v2234
    %v2651 = vunpack.c.h.b16 %v2234
    %v2652 = vunpack.c.l.b16 %v2235
    %v2653 = vunpack.c.h.b16 %v2235
    %v2654 = vunpack.c.l.b16 %v2236
    %v2655 = vunpack.c.h.b16 %v2236
    %v2656 = vunpack.c.l.b16 %v2237
    %v2657 = vunpack.c.h.b16 %v2237
    %v2658 = vunpack.c.l.b16 %v2238
    %v2659 = vunpack.c.h.b16 %v2238
    %v2660 = vunpack.c.l.b16 %v2239
    %v2661 = vunpack.c.h.b16 %v2239
    %v2662 = vunpack.c.l.b16 %v2240
    %v2663 = vunpack.c.h.b16 %v2240
    %v2664 = vunpack.c.l.b16 %v2241
    %v2665 = vunpack.c.h.b16 %v2241
    %v2666 = vunpack.c.l.b16 %v2242
    %v2667 = vunpack.c.h.b16 %v2242
    %v2668 = vunpack.c.l.b16 %v2243
    %v2669 = vunpack.c.h.b16 %v2243
    %v2670 = vunpack.c.l.b16 %v2244
    %v2671 = vunpack.c.h.b16 %v2244
    %v2672 = vunpack.c.l.b16 %v2245
    %v2673 = vunpack.c.h.b16 %v2245
    %v2674 = vunpack.c.l.b16 %v2246
    %v2675 = vunpack.c.h.b16 %v2246
    %v2676 = vunpack.c.l.b16 %v2247
    %v2677 = vunpack.c.h.b16 %v2247
    %v2678 = vunpack.c.l.b16 %v2248
    %v2679 = vunpack.c.h.b16 %v2248
    %v2680 = vunpack.c.l.b16 %v2249
    %v2681 = vunpack.c.h.b16 %v2249
    %v2682 = vunpack.c.l.b16 %v2250
    %v2683 = vunpack.c.h.b16 %v2250
    %v2684 = vpack.c.b16 %v2436, %v2428
    %v2685 = vpack.c.b16 %v2437, %v2429
    %v2686 = vpack.c.b16 %v2438, %v2430
    %v2687 = vpack.c.b16 %v2439, %v2431
    %v2688 = vpack.c.b16 %v2440, %v2432
    %v2689 = vpack.c.b16 %v2441, %v2433
    %v2690 = vpack.c.b16 %v2442, %v2434
    %v2691 = vpack.c.b16 %v2443, %v2435
    %v2692 = vpack.c.b16 %v2452, %v2444
    %v2693 = vpack.c.b16 %v2453, %v2445
    %v2694 = vpack.c.b16 %v2454, %v2446
    %v2695 = vpack.c.b16 %v2455, %v2447
    %v2696 = vpack.c.b16 %v2456, %v2448
    %v2697 = vpack.c.b16 %v2457, %v2449
    %v2698 = vpack.c.b16 %v2458, %v2450
    %v2699 = vpack.c.b16 %v2459, %v2451
    %v2700 = vpack.c.b16 %v2468, %v2460
    %v2701 = vpack.c.b16 %v2469, %v2461
    %v2702 = vpack.c.b16 %v2470, %v2462
    %v2703 = vpack.c.b16 %v2471, %v2463
    %v2704 = vpack.c.b16 %v2472, %v2464
    %v2705 = vpack.c.b16 %v2473, %v2465
    %v2706 = vpack.c.b16 %v2474, %v2466
    %v2707 = vpack.c.b16 %v2475, %v2467
    %v2708 = vpack.c.b16 %v2484, %v2476
    %v2709 = vpack.c.b16 %v2485, %v2477
    %v2710 = vpack.c.b16 %v2486, %v2478
    %v2711 = vpack.c.b16 %v2487, %v2479
    %v2712 = vpack.c.b16 %v2488, %v2480
    %v2713 = vpack.c.b16 %v2489, %v2481
    %v2714 = vpack.c.b16 %v2490, %v2482
    %v2715 = vpack.c.b16 %v2491, %v2483
    %v2716 = vpack.c.b16 %v2500, %v2492
    %v2717 = vpack.c.b16 %v2501, %v2493
    %v2718 = vpack.c.b16 %v2502, %v2494
    %v2719 = vpack.c.b16 %v2503, %v2495
    %v2720 = vpack.c.b16 %v2504, %v2496
    %v2721 = vpack.c.b16 %v2505, %v2497
    %v2722 = vpack.c.b16 %v2506, %v2498
    %v2723 = vpack.c.b16 %v2507, %v2499
    %v2724 = vpack.c.b16 %v2516, %v2508
    %v2725 = vpack.c.b16 %v2517, %v2509
    %v2726 = vpack.c.b16 %v2518, %v2510
    %v2727 = vpack.c.b16 %v2519, %v2511
    %v2728 = vpack.c.b16 %v2520, %v2512
    %v2729 = vpack.c.b16 %v2521, %v2513
    %v2730 = vpack.c.b16 %v2522, %v2514
    %v2731 = vpack.c.b16 %v2523, %v2515
    %v2732 = vpack.c.b16 %v2532, %v2524
    %v2733 = vpack.c.b16 %v2533, %v2525
    %v2734 = vpack.c.b16 %v2534, %v2526
    %v2735 = vpack.c.b16 %v2535, %v2527
    %v2736 = vpack.c.b16 %v2536, %v2528
    %v2737 = vpack.c.b16 %v2537, %v2529
    %v2738 = vpack.c.b16 %v2538, %v2530
    %v2739 = vpack.c.b16 %v2539, %v2531
    %v2740 = vpack.c.b16 %v2548, %v2540
    %v2741 = vpack.c.b16 %v2549, %v2541
    %v2742 = vpack.c.b16 %v2550, %v2542
    %v2743 = vpack.c.b16 %v2551, %v2543
    %v2744 = vpack.c.b16 %v2552, %v2544
    %v2745 = vpack.c.b16 %v2553, %v2545
    %v2746 = vpack.c.b16 %v2554, %v2546
    %v2747 = vpack.c.b16 %v2555, %v2547
    %v2748 = vpack.c.b16 %v2564, %v2556
    %v2749 = vpack.c.b16 %v2565, %v2557
    %v2750 = vpack.c.b16 %v2566, %v2558
    %v2751 = vpack.c.b16 %v2567, %v2559
    %v2752 = vpack.c.b16 %v2568, %v2560
    %v2753 = vpack.c.b16 %v2569, %v2561
    %v2754 = vpack.c.b16 %v2570, %v2562
    %v2755 = vpack.c.b16 %v2571, %v2563
    %v2756 = vpack.c.b16 %v2580, %v2572
    %v2757 = vpack.c.b16 %v2581, %v2573
    %v2758 = vpack.c.b16 %v2582, %v2574
    %v2759 = vpack.c.b16 %v2583, %v2575
    %v2760 = vpack.c.b16 %v2584, %v2576
    %v2761 = vpack.c.b16 %v2585, %v2577
    %v2762 = vpack.c.b16 %v2586, %v2578
    %v2763 = vpack.c.b16 %v2587, %v2579
    %v2764 = vpack.c.b16 %v2596, %v2588
    %v2765 = vpack.c.b16 %v2597, %v2589
    %v2766 = vpack.c.b16 %v2598, %v2590
    %v2767 = vpack.c.b16 %v2599, %v2591
    %v2768 = vpack.c.b16 %v2600, %v2592
    %v2769 = vpack.c.b16 %v2601, %v2593
    %v2770 = vpack.c.b16 %v2602, %v2594
    %v2771 = vpack.c.b16 %v2603, %v2595
    %v2772 = vpack.c.b16 %v2612, %v2604
    %v2773 = vpack.c.b16 %v2613, %v2605
    %v2774 = vpack.c.b16 %v2614, %v2606
    %v2775 = vpack.c.b16 %v2615, %v2607
    %v2776 = vpack.c.b16 %v2616, %v2608
    %v2777 = vpack.c.b16 %v2617, %v2609
    %v2778 = vpack.c.b16 %v2618, %v2610
    %v2779 = vpack.c.b16 %v2619, %v2611
    %v2780 = vpack.c.b16 %v2628, %v2620
    %v2781 = vpack.c.b16 %v2629, %v2621
    %v2782 = vpack.c.b16 %v2630, %v2622
    %v2783 = vpack.c.b16 %v2631, %v2623
    %v2784 = vpack.c.b16 %v2632, %v2624
    %v2785 = vpack.c.b16 %v2633, %v2625
    %v2786 = vpack.c.b16 %v2634, %v2626
    %v2787 = vpack.c.b16 %v2635, %v2627
    %v2788 = vpack.c.b16 %v2644, %v2636
    %v2789 = vpack.c.b16 %v2645, %v2637
    %v2790 = vpack.c.b16 %v2646, %v2638
    %v2791 = vpack.c.b16 %v2647, %v2639
    %v2792 = vpack.c.b16 %v2648, %v2640
    %v2793 = vpack.c.b16 %v2649, %v2641
    %v2794 = vpack.c.b16 %v2650, %v2642
    %v2795 = vpack.c.b16 %v2651, %v2643
    %v2796 = vpack.c.b16 %v2660, %v2652
    %v2797 = vpack.c.b16 %v2661, %v2653
    %v2798 = vpack.c.b16 %v2662, %v2654
    %v2799 = vpack.c.b16 %v2663, %v2655
    %v2800 = vpack.c.b16 %v2664, %v2656
    %v2801 = vpack.c.b16 %v2665, %v2657
    %v2802 = vpack.c.b16 %v2666, %v2658
    %v2803 = vpack.c.b16 %v2667, %v2659
    %v2804 = vpack.c.b16 %v2676, %v2668
    %v2805 = vpack.c.b16 %v2677, %v2669
    %v2806 = vpack.c.b16 %v2678, %v2670
    %v2807 = vpack.c.b16 %v2679, %v2671
    %v2808 = vpack.c.b16 %v2680, %v2672
    %v2809 = vpack.c.b16 %v2681, %v2673
    %v2810 = vpack.c.b16 %v2682, %v2674
    %v2811 = vpack.c.b16 %v2683, %v2675
    %2940 = vmatprep.subr.bf16.mxu0 %v2685
    %2941 = vmatpush1.bf16.msra.mxu0 %v2684
    %2942 = vmatprep.subr.bf16.mxu0 %v2693
    %2943 = vmatpush1.bf16.msra.mxu0 %v2692
    %2944 = vmatprep.subr.bf16.mxu0 %v2701
    %2945 = vmatpush1.bf16.msra.mxu0 %v2700
    %2946 = vmatprep.subr.bf16.mxu0 %v2709
    %2947 = vmatpush1.bf16.msra.mxu0 %v2708
    %2948 = vmatprep.subr.bf16.mxu0 %v2717
    %2949 = vmatpush1.bf16.msra.mxu0 %v2716
    %2950 = vmatprep.subr.bf16.mxu0 %v2725
    %2951 = vmatpush1.bf16.msra.mxu0 %v2724
    %2952 = vmatprep.subr.bf16.mxu0 %v2733
    %2953 = vmatpush1.bf16.msra.mxu0 %v2732
    %2954 = vmatprep.subr.bf16.mxu0 %v2741
    %2955 = vmatpush1.bf16.msra.mxu0 %v2740
    %2956 = vmatprep.subr.bf16.mxu0 %v2749
    %2957 = vmatpush1.bf16.msra.mxu0 %v2748
    %2958 = vmatprep.subr.bf16.mxu0 %v2757
    %2959 = vmatpush1.bf16.msra.mxu0 %v2756
    %2960 = vmatprep.subr.bf16.mxu0 %v2765
    %2961 = vmatpush1.bf16.msra.mxu0 %v2764
    %2962 = vmatprep.subr.bf16.mxu0 %v2773
    %2963 = vmatpush1.bf16.msra.mxu0 %v2772
    %2964 = vmatprep.subr.bf16.mxu0 %v2781
    %2965 = vmatpush1.bf16.msra.mxu0 %v2780
    %2966 = vmatprep.subr.bf16.mxu0 %v2789
    %2967 = vmatpush1.bf16.msra.mxu0 %v2788
    %2968 = vmatprep.subr.bf16.mxu0 %v2797
    %2969 = vmatpush1.bf16.msra.mxu0 %v2796
    %2970 = vmatprep.subr.bf16.mxu0 %v2805
    %2971 = vmatpush1.bf16.msra.mxu0 %v2804
    %2972 = vmatprep.mubr.bf16.mxu0 %v2299
    %2973 = vmatmul.mubr.bf16.gmra.mrb[0].mxu0 %v2299
    %v2974 = vpop.f32.mrb[0].mxu0
    %v2975 = vadd.f32 0.0, %v2974
    %v2976 = vpop.f32.mrb[0].mxu0
    %v2977 = vadd.f32 0.0, %v2976
    %v2978 = vpop.f32.mrb[0].mxu0
    %v2979 = vpop.f32.mrb[0].mxu0
    %2980 = vdwg.mxu0
    %2981 = vmatprep.subr.bf16.mxu0 %v2687
    %2982 = vmatpush1.bf16.msra.mxu0 %v2686
    %2983 = vmatprep.subr.bf16.mxu0 %v2695
    %2984 = vmatpush1.bf16.msra.mxu0 %v2694
    %2985 = vmatprep.subr.bf16.mxu0 %v2703
    %2986 = vmatpush1.bf16.msra.mxu0 %v2702
    %2987 = vmatprep.subr.bf16.mxu0 %v2711
    %2988 = vmatpush1.bf16.msra.mxu0 %v2710
    %2989 = vmatprep.subr.bf16.mxu0 %v2719
    %2990 = vmatpush1.bf16.msra.mxu0 %v2718
    %2991 = vmatprep.subr.bf16.mxu0 %v2727
    %2992 = vmatpush1.bf16.msra.mxu0 %v2726
    %2993 = vmatprep.subr.bf16.mxu0 %v2735
    %2994 = vmatpush1.bf16.msra.mxu0 %v2734
    %2995 = vmatprep.subr.bf16.mxu0 %v2743
    %2996 = vmatpush1.bf16.msra.mxu0 %v2742
    %2997 = vmatprep.subr.bf16.mxu0 %v2751
    %2998 = vmatpush1.bf16.msra.mxu0 %v2750
    %2999 = vmatprep.subr.bf16.mxu0 %v2759
    %3000 = vmatpush1.bf16.msra.mxu0 %v2758
    %3001 = vmatprep.subr.bf16.mxu0 %v2767
    %3002 = vmatpush1.bf16.msra.mxu0 %v2766
    %3003 = vmatprep.subr.bf16.mxu0 %v2775
    %3004 = vmatpush1.bf16.msra.mxu0 %v2774
    %3005 = vmatprep.subr.bf16.mxu0 %v2783
    %3006 = vmatpush1.bf16.msra.mxu0 %v2782
    %3007 = vmatprep.subr.bf16.mxu0 %v2791
    %3008 = vmatpush1.bf16.msra.mxu0 %v2790
    %3009 = vmatprep.subr.bf16.mxu0 %v2799
    %3010 = vmatpush1.bf16.msra.mxu0 %v2798
    %3011 = vmatprep.subr.bf16.mxu0 %v2807
    %3012 = vmatpush1.bf16.msra.mxu0 %v2806
    %3013 = vmatprep.mubr.bf16.mxu0 %v2299
    %3014 = vmatmul.mubr.bf16.gmra.mrb[0].mxu0 %v2299
    %v3015 = vpop.f32.mrb[0].mxu0
    %v3016 = vadd.f32 0.0, %v3015
    %v3017 = vpop.f32.mrb[0].mxu0
    %v3018 = vadd.f32 0.0, %v3017
    %v3019 = vpop.f32.mrb[0].mxu0
    %v3020 = vpop.f32.mrb[0].mxu0
    %3021 = vdwg.mxu0
    %3022 = vmatprep.subr.bf16.mxu0 %v2689
    %3023 = vmatpush1.bf16.msra.mxu0 %v2688
    %3024 = vmatprep.subr.bf16.mxu0 %v2697
    %3025 = vmatpush1.bf16.msra.mxu0 %v2696
    %3026 = vmatprep.subr.bf16.mxu0 %v2705
    %3027 = vmatpush1.bf16.msra.mxu0 %v2704
    %3028 = vmatprep.subr.bf16.mxu0 %v2713
    %3029 = vmatpush1.bf16.msra.mxu0 %v2712
    %3030 = vmatprep.subr.bf16.mxu0 %v2721
    %3031 = vmatpush1.bf16.msra.mxu0 %v2720
    %3032 = vmatprep.subr.bf16.mxu0 %v2729
    %3033 = vmatpush1.bf16.msra.mxu0 %v2728
    %3034 = vmatprep.subr.bf16.mxu0 %v2737
    %3035 = vmatpush1.bf16.msra.mxu0 %v2736
    %3036 = vmatprep.subr.bf16.mxu0 %v2745
    %3037 = vmatpush1.bf16.msra.mxu0 %v2744
    %3038 = vmatprep.subr.bf16.mxu0 %v2753
    %3039 = vmatpush1.bf16.msra.mxu0 %v2752
    %3040 = vmatprep.subr.bf16.mxu0 %v2761
    %3041 = vmatpush1.bf16.msra.mxu0 %v2760
    %3042 = vmatprep.subr.bf16.mxu0 %v2769
    %3043 = vmatpush1.bf16.msra.mxu0 %v2768
    %3044 = vmatprep.subr.bf16.mxu0 %v2777
    %3045 = vmatpush1.bf16.msra.mxu0 %v2776
    %3046 = vmatprep.subr.bf16.mxu0 %v2785
    %3047 = vmatpush1.bf16.msra.mxu0 %v2784
    %3048 = vmatprep.subr.bf16.mxu0 %v2793
    %3049 = vmatpush1.bf16.msra.mxu0 %v2792
    %3050 = vmatprep.subr.bf16.mxu0 %v2801
    %3051 = vmatpush1.bf16.msra.mxu0 %v2800
    %3052 = vmatprep.subr.bf16.mxu0 %v2809
    %3053 = vmatpush1.bf16.msra.mxu0 %v2808
    %3054 = vmatprep.mubr.bf16.mxu0 %v2299
    %3055 = vmatmul.mubr.bf16.gmra.mrb[0].mxu0 %v2299
    %v3056 = vpop.f32.mrb[0].mxu0
    %v3057 = vadd.f32 0.0, %v3056
    %v3058 = vpop.f32.mrb[0].mxu0
    %v3059 = vadd.f32 0.0, %v3058
    %v3060 = vpop.f32.mrb[0].mxu0
    %v3061 = vpop.f32.mrb[0].mxu0
    %3062 = vdwg.mxu0
    %3063 = vmatprep.subr.bf16.mxu0 %v2691
    %3064 = vmatpush1.bf16.msra.mxu0 %v2690
    %3065 = vmatprep.subr.bf16.mxu0 %v2699
    %3066 = vmatpush1.bf16.msra.mxu0 %v2698
    %3067 = vmatprep.subr.bf16.mxu0 %v2707
    %3068 = vmatpush1.bf16.msra.mxu0 %v2706
    %3069 = vmatprep.subr.bf16.mxu0 %v2715
    %3070 = vmatpush1.bf16.msra.mxu0 %v2714
    %3071 = vmatprep.subr.bf16.mxu0 %v2723
    %3072 = vmatpush1.bf16.msra.mxu0 %v2722
    %3073 = vmatprep.subr.bf16.mxu0 %v2731
    %3074 = vmatpush1.bf16.msra.mxu0 %v2730
    %3075 = vmatprep.subr.bf16.mxu0 %v2739
    %3076 = vmatpush1.bf16.msra.mxu0 %v2738
    %3077 = vmatprep.subr.bf16.mxu0 %v2747
    %3078 = vmatpush1.bf16.msra.mxu0 %v2746
    %3079 = vmatprep.subr.bf16.mxu0 %v2755
    %3080 = vmatpush1.bf16.msra.mxu0 %v2754
    %3081 = vmatprep.subr.bf16.mxu0 %v2763
    %3082 = vmatpush1.bf16.msra.mxu0 %v2762
    %3083 = vmatprep.subr.bf16.mxu0 %v2771
    %3084 = vmatpush1.bf16.msra.mxu0 %v2770
    %3085 = vmatprep.subr.bf16.mxu0 %v2779
    %3086 = vmatpush1.bf16.msra.mxu0 %v2778
    %3087 = vmatprep.subr.bf16.mxu0 %v2787
    %3088 = vmatpush1.bf16.msra.mxu0 %v2786
    %3089 = vmatprep.subr.bf16.mxu0 %v2795
    %3090 = vmatpush1.bf16.msra.mxu0 %v2794
    %3091 = vmatprep.subr.bf16.mxu0 %v2803
    %3092 = vmatpush1.bf16.msra.mxu0 %v2802
    %3093 = vmatprep.subr.bf16.mxu0 %v2811
    %3094 = vmatpush1.bf16.msra.mxu0 %v2810
    %3095 = vmatprep.mubr.bf16.mxu0 %v2299
    %3096 = vmatmul.mubr.bf16.gmra.mrb[0].mxu0 %v2299
    %v3097 = vpop.f32.mrb[0].mxu0
    %v3098 = vadd.f32 0.0, %v3097
    %v3099 = vpop.f32.mrb[0].mxu0
    %v3100 = vadd.f32 0.0, %v3099
    %v3101 = vpop.f32.mrb[0].mxu0
    %v3102 = vpop.f32.mrb[0].mxu0
    %3103 = vdwg.mxu0
    %v3104 = vadd.f32 %v2263, %v2975
    %v3105 = vadd.f32 %v2271, %v2977
    %v3106 = vadd.f32 %v2270, %v3016
    %v3107 = vadd.f32 %v2272, %v3018
    %v3108 = vadd.f32 %v2285, %v3057
    %v3109 = vadd.f32 %v2293, %v3059
    %v3110 = vadd.f32 %v2292, %v3098
    %v3111 = vadd.f32 %v2294, %v3100
    %v3112 = vxor.u32 %v3104, 2147483648
    %v3113 = vmul.f32 %v3112, 1.442695
    %v3114 = vpow.pop %v3113
    %v3115 = vadd.f32 %v3114, 1.0
    %v3116 = vrcp.pop %v3115
    %v3117 = vmul.f32 1.0, %v3116
    %v3118 = vxor.u32 %v3105, 2147483648
    %v3119 = vmul.f32 %v3118, 1.442695
    %v3120 = vpow.pop %v3119
    %v3121 = vadd.f32 %v3120, 1.0
    %v3122 = vrcp.pop %v3121
    %v3123 = vmul.f32 1.0, %v3122
    %v3124 = vtanh.pop %v3106
    %v3125 = vxor.u32 %v3107, 2147483648
    %v3126 = vmul.f32 %v3125, 1.442695
    %v3127 = vpow.pop %v3126
    %v3128 = vadd.f32 %v3127, 1.0
    %v3129 = vrcp.pop %v3128
    %v3130 = vmul.f32 1.0, %v3129
    %v3131 = vxor.u32 %v3108, 2147483648
    %v3132 = vmul.f32 %v3131, 1.442695
    %v3133 = vpow.pop %v3132
    %v3134 = vadd.f32 %v3133, 1.0
    %v3135 = vrcp.pop %v3134
    %v3136 = vmul.f32 1.0, %v3135
    %v3137 = vxor.u32 %v3109, 2147483648
    %v3138 = vmul.f32 %v3137, 1.442695
    %v3139 = vpow.pop %v3138
    %v3140 = vadd.f32 %v3139, 1.0
    %v3141 = vrcp.pop %v3140
    %v3142 = vmul.f32 1.0, %v3141
    %v3143 = vtanh.pop %v3110
    %v3144 = vxor.u32 %v3111, 2147483648
    %v3145 = vmul.f32 %v3144, 1.442695
    %v3146 = vpow.pop %v3145
    %v3147 = vadd.f32 %v3146, 1.0
    %v3148 = vrcp.pop %v3147
    %v3149 = vmul.f32 1.0, %v3148
    %v3150 = vmul.f32 %v3123, 0.0
    %v3151 = vmul.f32 %v3117, %v3124
    %v3152 = vadd.f32 %v3150, %v3151
    %v3153 = vtanh.pop %v3152
    %v3154 = vmul.f32 %v3130, %v3153
    %v3155 = vmul.f32 %v3142, 0.0
    %v3156 = vmul.f32 %v3136, %v3143
    %v3157 = vadd.f32 %v3155, %v3156
    %v3158 = vtanh.pop %v3157
    %v3159 = vmul.f32 %v3149, %v3158
    %v3160 = vld [vmem:[%s2078] sm:$0xff]
    %v3161 = vld [vmem:[%s2078 + $0x8] sm:$0xff]
    %v3162 = vld [vmem:[%s2101] sm:$0xff]
    %v3163 = vld [vmem:[%s2101 + $0x8] sm:$0xff]
    %v3165 = vcombine.high %v3160, %v3160
    %v3167 = vunpack.c.l.s4 1983009808
    %v3168 = vunpack.c.0.s8 %v3167
    %v3169 = vlaneseq
    %v3170 = vshrl.u32 %v3169, 7
    %v3171 = vsub.s32 %v3168, %v3170
    %v3172 = vrot.slane %v3160, %v3171
    %v3174 = vunpack.c.l.s4 1983009808
    %v3175 = vunpack.c.0.s8 %v3174
    %v3176 = vlaneseq
    %v3177 = vshrl.u32 %v3176, 7
    %v3178 = vsub.s32 %v3175, %v3177
    %v3179 = vrot.slane %v3165, %v3178
    %v3180 = vcombine.high %v3172, %v3172
    %v3181 = vcombine.high %v3179, %v3179
    %v3187 = vcombine.high %v3163, %v3163
    %v3189 = vunpack.c.l.s4 1983009808
    %v3190 = vunpack.c.0.s8 %v3189
    %v3191 = vlaneseq
    %v3192 = vshrl.u32 %v3191, 7
    %v3193 = vsub.s32 %v3190, %v3192
    %v3194 = vrot.slane %v3163, %v3193
    %v3196 = vunpack.c.l.s4 1983009808
    %v3197 = vunpack.c.0.s8 %v3196
    %v3198 = vlaneseq
    %v3199 = vshrl.u32 %v3198, 7
    %v3200 = vsub.s32 %v3197, %v3199
    %v3201 = vrot.slane %v3187, %v3200
    %v3202 = vcombine.high %v3194, %v3194
    %v3203 = vcombine.high %v3201, %v3201
    %v3208 = vpack.c.bf16 %v3154, %v3154
    %v3209 = vpack.c.bf16 %v3159, %v3159
    %3210 = vmatprep.subr.bf16.mxu0 %v2685
    %3211 = vmatpush1.bf16.msra.mxu0 %v2684
    %3212 = vmatprep.subr.bf16.mxu0 %v2693
    %3213 = vmatpush1.bf16.msra.mxu0 %v2692
    %3214 = vmatprep.subr.bf16.mxu0 %v2701
    %3215 = vmatpush1.bf16.msra.mxu0 %v2700
    %3216 = vmatprep.subr.bf16.mxu0 %v2709
    %3217 = vmatpush1.bf16.msra.mxu0 %v2708
    %3218 = vmatprep.subr.bf16.mxu0 %v2717
    %3219 = vmatpush1.bf16.msra.mxu0 %v2716
    %3220 = vmatprep.subr.bf16.mxu0 %v2725
    %3221 = vmatpush1.bf16.msra.mxu0 %v2724
    %3222 = vmatprep.subr.bf16.mxu0 %v2733
    %3223 = vmatpush1.bf16.msra.mxu0 %v2732
    %3224 = vmatprep.subr.bf16.mxu0 %v2741
    %3225 = vmatpush1.bf16.msra.mxu0 %v2740
    %3226 = vmatprep.subr.bf16.mxu0 %v2749
    %3227 = vmatpush1.bf16.msra.mxu0 %v2748
    %3228 = vmatprep.subr.bf16.mxu0 %v2757
    %3229 = vmatpush1.bf16.msra.mxu0 %v2756
    %3230 = vmatprep.subr.bf16.mxu0 %v2765
    %3231 = vmatpush1.bf16.msra.mxu0 %v2764
    %3232 = vmatprep.subr.bf16.mxu0 %v2773
    %3233 = vmatpush1.bf16.msra.mxu0 %v2772
    %3234 = vmatprep.subr.bf16.mxu0 %v2781
    %3235 = vmatpush1.bf16.msra.mxu0 %v2780
    %3236 = vmatprep.subr.bf16.mxu0 %v2789
    %3237 = vmatpush1.bf16.msra.mxu0 %v2788
    %3238 = vmatprep.subr.bf16.mxu0 %v2797
    %3239 = vmatpush1.bf16.msra.mxu0 %v2796
    %3240 = vmatprep.subr.bf16.mxu0 %v2805
    %3241 = vmatpush1.bf16.msra.mxu0 %v2804
    %3242 = vmatprep.mubr.bf16.mxu0 %v3209
    %3243 = vmatmul.mubr.bf16.gmra.mrb[0].mxu0 %v3208
    %v3244 = vpop.f32.mrb[0].mxu0
    %v3245 = vadd.f32 0.0, %v3244
    %v3246 = vpop.f32.mrb[0].mxu0
    %v3247 = vadd.f32 0.0, %v3246
    %v3248 = vpop.f32.mrb[0].mxu0
    %v3249 = vpop.f32.mrb[0].mxu0
    %3250 = vdwg.mxu0
    %3251 = vmatprep.subr.bf16.mxu0 %v2687
    %3252 = vmatpush1.bf16.msra.mxu0 %v2686
    %3253 = vmatprep.subr.bf16.mxu0 %v2695
    %3254 = vmatpush1.bf16.msra.mxu0 %v2694
    %3255 = vmatprep.subr.bf16.mxu0 %v2703
    %3256 = vmatpush1.bf16.msra.mxu0 %v2702
    %3257 = vmatprep.subr.bf16.mxu0 %v2711
    %3258 = vmatpush1.bf16.msra.mxu0 %v2710
    %3259 = vmatprep.subr.bf16.mxu0 %v2719
    %3260 = vmatpush1.bf16.msra.mxu0 %v2718
    %3261 = vmatprep.subr.bf16.mxu0 %v2727
    %3262 = vmatpush1.bf16.msra.mxu0 %v2726
    %3263 = vmatprep.subr.bf16.mxu0 %v2735
    %3264 = vmatpush1.bf16.msra.mxu0 %v2734
    %3265 = vmatprep.subr.bf16.mxu0 %v2743
    %3266 = vmatpush1.bf16.msra.mxu0 %v2742
    %3267 = vmatprep.subr.bf16.mxu0 %v2751
    %3268 = vmatpush1.bf16.msra.mxu0 %v2750
    %3269 = vmatprep.subr.bf16.mxu0 %v2759
    %3270 = vmatpush1.bf16.msra.mxu0 %v2758
    %3271 = vmatprep.subr.bf16.mxu0 %v2767
    %3272 = vmatpush1.bf16.msra.mxu0 %v2766
    %3273 = vmatprep.subr.bf16.mxu0 %v2775
    %3274 = vmatpush1.bf16.msra.mxu0 %v2774
    %3275 = vmatprep.subr.bf16.mxu0 %v2783
    %3276 = vmatpush1.bf16.msra.mxu0 %v2782
    %3277 = vmatprep.subr.bf16.mxu0 %v2791
    %3278 = vmatpush1.bf16.msra.mxu0 %v2790
    %3279 = vmatprep.subr.bf16.mxu0 %v2799
    %3280 = vmatpush1.bf16.msra.mxu0 %v2798
    %3281 = vmatprep.subr.bf16.mxu0 %v2807
    %3282 = vmatpush1.bf16.msra.mxu0 %v2806
    %3283 = vmatprep.mubr.bf16.mxu0 %v3209
    %3284 = vmatmul.mubr.bf16.gmra.mrb[0].mxu0 %v3208
    %v3285 = vpop.f32.mrb[0].mxu0
    %v3286 = vadd.f32 0.0, %v3285
    %v3287 = vpop.f32.mrb[0].mxu0
    %v3288 = vadd.f32 0.0, %v3287
    %v3289 = vpop.f32.mrb[0].mxu0
    %v3290 = vpop.f32.mrb[0].mxu0
    %3291 = vdwg.mxu0
    %3292 = vmatprep.subr.bf16.mxu0 %v2689
    %3293 = vmatpush1.bf16.msra.mxu0 %v2688
    %3294 = vmatprep.subr.bf16.mxu0 %v2697
    %3295 = vmatpush1.bf16.msra.mxu0 %v2696
    %3296 = vmatprep.subr.bf16.mxu0 %v2705
    %3297 = vmatpush1.bf16.msra.mxu0 %v2704
    %3298 = vmatprep.subr.bf16.mxu0 %v2713
    %3299 = vmatpush1.bf16.msra.mxu0 %v2712
    %3300 = vmatprep.subr.bf16.mxu0 %v2721
    %3301 = vmatpush1.bf16.msra.mxu0 %v2720
    %3302 = vmatprep.subr.bf16.mxu0 %v2729
    %3303 = vmatpush1.bf16.msra.mxu0 %v2728
    %3304 = vmatprep.subr.bf16.mxu0 %v2737
    %3305 = vmatpush1.bf16.msra.mxu0 %v2736
    %3306 = vmatprep.subr.bf16.mxu0 %v2745
    %3307 = vmatpush1.bf16.msra.mxu0 %v2744
    %3308 = vmatprep.subr.bf16.mxu0 %v2753
    %3309 = vmatpush1.bf16.msra.mxu0 %v2752
    %3310 = vmatprep.subr.bf16.mxu0 %v2761
    %3311 = vmatpush1.bf16.msra.mxu0 %v2760
    %3312 = vmatprep.subr.bf16.mxu0 %v2769
    %3313 = vmatpush1.bf16.msra.mxu0 %v2768
    %3314 = vmatprep.subr.bf16.mxu0 %v2777
    %3315 = vmatpush1.bf16.msra.mxu0 %v2776
    %3316 = vmatprep.subr.bf16.mxu0 %v2785
    %3317 = vmatpush1.bf16.msra.mxu0 %v2784
    %3318 = vmatprep.subr.bf16.mxu0 %v2793
    %3319 = vmatpush1.bf16.msra.mxu0 %v2792
    %3320 = vmatprep.subr.bf16.mxu0 %v2801
    %3321 = vmatpush1.bf16.msra.mxu0 %v2800
    %3322 = vmatprep.subr.bf16.mxu0 %v2809
    %3323 = vmatpush1.bf16.msra.mxu0 %v2808
    %3324 = vmatprep.mubr.bf16.mxu0 %v3209
    %3325 = vmatmul.mubr.bf16.gmra.mrb[0].mxu0 %v3208
    %v3326 = vpop.f32.mrb[0].mxu0
    %v3327 = vadd.f32 0.0, %v3326
    %v3328 = vpop.f32.mrb[0].mxu0
    %v3329 = vadd.f32 0.0, %v3328
    %v3330 = vpop.f32.mrb[0].mxu0
    %v3331 = vpop.f32.mrb[0].mxu0
    %3332 = vdwg.mxu0
    %3333 = vmatprep.subr.bf16.mxu0 %v2691
    %3334 = vmatpush1.bf16.msra.mxu0 %v2690
    %3335 = vmatprep.subr.bf16.mxu0 %v2699
    %3336 = vmatpush1.bf16.msra.mxu0 %v2698
    %3337 = vmatprep.subr.bf16.mxu0 %v2707
    %3338 = vmatpush1.bf16.msra.mxu0 %v2706
    %3339 = vmatprep.subr.bf16.mxu0 %v2715
    %3340 = vmatpush1.bf16.msra.mxu0 %v2714
    %3341 = vmatprep.subr.bf16.mxu0 %v2723
    %3342 = vmatpush1.bf16.msra.mxu0 %v2722
    %3343 = vmatprep.subr.bf16.mxu0 %v2731
    %3344 = vmatpush1.bf16.msra.mxu0 %v2730
    %3345 = vmatprep.subr.bf16.mxu0 %v2739
    %3346 = vmatpush1.bf16.msra.mxu0 %v2738
    %3347 = vmatprep.subr.bf16.mxu0 %v2747
    %3348 = vmatpush1.bf16.msra.mxu0 %v2746
    %3349 = vmatprep.subr.bf16.mxu0 %v2755
    %3350 = vmatpush1.bf16.msra.mxu0 %v2754
    %3351 = vmatprep.subr.bf16.mxu0 %v2763
    %3352 = vmatpush1.bf16.msra.mxu0 %v2762
    %3353 = vmatprep.subr.bf16.mxu0 %v2771
    %3354 = vmatpush1.bf16.msra.mxu0 %v2770
    %3355 = vmatprep.subr.bf16.mxu0 %v2779
    %3356 = vmatpush1.bf16.msra.mxu0 %v2778
    %3357 = vmatprep.subr.bf16.mxu0 %v2787
    %3358 = vmatpush1.bf16.msra.mxu0 %v2786
    %3359 = vmatprep.subr.bf16.mxu0 %v2795
    %3360 = vmatpush1.bf16.msra.mxu0 %v2794
    %3361 = vmatprep.subr.bf16.mxu0 %v2803
    %3362 = vmatpush1.bf16.msra.mxu0 %v2802
    %3363 = vmatprep.subr.bf16.mxu0 %v2811
    %3364 = vmatpush1.bf16.msra.mxu0 %v2810
    %3365 = vmatprep.mubr.bf16.mxu0 %v3209
    %3366 = vmatmul.mubr.bf16.gmra.mrb[0].mxu0 %v3208
    %v3367 = vpop.f32.mrb[0].mxu0
    %v3368 = vadd.f32 0.0, %v3367
    %v3369 = vpop.f32.mrb[0].mxu0
    %v3370 = vadd.f32 0.0, %v3369
    %v3371 = vpop.f32.mrb[0].mxu0
    %v3372 = vpop.f32.mrb[0].mxu0
    %3373 = vdwg.mxu0
    %v3374 = vadd.f32 %v3172, %v3245
    %v3375 = vadd.f32 %v3180, %v3247
    %v3376 = vadd.f32 %v3179, %v3286
    %v3377 = vadd.f32 %v3181, %v3288
    %v3378 = vadd.f32 %v3194, %v3327
    %v3379 = vadd.f32 %v3202, %v3329
    %v3380 = vadd.f32 %v3201, %v3368
    %v3381 = vadd.f32 %v3203, %v3370
    %v3382 = vxor.u32 %v3374, 2147483648
    %v3383 = vmul.f32 %v3382, 1.442695
    %v3384 = vpow.pop %v3383
    %v3385 = vadd.f32 %v3384, 1.0
    %v3386 = vrcp.pop %v3385
    %v3387 = vmul.f32 1.0, %v3386
    %v3388 = vxor.u32 %v3375, 2147483648
    %v3389 = vmul.f32 %v3388, 1.442695
    %v3390 = vpow.pop %v3389
    %v3391 = vadd.f32 %v3390, 1.0
    %v3392 = vrcp.pop %v3391
    %v3393 = vmul.f32 1.0, %v3392
    %v3394 = vtanh.pop %v3376
    %v3395 = vxor.u32 %v3377, 2147483648
    %v3396 = vmul.f32 %v3395, 1.442695
    %v3397 = vpow.pop %v3396
    %v3398 = vadd.f32 %v3397, 1.0
    %v3399 = vrcp.pop %v3398
    %v3400 = vmul.f32 1.0, %v3399
    %v3401 = vxor.u32 %v3378, 2147483648
    %v3402 = vmul.f32 %v3401, 1.442695
    %v3403 = vpow.pop %v3402
    %v3404 = vadd.f32 %v3403, 1.0
    %v3405 = vrcp.pop %v3404
    %v3406 = vmul.f32 1.0, %v3405
    %v3407 = vxor.u32 %v3379, 2147483648
    %v3408 = vmul.f32 %v3407, 1.442695
    %v3409 = vpow.pop %v3408
    %v3410 = vadd.f32 %v3409, 1.0
    %v3411 = vrcp.pop %v3410
    %v3412 = vmul.f32 1.0, %v3411
    %v3413 = vtanh.pop %v3380
    %v3414 = vxor.u32 %v3381, 2147483648
    %v3415 = vmul.f32 %v3414, 1.442695
    %v3416 = vpow.pop %v3415
    %v3417 = vadd.f32 %v3416, 1.0
    %v3418 = vrcp.pop %v3417
    %v3419 = vmul.f32 1.0, %v3418
    %v3420 = vmul.f32 %v3393, %v3152
    %v3421 = vmul.f32 %v3387, %v3394
    %v3422 = vadd.f32 %v3420, %v3421
    %v3423 = vtanh.pop %v3422
    %v3424 = vmul.f32 %v3400, %v3423
    %v3425 = vmul.f32 %v3412, %v3157
    %v3426 = vmul.f32 %v3406, %v3413
    %v3427 = vadd.f32 %v3425, %v3426
    %v3428 = vtanh.pop %v3427
    %v3429 = vmul.f32 %v3419, %v3428
    %v3431 = vcombine.high %v3162, %v3162
    %v3433 = vunpack.c.l.s4 1983009808
    %v3434 = vunpack.c.0.s8 %v3433
    %v3435 = vlaneseq
    %v3436 = vshrl.u32 %v3435, 7
    %v3437 = vsub.s32 %v3434, %v3436
    %v3438 = vrot.slane %v3162, %v3437
    %v3440 = vunpack.c.l.s4 1983009808
    %v3441 = vunpack.c.0.s8 %v3440
    %v3442 = vlaneseq
    %v3443 = vshrl.u32 %v3442, 7
    %v3444 = vsub.s32 %v3441, %v3443
    %v3445 = vrot.slane %v3431, %v3444
    %v3446 = vcombine.high %v3438, %v3438
    %v3447 = vcombine.high %v3445, %v3445
    %v3453 = vcombine.high %v3161, %v3161
    %v3455 = vunpack.c.l.s4 1983009808
    %v3456 = vunpack.c.0.s8 %v3455
    %v3457 = vlaneseq
    %v3458 = vshrl.u32 %v3457, 7
    %v3459 = vsub.s32 %v3456, %v3458
    %v3460 = vrot.slane %v3161, %v3459
    %v3462 = vunpack.c.l.s4 1983009808
    %v3463 = vunpack.c.0.s8 %v3462
    %v3464 = vlaneseq
    %v3465 = vshrl.u32 %v3464, 7
    %v3466 = vsub.s32 %v3463, %v3465
    %v3467 = vrot.slane %v3453, %v3466
    %v3468 = vcombine.high %v3460, %v3460
    %v3469 = vcombine.high %v3467, %v3467
    %v3474 = vpack.c.bf16 %v3424, %v3424
    %v3475 = vpack.c.bf16 %v3429, %v3429
    %3476 = vmatprep.subr.bf16.mxu0 %v2685
    %3477 = vmatpush1.bf16.msra.mxu0 %v2684
    %3478 = vmatprep.subr.bf16.mxu0 %v2693
    %3479 = vmatpush1.bf16.msra.mxu0 %v2692
    %3480 = vmatprep.subr.bf16.mxu0 %v2701
    %3481 = vmatpush1.bf16.msra.mxu0 %v2700
    %3482 = vmatprep.subr.bf16.mxu0 %v2709
    %3483 = vmatpush1.bf16.msra.mxu0 %v2708
    %3484 = vmatprep.subr.bf16.mxu0 %v2717
    %3485 = vmatpush1.bf16.msra.mxu0 %v2716
    %3486 = vmatprep.subr.bf16.mxu0 %v2725
    %3487 = vmatpush1.bf16.msra.mxu0 %v2724
    %3488 = vmatprep.subr.bf16.mxu0 %v2733
    %3489 = vmatpush1.bf16.msra.mxu0 %v2732
    %3490 = vmatprep.subr.bf16.mxu0 %v2741
    %3491 = vmatpush1.bf16.msra.mxu0 %v2740
    %3492 = vmatprep.subr.bf16.mxu0 %v2749
    %3493 = vmatpush1.bf16.msra.mxu0 %v2748
    %3494 = vmatprep.subr.bf16.mxu0 %v2757
    %3495 = vmatpush1.bf16.msra.mxu0 %v2756
    %3496 = vmatprep.subr.bf16.mxu0 %v2765
    %3497 = vmatpush1.bf16.msra.mxu0 %v2764
    %3498 = vmatprep.subr.bf16.mxu0 %v2773
    %3499 = vmatpush1.bf16.msra.mxu0 %v2772
    %3500 = vmatprep.subr.bf16.mxu0 %v2781
    %3501 = vmatpush1.bf16.msra.mxu0 %v2780
    %3502 = vmatprep.subr.bf16.mxu0 %v2789
    %3503 = vmatpush1.bf16.msra.mxu0 %v2788
    %3504 = vmatprep.subr.bf16.mxu0 %v2797
    %3505 = vmatpush1.bf16.msra.mxu0 %v2796
    %3506 = vmatprep.subr.bf16.mxu0 %v2805
    %3507 = vmatpush1.bf16.msra.mxu0 %v2804
    %3508 = vmatprep.mubr.bf16.mxu0 %v3475
    %3509 = vmatmul.mubr.bf16.gmra.mrb[0].mxu0 %v3474
    %v3510 = vpop.f32.mrb[0].mxu0
    %v3511 = vadd.f32 0.0, %v3510
    %v3512 = vpop.f32.mrb[0].mxu0
    %v3513 = vadd.f32 0.0, %v3512
    %v3514 = vpop.f32.mrb[0].mxu0
    %v3515 = vpop.f32.mrb[0].mxu0
    %3516 = vdwg.mxu0
    %3517 = vmatprep.subr.bf16.mxu0 %v2687
    %3518 = vmatpush1.bf16.msra.mxu0 %v2686
    %3519 = vmatprep.subr.bf16.mxu0 %v2695
    %3520 = vmatpush1.bf16.msra.mxu0 %v2694
    %3521 = vmatprep.subr.bf16.mxu0 %v2703
    %3522 = vmatpush1.bf16.msra.mxu0 %v2702
    %3523 = vmatprep.subr.bf16.mxu0 %v2711
    %3524 = vmatpush1.bf16.msra.mxu0 %v2710
    %3525 = vmatprep.subr.bf16.mxu0 %v2719
    %3526 = vmatpush1.bf16.msra.mxu0 %v2718
    %3527 = vmatprep.subr.bf16.mxu0 %v2727
    %3528 = vmatpush1.bf16.msra.mxu0 %v2726
    %3529 = vmatprep.subr.bf16.mxu0 %v2735
    %3530 = vmatpush1.bf16.msra.mxu0 %v2734
    %3531 = vmatprep.subr.bf16.mxu0 %v2743
    %3532 = vmatpush1.bf16.msra.mxu0 %v2742
    %3533 = vmatprep.subr.bf16.mxu0 %v2751
    %3534 = vmatpush1.bf16.msra.mxu0 %v2750
    %3535 = vmatprep.subr.bf16.mxu0 %v2759
    %3536 = vmatpush1.bf16.msra.mxu0 %v2758
    %3537 = vmatprep.subr.bf16.mxu0 %v2767
    %3538 = vmatpush1.bf16.msra.mxu0 %v2766
    %3539 = vmatprep.subr.bf16.mxu0 %v2775
    %3540 = vmatpush1.bf16.msra.mxu0 %v2774
    %3541 = vmatprep.subr.bf16.mxu0 %v2783
    %3542 = vmatpush1.bf16.msra.mxu0 %v2782
    %3543 = vmatprep.subr.bf16.mxu0 %v2791
    %3544 = vmatpush1.bf16.msra.mxu0 %v2790
    %3545 = vmatprep.subr.bf16.mxu0 %v2799
    %3546 = vmatpush1.bf16.msra.mxu0 %v2798
    %3547 = vmatprep.subr.bf16.mxu0 %v2807
    %3548 = vmatpush1.bf16.msra.mxu0 %v2806
    %3549 = vmatprep.mubr.bf16.mxu0 %v3475
    %3550 = vmatmul.mubr.bf16.gmra.mrb[0].mxu0 %v3474
    %v3551 = vpop.f32.mrb[0].mxu0
    %v3552 = vadd.f32 0.0, %v3551
    %v3553 = vpop.f32.mrb[0].mxu0
    %v3554 = vadd.f32 0.0, %v3553
    %v3555 = vpop.f32.mrb[0].mxu0
    %v3556 = vpop.f32.mrb[0].mxu0
    %3557 = vdwg.mxu0
    %3558 = vmatprep.subr.bf16.mxu0 %v2689
    %3559 = vmatpush1.bf16.msra.mxu0 %v2688
    %3560 = vmatprep.subr.bf16.mxu0 %v2697
    %3561 = vmatpush1.bf16.msra.mxu0 %v2696
    %3562 = vmatprep.subr.bf16.mxu0 %v2705
    %3563 = vmatpush1.bf16.msra.mxu0 %v2704
    %3564 = vmatprep.subr.bf16.mxu0 %v2713
    %3565 = vmatpush1.bf16.msra.mxu0 %v2712
    %3566 = vmatprep.subr.bf16.mxu0 %v2721
    %3567 = vmatpush1.bf16.msra.mxu0 %v2720
    %3568 = vmatprep.subr.bf16.mxu0 %v2729
    %3569 = vmatpush1.bf16.msra.mxu0 %v2728
    %3570 = vmatprep.subr.bf16.mxu0 %v2737
    %3571 = vmatpush1.bf16.msra.mxu0 %v2736
    %3572 = vmatprep.subr.bf16.mxu0 %v2745
    %3573 = vmatpush1.bf16.msra.mxu0 %v2744
    %3574 = vmatprep.subr.bf16.mxu0 %v2753
    %3575 = vmatpush1.bf16.msra.mxu0 %v2752
    %3576 = vmatprep.subr.bf16.mxu0 %v2761
    %3577 = vmatpush1.bf16.msra.mxu0 %v2760
    %3578 = vmatprep.subr.bf16.mxu0 %v2769
    %3579 = vmatpush1.bf16.msra.mxu0 %v2768
    %3580 = vmatprep.subr.bf16.mxu0 %v2777
    %3581 = vmatpush1.bf16.msra.mxu0 %v2776
    %3582 = vmatprep.subr.bf16.mxu0 %v2785
    %3583 = vmatpush1.bf16.msra.mxu0 %v2784
    %3584 = vmatprep.subr.bf16.mxu0 %v2793
    %3585 = vmatpush1.bf16.msra.mxu0 %v2792
    %3586 = vmatprep.subr.bf16.mxu0 %v2801
    %3587 = vmatpush1.bf16.msra.mxu0 %v2800
    %3588 = vmatprep.subr.bf16.mxu0 %v2809
    %3589 = vmatpush1.bf16.msra.mxu0 %v2808
    %3590 = vmatprep.mubr.bf16.mxu0 %v3475
    %3591 = vmatmul.mubr.bf16.gmra.mrb[0].mxu0 %v3474
    %v3592 = vpop.f32.mrb[0].mxu0
    %v3593 = vadd.f32 0.0, %v3592
    %v3594 = vpop.f32.mrb[0].mxu0
    %v3595 = vadd.f32 0.0, %v3594
    %v3596 = vpop.f32.mrb[0].mxu0
    %v3597 = vpop.f32.mrb[0].mxu0
    %3598 = vdwg.mxu0
    %3599 = vmatprep.subr.bf16.mxu0 %v2691
    %3600 = vmatpush1.bf16.msra.mxu0 %v2690
    %3601 = vmatprep.subr.bf16.mxu0 %v2699
    %3602 = vmatpush1.bf16.msra.mxu0 %v2698
    %3603 = vmatprep.subr.bf16.mxu0 %v2707
    %3604 = vmatpush1.bf16.msra.mxu0 %v2706
    %3605 = vmatprep.subr.bf16.mxu0 %v2715
    %3606 = vmatpush1.bf16.msra.mxu0 %v2714
    %3607 = vmatprep.subr.bf16.mxu0 %v2723
    %3608 = vmatpush1.bf16.msra.mxu0 %v2722
    %3609 = vmatprep.subr.bf16.mxu0 %v2731
    %3610 = vmatpush1.bf16.msra.mxu0 %v2730
    %3611 = vmatprep.subr.bf16.mxu0 %v2739
    %3612 = vmatpush1.bf16.msra.mxu0 %v2738
    %3613 = vmatprep.subr.bf16.mxu0 %v2747
    %3614 = vmatpush1.bf16.msra.mxu0 %v2746
    %3615 = vmatprep.subr.bf16.mxu0 %v2755
    %3616 = vmatpush1.bf16.msra.mxu0 %v2754
    %3617 = vmatprep.subr.bf16.mxu0 %v2763
    %3618 = vmatpush1.bf16.msra.mxu0 %v2762
    %3619 = vmatprep.subr.bf16.mxu0 %v2771
    %3620 = vmatpush1.bf16.msra.mxu0 %v2770
    %3621 = vmatprep.subr.bf16.mxu0 %v2779
    %3622 = vmatpush1.bf16.msra.mxu0 %v2778
    %3623 = vmatprep.subr.bf16.mxu0 %v2787
    %3624 = vmatpush1.bf16.msra.mxu0 %v2786
    %3625 = vmatprep.subr.bf16.mxu0 %v2795
    %3626 = vmatpush1.bf16.msra.mxu0 %v2794
    %3627 = vmatprep.subr.bf16.mxu0 %v2803
    %3628 = vmatpush1.bf16.msra.mxu0 %v2802
    %3629 = vmatprep.subr.bf16.mxu0 %v2811
    %3630 = vmatpush1.bf16.msra.mxu0 %v2810
    %3631 = vmatprep.mubr.bf16.mxu0 %v3475
    %3632 = vmatmul.mubr.bf16.gmra.mrb[0].mxu0 %v3474
    %v3633 = vpop.f32.mrb[0].mxu0
    %v3634 = vadd.f32 0.0, %v3633
    %v3635 = vpop.f32.mrb[0].mxu0
    %v3636 = vadd.f32 0.0, %v3635
    %v3637 = vpop.f32.mrb[0].mxu0
    %v3638 = vpop.f32.mrb[0].mxu0
    %3639 = vdwg.mxu0
    %v3640 = vadd.f32 %v3438, %v3511
    %v3641 = vadd.f32 %v3446, %v3513
    %v3642 = vadd.f32 %v3445, %v3552
    %v3643 = vadd.f32 %v3447, %v3554
    %v3644 = vadd.f32 %v3460, %v3593
    %v3645 = vadd.f32 %v3468, %v3595
    %v3646 = vadd.f32 %v3467, %v3634
    %v3647 = vadd.f32 %v3469, %v3636
    %v3648 = vxor.u32 %v3640, 2147483648
    %v3649 = vmul.f32 %v3648, 1.442695
    %v3650 = vpow.pop %v3649
    %v3651 = vadd.f32 %v3650, 1.0
    %v3652 = vrcp.pop %v3651
    %v3653 = vmul.f32 1.0, %v3652
    %v3654 = vxor.u32 %v3641, 2147483648
    %v3655 = vmul.f32 %v3654, 1.442695
    %v3656 = vpow.pop %v3655
    %v3657 = vadd.f32 %v3656, 1.0
    %v3658 = vrcp.pop %v3657
    %v3659 = vmul.f32 1.0, %v3658
    %v3660 = vtanh.pop %v3642
    %v3661 = vxor.u32 %v3643, 2147483648
    %v3662 = vmul.f32 %v3661, 1.442695
    %v3663 = vpow.pop %v3662
    %v3664 = vadd.f32 %v3663, 1.0
    %v3665 = vrcp.pop %v3664
    %v3666 = vmul.f32 1.0, %v3665
    %v3667 = vxor.u32 %v3644, 2147483648
    %v3668 = vmul.f32 %v3667, 1.442695
    %v3669 = vpow.pop %v3668
    %v3670 = vadd.f32 %v3669, 1.0
    %v3671 = vrcp.pop %v3670
    %v3672 = vmul.f32 1.0, %v3671
    %v3673 = vxor.u32 %v3645, 2147483648
    %v3674 = vmul.f32 %v3673, 1.442695
    %v3675 = vpow.pop %v3674
    %v3676 = vadd.f32 %v3675, 1.0
    %v3677 = vrcp.pop %v3676
    %v3678 = vmul.f32 1.0, %v3677
    %v3679 = vtanh.pop %v3646
    %v3680 = vxor.u32 %v3647, 2147483648
    %v3681 = vmul.f32 %v3680, 1.442695
    %v3682 = vpow.pop %v3681
    %v3683 = vadd.f32 %v3682, 1.0
    %v3684 = vrcp.pop %v3683
    %v3685 = vmul.f32 1.0, %v3684
    %v3686 = vmul.f32 %v3659, %v3422
    %v3687 = vmul.f32 %v3653, %v3660
    %v3688 = vadd.f32 %v3686, %v3687
    %v3689 = vtanh.pop %v3688
    %v3690 = vmul.f32 %v3666, %v3689
    %v3691 = vmul.f32 %v3678, %v3427
    %v3692 = vmul.f32 %v3672, %v3679
    %v3693 = vadd.f32 %v3691, %v3692
    %v3694 = vtanh.pop %v3693
    %v3695 = vmul.f32 %v3685, %v3694
    %v3697 = vcombine.high %v2253, %v2253
    %v3699 = vunpack.c.l.s4 1983009808
    %v3700 = vunpack.c.0.s8 %v3699
    %v3701 = vlaneseq
    %v3702 = vshrl.u32 %v3701, 7
    %v3703 = vsub.s32 %v3700, %v3702
    %v3704 = vrot.slane %v2253, %v3703
    %v3706 = vunpack.c.l.s4 1983009808
    %v3707 = vunpack.c.0.s8 %v3706
    %v3708 = vlaneseq
    %v3709 = vshrl.u32 %v3708, 7
    %v3710 = vsub.s32 %v3707, %v3709
    %v3711 = vrot.slane %v3697, %v3710
    %v3712 = vcombine.high %v3704, %v3704
    %v3713 = vcombine.high %v3711, %v3711
    %v3719 = vcombine.high %v2252, %v2252
    %v3721 = vunpack.c.l.s4 1983009808
    %v3722 = vunpack.c.0.s8 %v3721
    %v3723 = vlaneseq
    %v3724 = vshrl.u32 %v3723, 7
    %v3725 = vsub.s32 %v3722, %v3724
    %v3726 = vrot.slane %v2252, %v3725
    %v3728 = vunpack.c.l.s4 1983009808
    %v3729 = vunpack.c.0.s8 %v3728
    %v3730 = vlaneseq
    %v3731 = vshrl.u32 %v3730, 7
    %v3732 = vsub.s32 %v3729, %v3731
    %v3733 = vrot.slane %v3719, %v3732
    %v3734 = vcombine.high %v3726, %v3726
    %v3735 = vcombine.high %v3733, %v3733
    %v3740 = vpack.c.bf16 %v3690, %v3690
    %v3741 = vpack.c.bf16 %v3695, %v3695
    %3742 = vmatprep.subr.bf16.mxu0 %v2685
    %3743 = vmatpush1.bf16.msra.mxu0 %v2684
    %3744 = vmatprep.subr.bf16.mxu0 %v2693
    %3745 = vmatpush1.bf16.msra.mxu0 %v2692
    %3746 = vmatprep.subr.bf16.mxu0 %v2701
    %3747 = vmatpush1.bf16.msra.mxu0 %v2700
    %3748 = vmatprep.subr.bf16.mxu0 %v2709
    %3749 = vmatpush1.bf16.msra.mxu0 %v2708
    %3750 = vmatprep.subr.bf16.mxu0 %v2717
    %3751 = vmatpush1.bf16.msra.mxu0 %v2716
    %3752 = vmatprep.subr.bf16.mxu0 %v2725
    %3753 = vmatpush1.bf16.msra.mxu0 %v2724
    %3754 = vmatprep.subr.bf16.mxu0 %v2733
    %3755 = vmatpush1.bf16.msra.mxu0 %v2732
    %3756 = vmatprep.subr.bf16.mxu0 %v2741
    %3757 = vmatpush1.bf16.msra.mxu0 %v2740
    %3758 = vmatprep.subr.bf16.mxu0 %v2749
    %3759 = vmatpush1.bf16.msra.mxu0 %v2748
    %3760 = vmatprep.subr.bf16.mxu0 %v2757
    %3761 = vmatpush1.bf16.msra.mxu0 %v2756
    %3762 = vmatprep.subr.bf16.mxu0 %v2765
    %3763 = vmatpush1.bf16.msra.mxu0 %v2764
    %3764 = vmatprep.subr.bf16.mxu0 %v2773
    %3765 = vmatpush1.bf16.msra.mxu0 %v2772
    %3766 = vmatprep.subr.bf16.mxu0 %v2781
    %3767 = vmatpush1.bf16.msra.mxu0 %v2780
    %3768 = vmatprep.subr.bf16.mxu0 %v2789
    %3769 = vmatpush1.bf16.msra.mxu0 %v2788
    %3770 = vmatprep.subr.bf16.mxu0 %v2797
    %3771 = vmatpush1.bf16.msra.mxu0 %v2796
    %3772 = vmatprep.subr.bf16.mxu0 %v2805
    %3773 = vmatpush1.bf16.msra.mxu0 %v2804
    %3774 = vmatprep.mubr.bf16.mxu0 %v3741
    %3775 = vmatmul.mubr.bf16.gmra.mrb[0].mxu0 %v3740
    %v3776 = vpop.f32.mrb[0].mxu0
    %v3777 = vadd.f32 0.0, %v3776
    %v3778 = vpop.f32.mrb[0].mxu0
    %v3779 = vadd.f32 0.0, %v3778
    %v3780 = vpop.f32.mrb[0].mxu0
    %v3781 = vpop.f32.mrb[0].mxu0
    %3782 = vdwg.mxu0
    %3783 = vmatprep.subr.bf16.mxu0 %v2687
    %3784 = vmatpush1.bf16.msra.mxu0 %v2686
    %3785 = vmatprep.subr.bf16.mxu0 %v2695
    %3786 = vmatpush1.bf16.msra.mxu0 %v2694
    %3787 = vmatprep.subr.bf16.mxu0 %v2703
    %3788 = vmatpush1.bf16.msra.mxu0 %v2702
    %3789 = vmatprep.subr.bf16.mxu0 %v2711
    %3790 = vmatpush1.bf16.msra.mxu0 %v2710
    %3791 = vmatprep.subr.bf16.mxu0 %v2719
    %3792 = vmatpush1.bf16.msra.mxu0 %v2718
    %3793 = vmatprep.subr.bf16.mxu0 %v2727
    %3794 = vmatpush1.bf16.msra.mxu0 %v2726
    %3795 = vmatprep.subr.bf16.mxu0 %v2735
    %3796 = vmatpush1.bf16.msra.mxu0 %v2734
    %3797 = vmatprep.subr.bf16.mxu0 %v2743
    %3798 = vmatpush1.bf16.msra.mxu0 %v2742
    %3799 = vmatprep.subr.bf16.mxu0 %v2751
    %3800 = vmatpush1.bf16.msra.mxu0 %v2750
    %3801 = vmatprep.subr.bf16.mxu0 %v2759
    %3802 = vmatpush1.bf16.msra.mxu0 %v2758
    %3803 = vmatprep.subr.bf16.mxu0 %v2767
    %3804 = vmatpush1.bf16.msra.mxu0 %v2766
    %3805 = vmatprep.subr.bf16.mxu0 %v2775
    %3806 = vmatpush1.bf16.msra.mxu0 %v2774
    %3807 = vmatprep.subr.bf16.mxu0 %v2783
    %3808 = vmatpush1.bf16.msra.mxu0 %v2782
    %3809 = vmatprep.subr.bf16.mxu0 %v2791
    %3810 = vmatpush1.bf16.msra.mxu0 %v2790
    %3811 = vmatprep.subr.bf16.mxu0 %v2799
    %3812 = vmatpush1.bf16.msra.mxu0 %v2798
    %3813 = vmatprep.subr.bf16.mxu0 %v2807
    %3814 = vmatpush1.bf16.msra.mxu0 %v2806
    %3815 = vmatprep.mubr.bf16.mxu0 %v3741
    %3816 = vmatmul.mubr.bf16.gmra.mrb[0].mxu0 %v3740
    %v3817 = vpop.f32.mrb[0].mxu0
    %v3818 = vadd.f32 0.0, %v3817
    %v3819 = vpop.f32.mrb[0].mxu0
    %v3820 = vadd.f32 0.0, %v3819
    %v3821 = vpop.f32.mrb[0].mxu0
    %v3822 = vpop.f32.mrb[0].mxu0
    %3823 = vdwg.mxu0
    %3824 = vmatprep.subr.bf16.mxu0 %v2689
    %3825 = vmatpush1.bf16.msra.mxu0 %v2688
    %3826 = vmatprep.subr.bf16.mxu0 %v2697
    %3827 = vmatpush1.bf16.msra.mxu0 %v2696
    %3828 = vmatprep.subr.bf16.mxu0 %v2705
    %3829 = vmatpush1.bf16.msra.mxu0 %v2704
    %3830 = vmatprep.subr.bf16.mxu0 %v2713
    %3831 = vmatpush1.bf16.msra.mxu0 %v2712
    %3832 = vmatprep.subr.bf16.mxu0 %v2721
    %3833 = vmatpush1.bf16.msra.mxu0 %v2720
    %3834 = vmatprep.subr.bf16.mxu0 %v2729
    %3835 = vmatpush1.bf16.msra.mxu0 %v2728
    %3836 = vmatprep.subr.bf16.mxu0 %v2737
    %3837 = vmatpush1.bf16.msra.mxu0 %v2736
    %3838 = vmatprep.subr.bf16.mxu0 %v2745
    %3839 = vmatpush1.bf16.msra.mxu0 %v2744
    %3840 = vmatprep.subr.bf16.mxu0 %v2753
    %3841 = vmatpush1.bf16.msra.mxu0 %v2752
    %3842 = vmatprep.subr.bf16.mxu0 %v2761
    %3843 = vmatpush1.bf16.msra.mxu0 %v2760
    %3844 = vmatprep.subr.bf16.mxu0 %v2769
    %3845 = vmatpush1.bf16.msra.mxu0 %v2768
    %3846 = vmatprep.subr.bf16.mxu0 %v2777
    %3847 = vmatpush1.bf16.msra.mxu0 %v2776
    %3848 = vmatprep.subr.bf16.mxu0 %v2785
    %3849 = vmatpush1.bf16.msra.mxu0 %v2784
    %3850 = vmatprep.subr.bf16.mxu0 %v2793
    %3851 = vmatpush1.bf16.msra.mxu0 %v2792
    %3852 = vmatprep.subr.bf16.mxu0 %v2801
    %3853 = vmatpush1.bf16.msra.mxu0 %v2800
    %3854 = vmatprep.subr.bf16.mxu0 %v2809
    %3855 = vmatpush1.bf16.msra.mxu0 %v2808
    %3856 = vmatprep.mubr.bf16.mxu0 %v3741
    %3857 = vmatmul.mubr.bf16.gmra.mrb[0].mxu0 %v3740
    %v3858 = vpop.f32.mrb[0].mxu0
    %v3859 = vadd.f32 0.0, %v3858
    %v3860 = vpop.f32.mrb[0].mxu0
    %v3861 = vadd.f32 0.0, %v3860
    %v3862 = vpop.f32.mrb[0].mxu0
    %v3863 = vpop.f32.mrb[0].mxu0
    %3864 = vdwg.mxu0
    %3865 = vmatprep.subr.bf16.mxu0 %v2691
    %3866 = vmatpush1.bf16.msra.mxu0 %v2690
    %3867 = vmatprep.subr.bf16.mxu0 %v2699
    %3868 = vmatpush1.bf16.msra.mxu0 %v2698
    %3869 = vmatprep.subr.bf16.mxu0 %v2707
    %3870 = vmatpush1.bf16.msra.mxu0 %v2706
    %3871 = vmatprep.subr.bf16.mxu0 %v2715
    %3872 = vmatpush1.bf16.msra.mxu0 %v2714
    %3873 = vmatprep.subr.bf16.mxu0 %v2723
    %3874 = vmatpush1.bf16.msra.mxu0 %v2722
    %3875 = vmatprep.subr.bf16.mxu0 %v2731
    %3876 = vmatpush1.bf16.msra.mxu0 %v2730
    %3877 = vmatprep.subr.bf16.mxu0 %v2739
    %3878 = vmatpush1.bf16.msra.mxu0 %v2738
    %3879 = vmatprep.subr.bf16.mxu0 %v2747
    %3880 = vmatpush1.bf16.msra.mxu0 %v2746
    %3881 = vmatprep.subr.bf16.mxu0 %v2755
    %3882 = vmatpush1.bf16.msra.mxu0 %v2754
    %3883 = vmatprep.subr.bf16.mxu0 %v2763
    %3884 = vmatpush1.bf16.msra.mxu0 %v2762
    %3885 = vmatprep.subr.bf16.mxu0 %v2771
    %3886 = vmatpush1.bf16.msra.mxu0 %v2770
    %3887 = vmatprep.subr.bf16.mxu0 %v2779
    %3888 = vmatpush1.bf16.msra.mxu0 %v2778
    %3889 = vmatprep.subr.bf16.mxu0 %v2787
    %3890 = vmatpush1.bf16.msra.mxu0 %v2786
    %3891 = vmatprep.subr.bf16.mxu0 %v2795
    %3892 = vmatpush1.bf16.msra.mxu0 %v2794
    %3893 = vmatprep.subr.bf16.mxu0 %v2803
    %3894 = vmatpush1.bf16.msra.mxu0 %v2802
    %3895 = vmatprep.subr.bf16.mxu0 %v2811
    %3896 = vmatpush1.bf16.msra.mxu0 %v2810
    %3897 = vmatprep.mubr.bf16.mxu0 %v3741
    %3898 = vmatmul.mubr.bf16.gmra.mrb[0].mxu0 %v3740
    %v3899 = vpop.f32.mrb[0].mxu0
    %v3900 = vadd.f32 0.0, %v3899
    %v3901 = vpop.f32.mrb[0].mxu0
    %v3902 = vadd.f32 0.0, %v3901
    %v3903 = vpop.f32.mrb[0].mxu0
    %v3904 = vpop.f32.mrb[0].mxu0
    %3905 = vdwg.mxu0
    %v3906 = vadd.f32 %v3704, %v3777
    %v3907 = vadd.f32 %v3712, %v3779
    %v3908 = vadd.f32 %v3711, %v3818
    %v3909 = vadd.f32 %v3713, %v3820
    %v3910 = vadd.f32 %v3726, %v3859
    %v3911 = vadd.f32 %v3734, %v3861
    %v3912 = vadd.f32 %v3733, %v3900
    %v3913 = vadd.f32 %v3735, %v3902
    %v3914 = vxor.u32 %v3906, 2147483648
    %v3915 = vmul.f32 %v3914, 1.442695
    %v3916 = vpow.pop %v3915
    %v3917 = vadd.f32 %v3916, 1.0
    %v3918 = vrcp.pop %v3917
    %v3919 = vmul.f32 1.0, %v3918
    %v3920 = vxor.u32 %v3907, 2147483648
    %v3921 = vmul.f32 %v3920, 1.442695
    %v3922 = vpow.pop %v3921
    %v3923 = vadd.f32 %v3922, 1.0
    %v3924 = vrcp.pop %v3923
    %v3925 = vmul.f32 1.0, %v3924
    %v3926 = vtanh.pop %v3908
    %v3927 = vxor.u32 %v3909, 2147483648
    %v3928 = vmul.f32 %v3927, 1.442695
    %v3929 = vpow.pop %v3928
    %v3930 = vadd.f32 %v3929, 1.0
    %v3931 = vrcp.pop %v3930
    %v3932 = vmul.f32 1.0, %v3931
    %v3933 = vxor.u32 %v3910, 2147483648
    %v3934 = vmul.f32 %v3933, 1.442695
    %v3935 = vpow.pop %v3934
    %v3936 = vadd.f32 %v3935, 1.0
    %v3937 = vrcp.pop %v3936
    %v3938 = vmul.f32 1.0, %v3937
    %v3939 = vxor.u32 %v3911, 2147483648
    %v3940 = vmul.f32 %v3939, 1.442695
    %v3941 = vpow.pop %v3940
    %v3942 = vadd.f32 %v3941, 1.0
    %v3943 = vrcp.pop %v3942
    %v3944 = vmul.f32 1.0, %v3943
    %v3945 = vtanh.pop %v3912
    %v3946 = vxor.u32 %v3913, 2147483648
    %v3947 = vmul.f32 %v3946, 1.442695
    %v3948 = vpow.pop %v3947
    %v3949 = vadd.f32 %v3948, 1.0
    %v3950 = vrcp.pop %v3949
    %v3951 = vmul.f32 1.0, %v3950
    %v3952 = vmul.f32 %v3925, %v3688
    %v3953 = vmul.f32 %v3919, %v3926
    %v3954 = vadd.f32 %v3952, %v3953
    %v3955 = vtanh.pop %v3954
    %v3956 = vmul.f32 %v3932, %v3955
    %v3957 = vmul.f32 %v3944, %v3693
    %v3958 = vmul.f32 %v3938, %v3945
    %v3959 = vadd.f32 %v3957, %v3958
    %v3960 = vtanh.pop %v3959
    %v3961 = vmul.f32 %v3951, %v3960
    %v3962 = vpack.c.bf16 %v3956, %v3956
    %v3963 = vpack.c.bf16 %v3961, %v3961
    %v3964 = vld [vmem:[%s8] sm:$0xf]
    %v3965 = vld [vmem:[%s8 + $0x4] sm:$0xf]
    %v3966 = vld [vmem:[%s8 + $0x8] sm:$0xf]
    %v3967 = vld [vmem:[%s8 + $0xc] sm:$0xf]
    %v3968 = vld [vmem:[%s8 + $0x10] sm:$0xf]
    %v3969 = vld [vmem:[%s8 + $0x14] sm:$0xf]
    %v3970 = vld [vmem:[%s8 + $0x18] sm:$0xf]
    %v3971 = vld [vmem:[%s8 + $0x1c] sm:$0xf]
    %v3972 = vld [vmem:[%s8 + $0x20] sm:$0xf]
    %v3973 = vld [vmem:[%s8 + $0x24] sm:$0xf]
    %v3974 = vld [vmem:[%s8 + $0x28] sm:$0xf]
    %v3975 = vld [vmem:[%s8 + $0x2c] sm:$0xf]
    %v3976 = vld [vmem:[%s8 + $0x30] sm:$0xf]
    %v3977 = vld [vmem:[%s8 + $0x34] sm:$0xf]
    %v3978 = vld [vmem:[%s8 + $0x38] sm:$0xf]
    %v3979 = vld [vmem:[%s8 + $0x3c] sm:$0xf]
    %v3980 = vld [vmem:[%s8 + $0x40] sm:$0xf]
    %v3981 = vld [vmem:[%s8 + $0x44] sm:$0xf]
    %v3982 = vld [vmem:[%s8 + $0x48] sm:$0xf]
    %v3983 = vld [vmem:[%s8 + $0x4c] sm:$0xf]
    %v3984 = vld [vmem:[%s8 + $0x50] sm:$0xf]
    %v3985 = vld [vmem:[%s8 + $0x54] sm:$0xf]
    %v3986 = vld [vmem:[%s8 + $0x58] sm:$0xf]
    %v3987 = vld [vmem:[%s8 + $0x5c] sm:$0xf]
    %v3988 = vld [vmem:[%s8 + $0x60] sm:$0xf]
    %v3989 = vld [vmem:[%s8 + $0x64] sm:$0xf]
    %v3990 = vld [vmem:[%s8 + $0x68] sm:$0xf]
    %v3991 = vld [vmem:[%s8 + $0x6c] sm:$0xf]
    %v3992 = vld [vmem:[%s8 + $0x70] sm:$0xf]
    %v3993 = vld [vmem:[%s8 + $0x74] sm:$0xf]
    %v3994 = vld [vmem:[%s8 + $0x78] sm:$0xf]
    %v3995 = vld [vmem:[%s8 + $0x7c] sm:$0xf]
    %v3996 = vld [vmem:[%s9] sm:$0x1]
    %v3998 = vlaneseq
    %v3999 = vshrl.u32 %v3998, 7
    %v4000 = vsub.s32 0, %v3999
    %v4001 = vrot.slane %v3996, %v4000
    %v4035 = vunpack.c.l.b16 %v3964
    %v4036 = vunpack.c.l.b16 %v3965
    %v4037 = vunpack.c.l.b16 %v3966
    %v4038 = vunpack.c.l.b16 %v3967
    %v4039 = vunpack.c.l.b16 %v3968
    %v4040 = vunpack.c.l.b16 %v3969
    %v4041 = vunpack.c.l.b16 %v3970
    %v4042 = vunpack.c.l.b16 %v3971
    %v4043 = vunpack.c.l.b16 %v3972
    %v4044 = vunpack.c.l.b16 %v3973
    %v4045 = vunpack.c.l.b16 %v3974
    %v4046 = vunpack.c.l.b16 %v3975
    %v4047 = vunpack.c.l.b16 %v3976
    %v4048 = vunpack.c.l.b16 %v3977
    %v4049 = vunpack.c.l.b16 %v3978
    %v4050 = vunpack.c.l.b16 %v3979
    %v4051 = vunpack.c.l.b16 %v3980
    %v4052 = vunpack.c.l.b16 %v3981
    %v4053 = vunpack.c.l.b16 %v3982
    %v4054 = vunpack.c.l.b16 %v3983
    %v4055 = vunpack.c.l.b16 %v3984
    %v4056 = vunpack.c.l.b16 %v3985
    %v4057 = vunpack.c.l.b16 %v3986
    %v4058 = vunpack.c.l.b16 %v3987
    %v4059 = vunpack.c.l.b16 %v3988
    %v4060 = vunpack.c.l.b16 %v3989
    %v4061 = vunpack.c.l.b16 %v3990
    %v4062 = vunpack.c.l.b16 %v3991
    %v4063 = vunpack.c.l.b16 %v3992
    %v4064 = vunpack.c.l.b16 %v3993
    %v4065 = vunpack.c.l.b16 %v3994
    %v4066 = vunpack.c.l.b16 %v3995
    %v4067 = vpack.c.b16 %v4036, %v4035
    %v4068 = vpack.c.b16 %v4038, %v4037
    %v4069 = vpack.c.b16 %v4040, %v4039
    %v4070 = vpack.c.b16 %v4042, %v4041
    %v4071 = vpack.c.b16 %v4044, %v4043
    %v4072 = vpack.c.b16 %v4046, %v4045
    %v4073 = vpack.c.b16 %v4048, %v4047
    %v4074 = vpack.c.b16 %v4050, %v4049
    %v4075 = vpack.c.b16 %v4052, %v4051
    %v4076 = vpack.c.b16 %v4054, %v4053
    %v4077 = vpack.c.b16 %v4056, %v4055
    %v4078 = vpack.c.b16 %v4058, %v4057
    %v4079 = vpack.c.b16 %v4060, %v4059
    %v4080 = vpack.c.b16 %v4062, %v4061
    %v4081 = vpack.c.b16 %v4064, %v4063
    %v4082 = vpack.c.b16 %v4066, %v4065
    %4099 = vmatprep.subr.bf16.mxu0 0
    %4100 = vmatpush1.bf16.msra.mxu0 %v4067
    %4101 = vmatprep.subr.bf16.mxu0 0
    %4102 = vmatpush1.bf16.msra.mxu0 %v4068
    %4103 = vmatprep.subr.bf16.mxu0 0
    %4104 = vmatpush1.bf16.msra.mxu0 %v4069
    %4105 = vmatprep.subr.bf16.mxu0 0
    %4106 = vmatpush1.bf16.msra.mxu0 %v4070
    %4107 = vmatprep.subr.bf16.mxu0 0
    %4108 = vmatpush1.bf16.msra.mxu0 %v4071
    %4109 = vmatprep.subr.bf16.mxu0 0
    %4110 = vmatpush1.bf16.msra.mxu0 %v4072
    %4111 = vmatprep.subr.bf16.mxu0 0
    %4112 = vmatpush1.bf16.msra.mxu0 %v4073
    %4113 = vmatprep.subr.bf16.mxu0 0
    %4114 = vmatpush1.bf16.msra.mxu0 %v4074
    %4115 = vmatprep.subr.bf16.mxu0 0
    %4116 = vmatpush1.bf16.msra.mxu0 %v4075
    %4117 = vmatprep.subr.bf16.mxu0 0
    %4118 = vmatpush1.bf16.msra.mxu0 %v4076
    %4119 = vmatprep.subr.bf16.mxu0 0
    %4120 = vmatpush1.bf16.msra.mxu0 %v4077
    %4121 = vmatprep.subr.bf16.mxu0 0
    %4122 = vmatpush1.bf16.msra.mxu0 %v4078
    %4123 = vmatprep.subr.bf16.mxu0 0
    %4124 = vmatpush1.bf16.msra.mxu0 %v4079
    %4125 = vmatprep.subr.bf16.mxu0 0
    %4126 = vmatpush1.bf16.msra.mxu0 %v4080
    %4127 = vmatprep.subr.bf16.mxu0 0
    %4128 = vmatpush1.bf16.msra.mxu0 %v4081
    %4129 = vmatprep.subr.bf16.mxu0 0
    %4130 = vmatpush1.bf16.msra.mxu0 %v4082
    %4131 = vmatprep.mubr.bf16.mxu0 %v3963
    %4132 = vmatmul.mubr.bf16.gmra.mrb[0].mxu0 %v3962
    %v4133 = vpop.f32.mrb[0].mxu0
    %v4134 = vadd.f32 %v4001, %v4133
    %v4135 = vpop.f32.mrb[0].mxu0
    %v4136 = vpop.f32.mrb[0].mxu0
    %v4137 = vpop.f32.mrb[0].mxu0
    %4138 = vdwg.mxu0
    %v4139 = vmax.f32 %v4134, 0.0
    %v4140 = vpack.c.bf16 %v4139, %v4139
    %v4141 = vld [vmem:[%s10] sm:$0xf]
    %v4142 = vld [vmem:[%s10 + $0x4] sm:$0xf]
    %v4143 = vld [vmem:[%s10 + $0x8] sm:$0xf]
    %v4144 = vld [vmem:[%s10 + $0xc] sm:$0xf]
    %v4145 = vld [vmem:[%s10 + $0x10] sm:$0xf]
    %v4146 = vld [vmem:[%s10 + $0x14] sm:$0xf]
    %v4147 = vld [vmem:[%s10 + $0x18] sm:$0xf]
    %v4148 = vld [vmem:[%s10 + $0x1c] sm:$0xf]
    %v4149 = vld [vmem:[%s10 + $0x20] sm:$0xf]
    %v4150 = vld [vmem:[%s10 + $0x24] sm:$0xf]
    %v4151 = vld [vmem:[%s10 + $0x28] sm:$0xf]
    %v4152 = vld [vmem:[%s10 + $0x2c] sm:$0xf]
    %v4153 = vld [vmem:[%s10 + $0x30] sm:$0xf]
    %v4154 = vld [vmem:[%s10 + $0x34] sm:$0xf]
    %v4155 = vld [vmem:[%s10 + $0x38] sm:$0xf]
    %v4156 = vld [vmem:[%s10 + $0x3c] sm:$0xf]
    %v4157 = vld [vmem:[%s11] sm:$0x1]
    %v4159 = vlaneseq
    %v4160 = vshrl.u32 %v4159, 7
    %v4161 = vsub.s32 0, %v4160
    %v4162 = vrot.slane %v4157, %v4161
    %v4180 = vunpack.c.l.b16 %v4141
    %v4181 = vunpack.c.l.b16 %v4142
    %v4182 = vunpack.c.l.b16 %v4143
    %v4183 = vunpack.c.l.b16 %v4144
    %v4184 = vunpack.c.l.b16 %v4145
    %v4185 = vunpack.c.l.b16 %v4146
    %v4186 = vunpack.c.l.b16 %v4147
    %v4187 = vunpack.c.l.b16 %v4148
    %v4188 = vunpack.c.l.b16 %v4149
    %v4189 = vunpack.c.l.b16 %v4150
    %v4190 = vunpack.c.l.b16 %v4151
    %v4191 = vunpack.c.l.b16 %v4152
    %v4192 = vunpack.c.l.b16 %v4153
    %v4193 = vunpack.c.l.b16 %v4154
    %v4194 = vunpack.c.l.b16 %v4155
    %v4195 = vunpack.c.l.b16 %v4156
    %v4196 = vpack.c.b16 %v4181, %v4180
    %v4197 = vpack.c.b16 %v4183, %v4182
    %v4198 = vpack.c.b16 %v4185, %v4184
    %v4199 = vpack.c.b16 %v4187, %v4186
    %v4200 = vpack.c.b16 %v4189, %v4188
    %v4201 = vpack.c.b16 %v4191, %v4190
    %v4202 = vpack.c.b16 %v4193, %v4192
    %v4203 = vpack.c.b16 %v4195, %v4194
    %4212 = vmatprep.subr.bf16.mxu0 0
    %4213 = vmatpush1.bf16.msra.mxu0 %v4196
    %4214 = vmatprep.subr.bf16.mxu0 0
    %4215 = vmatpush1.bf16.msra.mxu0 %v4197
    %4216 = vmatprep.subr.bf16.mxu0 0
    %4217 = vmatpush1.bf16.msra.mxu0 %v4198
    %4218 = vmatprep.subr.bf16.mxu0 0
    %4219 = vmatpush1.bf16.msra.mxu0 %v4199
    %4220 = vmatprep.subr.bf16.mxu0 0
    %4221 = vmatpush1.bf16.msra.mxu0 %v4200
    %4222 = vmatprep.subr.bf16.mxu0 0
    %4223 = vmatpush1.bf16.msra.mxu0 %v4201
    %4224 = vmatprep.subr.bf16.mxu0 0
    %4225 = vmatpush1.bf16.msra.mxu0 %v4202
    %4226 = vmatprep.subr.bf16.mxu0 0
    %4227 = vmatpush1.bf16.msra.mxu0 %v4203
    %4228 = vmatprep.subr.bf16.mxu0 0
    %4229 = vmatpush1.bf16.msra.mxu0 0
    %4230 = vmatprep.subr.bf16.mxu0 0
    %4231 = vmatpush1.bf16.msra.mxu0 0
    %4232 = vmatprep.subr.bf16.mxu0 0
    %4233 = vmatpush1.bf16.msra.mxu0 0
    %4234 = vmatprep.subr.bf16.mxu0 0
    %4235 = vmatpush1.bf16.msra.mxu0 0
    %4236 = vmatprep.subr.bf16.mxu0 0
    %4237 = vmatpush1.bf16.msra.mxu0 0
    %4238 = vmatprep.subr.bf16.mxu0 0
    %4239 = vmatpush1.bf16.msra.mxu0 0
    %4240 = vmatprep.subr.bf16.mxu0 0
    %4241 = vmatpush1.bf16.msra.mxu0 0
    %4242 = vmatprep.subr.bf16.mxu0 0
    %4243 = vmatpush1.bf16.msra.mxu0 0
    %4244 = vmatprep.mubr.bf16.mxu0 0
    %4245 = vmatmul.mubr.bf16.gmra.mrb[0].mxu0 %v4140
    %v4246 = vpop.f32.mrb[0].mxu0
    %v4247 = vadd.f32 %v4162, %v4246
    %v4248 = vpop.f32.mrb[0].mxu0
    %v4249 = vpop.f32.mrb[0].mxu0
    %v4250 = vpop.f32.mrb[0].mxu0
    %4251 = vdwg.mxu0
    %v4252 = vsel %vm475, %v4247, -inf
    %4253 = vmax.xlane.f32.xlu0 %v4252
    %v4254 = vpop.xlane.xlu0 %4253
    %v4255 = vsub.f32 %v4247, %v4254
    %v4256 = vmul.f32 %v4255, 1.442695
    %v4257 = vpow.pop %v4256
    %v4258 = vsel %vm475, %v4257, 0.0
    %4259 = vadd.xlane.f32.xlu0 %v4258
    %v4260 = vpop.xlane.xlu0 %4259
    %v4261 = vrcp.pop %v4260
    %v4262 = vmul.f32 %v4257, %v4261
    %4263 = vst [vmem:[#allocation5] sm:$0x3] %v4262
    // Predicated region
    $region50: #{_lambda_.1} parent=1 // pred_check
      _
    $region51: #{_lambda_.1} parent=1 // pred_check_branch
      %4265 = sbr.rel (0) target = $region53
    $region52: #{_lambda_.1} parent=1 // pred_region
      %s4267 = ssub.s32 32, 32
      %4268 = vsyncadd [#allocation6], %s4267
      %s4270 = sshll.u32 [#allocation5], 4
      %s4271 = int_to_ptr.vmem [resolvable:$true] %s4270
      %4273 = dma.vmem_to_hbm [thread:$0]  %s4271, 32, %s12, [#allocation6]
    $region53: #{_lambda_.1} parent=1 // pred_fallthru
      _
    // Predicated region
    $region54: #{_lambda_.1} parent=1 // pred_check
      _
    $region55: #{_lambda_.1} parent=1 // pred_check_branch
      %4275 = sbr.rel (0) target = $region57
    $region56: #{_lambda_.1} parent=1 // pred_region
      %4276 = dma.done [#allocation6], 32
    $region57: #{_lambda_.1} parent=1 // pred_fallthru
      _
    %4277 = vsyncpa [#allocation6], 1

</llo_original>
